<compile_context>
chip_gen: v7x
topology: tpu7x:2x2x1
jax: 0.10.0
libtpu: 0.0.40
codegen_flags: <defaults>
</compile_context>

<pallas_src>
import functools

import numpy as np
import jax
import jax.numpy as jnp
from jax.experimental import pallas as pl
from jax.experimental.pallas import tpu as pltpu

G = 4  # width-packing factor: G logical pixels share one packed column.


# ----------------------- host-side weight packing -----------------------------
def _pack_conv3x3(w):
    """Pack a 3x3 'same' conv (kH, kW, Cin, Cout) into width-packed form.

    Returns M of shape (3, 3, G*Cin, G*Cout).  M[dy, d] multiplies the packed
    slab taken at packed-column offset d (d = 0, 1, 2  <->  shift -1, 0, +1).
    """
    w = np.asarray(w, np.float32)
    _, _, cin, cout = w.shape
    M = np.zeros((3, 3, G * cin, G * cout), np.float32)
    for dy in range(3):
        for d in range(3):           # packed-column shift + 1
            for q in range(G):       # output sub-pixel within packed group
                for qi in range(G):  # input sub-pixel within packed group
                    dx = G * (d - 1) + qi - q + 1
                    if 0 <= dx <= 2:
                        M[dy, d, qi * cin:(qi + 1) * cin,
                          q * cout:(q + 1) * cout] = w[dy, dx]
    return M


def _pack_deconv(wd):
    """Pack ConvTranspose2d(k=2, s=2) weights (a, b, Cin, Cup) for a (Gy=2)
    width-packed input and a (G=4) width-packed output.

    Returns WD of shape (2, 2*Cin, G*Cup); WD[a] maps one packed input row to
    the packed output row of parity a.  (Assumes G == 4 and stride == kernel.)
    """
    wd = np.asarray(wd, np.float32)
    _, _, ciny, cup = wd.shape
    WD = np.zeros((2, 2 * ciny, G * cup), np.float32)
    for a in range(2):
        for jq in range(2):          # input-pixel parity within packed column
            for b in range(2):       # output-column parity of this tap
                q = 2 * jq + b       # output sub-pixel within packed group
                WD[a, jq * ciny:(jq + 1) * ciny,
                   q * cup:(q + 1) * cup] = wd[a, b]
    return WD


# --------------------------- fused decoder level ------------------------------
def _decoder_level_kernel(y_ref, left_ref, wd_ref, bd_ref, m1u_ref, m1l_ref,
                          b1_ref, m2_ref, b2_ref, o_ref,
                          up_pad, left_pad, h_pad,
                          *, H, Wq, Ciny, Cup, Cout):
    """One decoder level for one batch element; all intermediates stay in VMEM.

    y_ref   : (1, H,  Wq, 2*Ciny)  bf16  width-packed (Gy=2) input activation
    left_ref: (1, 2H, Wq, G*Cup)   bf16  width-packed (G=4) encoder skip
    wd_ref  : (2, 2*Ciny, G*Cup)   bf16  packed deconv weights (per row parity)
    m1u/m1l : (3, 3, G*Cup, G*Cout) bf16 packed conv1 weights (up / left halves)
    m2_ref  : (3, 3, G*Cout, G*Cout) bf16 packed conv2 weights
    bd/b1/b2: (1, G*C)             f32   packed (tiled) biases
    o_ref   : (1, 2H, Wq, G*Cout)  bf16  width-packed (G=4) output
    scratch : up_pad/left_pad (2H+2, Wq+2, G*Cup), h_pad (2H+2, Wq+2, G*Cout)
    """
    f32, bf16 = jnp.float32, jnp.bfloat16
    H2 = 2 * H
    npk = H2 * Wq  # packed pixels per conv matmul (M dim)

    # Zero padded scratch each step (cheap, few KiB); only the 1-column /
    # 1-row borders actually need to be zero, interiors are fully overwritten.
    # Re-zeroing every step keeps this correct when the batch axis is sharded
    # across megacore TensorCores (scratch is per-core).
    up_pad[...] = jnp.zeros_like(up_pad)
    left_pad[...] = jnp.zeros_like(left_pad)
    h_pad[...] = jnp.zeros_like(h_pad)

    # ---- ConvTranspose2d(k=2, s=2): one matmul per output-row parity.  The
    #      W-interleave is already encoded in wd_ref's packed column layout;
    #      the H-interleave is done with static row stores into the padded
    #      scratch.  stride == kernel  =>  taps are disjoint, so the bias is
    #      added exactly once per output pixel. ----
    y2d = y_ref[0].reshape(H * Wq, 2 * Ciny)
    for a in range(2):
        r = jnp.dot(y2d, wd_ref[a], preferred_element_type=f32) + bd_ref[...]
        r3 = r.astype(bf16).reshape(H, Wq, G * Cup)
        for i in range(H):
            up_pad[1 + 2 * i + a, pl.ds(1, Wq), :] = r3[i]

    # skip = concat([up, left], channels): kept as two separate padded buffers
    # (no physical concat); conv1's weights are split accordingly.
    left_pad[pl.ds(1, H2), pl.ds(1, Wq), :] = left_ref[0]

    def conv3x3_relu(inputs, b_ref, cpk_out):
        # 3x3 "same" conv in width-packed space: 9 shifted slabs per input,
        # each a single accumulated MXU matmul (no im2col concat, no padding
        # matmuls -- padding comes from the zeroed scratch borders).
        acc = jnp.zeros((npk, cpk_out), f32)
        for x_pad, m_ref in inputs:
            for dy in range(3):
                for d in range(3):
                    slab = x_pad[dy:dy + H2, d:d + Wq, :].reshape(npk, -1)
                    acc = acc + jnp.dot(slab, m_ref[dy, d],
                                        preferred_element_type=f32)
        return jnp.maximum(acc + b_ref[...], 0.0).astype(bf16)

    # ---- ConvBlock: conv1 + ReLU, re-pad in VMEM, conv2 + ReLU ----
    h1 = conv3x3_relu([(up_pad[...], m1u_ref), (left_pad[...], m1l_ref)],
                      b1_ref, G * Cout)
    h_pad[pl.ds(1, H2), pl.ds(1, Wq), :] = h1.reshape(H2, Wq, G * Cout)
    out = conv3x3_relu([(h_pad[...], m2_ref)], b2_ref, G * Cout)
    o_ref[0] = out.reshape(H2, Wq, G * Cout)


def decoder_level(y_pack, left_nhwc, p):
    """One decoder level, fully fused in a single pallas_call.

    y_pack   : (N, H, W//2, 2*Ciny) bf16  width-packed input activation
    left_nhwc: (N, 2H, 2W, Cup)     bf16  encoder skip activation (NHWC)
    returns  : (N, 2H, W//2, G*Cout) bf16 width-packed output (G = 4)
    """
    N, H, Wh, C2 = y_pack.shape
    Ciny = C2 // 2
    W = 2 * Wh
    Cup = Ciny // 2
    Cout = Cup
    H2, W2 = 2 * H, 2 * W
    Wq = W2 // G
    assert W2 % G == 0 and Wq == Wh, "input width of y must be even"
    assert left_nhwc.shape == (N, H2, W2, Cup), left_nhwc.shape

    bf16 = jnp.bfloat16
    left_pack = left_nhwc.reshape(N, H2, Wq, G * Cup)          # free view

    w1 = np.asarray(p['conv1_w'], np.float32)                  # (3,3,2*Cup,Cout)
    wd_p = jnp.asarray(_pack_deconv(p['deconv_w']), bf16)      # (2, 2*Ciny, G*Cup)
    m1u = jnp.asarray(_pack_conv3x3(w1[:, :, :Cup, :]), bf16)  # (3,3,G*Cup,G*Cout)
    m1l = jnp.asarray(_pack_conv3x3(w1[:, :, Cup:, :]), bf16)
    m2 = jnp.asarray(_pack_conv3x3(p['conv2_w']), bf16)        # (3,3,G*Cout,G*Cout)
    bd_p = jnp.tile(jnp.asarray(p['deconv_b'], jnp.float32), (1, G))
    b1_p = jnp.tile(jnp.asarray(p['conv1_b'], jnp.float32), (1, G))
    b2_p = jnp.tile(jnp.asarray(p['conv2_b'], jnp.float32), (1, G))

    kernel = functools.partial(_decoder_level_kernel, H=H, Wq=Wq,
                               Ciny=Ciny, Cup=Cup, Cout=Cout)
    return pl.pallas_call(
        kernel,
        out_shape=jax.ShapeDtypeStruct((N, H2, Wq, G * Cout), bf16),
        grid=(N,),
        in_specs=[
            pl.BlockSpec((1, H, Wq, 2 * Ciny), lambda n: (n, 0, 0, 0)),
            pl.BlockSpec((1, H2, Wq, G * Cup), lambda n: (n, 0, 0, 0)),
            pl.BlockSpec((2, 2 * Ciny, G * Cup), lambda n: (0, 0, 0)),
            pl.BlockSpec((1, G * Cup), lambda n: (0, 0)),
            pl.BlockSpec((3, 3, G * Cup, G * Cout), lambda n: (0, 0, 0, 0)),
            pl.BlockSpec((3, 3, G * Cup, G * Cout), lambda n: (0, 0, 0, 0)),
            pl.BlockSpec((1, G * Cout), lambda n: (0, 0)),
            pl.BlockSpec((3, 3, G * Cout, G * Cout), lambda n: (0, 0, 0, 0)),
            pl.BlockSpec((1, G * Cout), lambda n: (0, 0)),
        ],
        out_specs=pl.BlockSpec((1, H2, Wq, G * Cout), lambda n: (n, 0, 0, 0)),
        scratch_shapes=[
            pltpu.VMEM((H2 + 2, Wq + 2, G * Cup), bf16),   # padded up
            pltpu.VMEM((H2 + 2, Wq + 2, G * Cup), bf16),   # padded left
            pltpu.VMEM((H2 + 2, Wq + 2, G * Cout), bf16),  # padded conv1 out
        ],
        compiler_params=pltpu.CompilerParams(
            dimension_semantics=("parallel",),
            vmem_limit_bytes=32 * 1024 * 1024),
    )(y_pack, left_pack, wd_p, bd_p, m1u, m1l, b1_p, m2, b2_p)


# ------------------------------ DecoderConvBlock ------------------------------
def init_params(key, num_filters, num_blocks):
    params = {}
    for i in range(num_blocks, 0, -1):
        cin = num_filters * 2 ** i          # channels of y entering level i
        cout = num_filters * 2 ** (i - 1)   # channels produced at level i
        key, k1, k2, k3 = jax.random.split(key, 4)
        params[i] = dict(
            deconv_w=0.1 * jax.random.normal(k1, (2, 2, cin, cout), jnp.float32),
            deconv_b=jnp.full((1, cout), 0.01, jnp.float32),
            conv1_w=0.1 * jax.random.normal(k2, (3, 3, cin, cout), jnp.float32),
            conv1_b=jnp.full((1, cout), 0.01, jnp.float32),
            conv2_w=0.1 * jax.random.normal(k3, (3, 3, cout, cout), jnp.float32),
            conv2_b=jnp.full((1, cout), 0.01, jnp.float32),
        )
    return params


def decoder_conv_block_forward(acts, params, num_blocks):
    """acts: list of NHWC encoder activations, acts[l] has num_filters*2**l chans."""
    acts = [a.astype(jnp.bfloat16) for a in acts]
    y = acts[-1]
    N, H, W, C = y.shape
    assert W % 2 == 0
    y_pack = y.reshape(N, H, W // 2, 2 * C)                # width-pack (free view)
    out_pack = None
    for i in range(num_blocks, 0, -1):
        out_pack = decoder_level(y_pack, acts[i - 1], params[i])
        N, H2, Wq, C4 = out_pack.shape
        # re-interpret G=4 packing as the next level's Gy=2 packing (free view)
        y_pack = out_pack.reshape(N, H2, 2 * Wq, C4 // 2)
    return out_pack.reshape(N, H2, G * Wq, C4 // G).astype(jnp.float32)


# --------------------------- pure-JAX f32 reference ---------------------------
def _ref_level(y, left, p):
    N, H, W, Cin = y.shape
    Cup = Cin // 2
    up = jnp.zeros((N, 2 * H, 2 * W, Cup), jnp.float32)
    for a in range(2):
        for b in range(2):
            tap = jnp.einsum('nhwc,cd->nhwd', y, p['deconv_w'][a, b]) + p['deconv_b'][0]
            up = up.at[:, a::2, b::2, :].set(tap)
    skip = jnp.concatenate([up, left], axis=-1)

    def conv3x3_relu(x, w, bias):
        Hh, Ww = x.shape[1], x.shape[2]
        xp = jnp.pad(x, ((0, 0), (1, 1), (1, 1), (0, 0)))
        acc = jnp.zeros(x.shape[:3] + (w.shape[-1],), jnp.float32)
        for dy in range(3):
            for dx in range(3):
                acc = acc + jnp.einsum('nhwc,cd->nhwd',
                                       xp[:, dy:dy + Hh, dx:dx + Ww, :], w[dy, dx])
        return jnp.maximum(acc + bias[0], 0.0)

    h = conv3x3_relu(skip, p['conv1_w'], p['conv1_b'])
    return conv3x3_relu(h, p['conv2_w'], p['conv2_b'])


def _ref_forward(acts, params, num_blocks):
    y = acts[-1]
    for i in range(num_blocks, 0, -1):
        y = _ref_level(y, acts[i - 1], params[i])
    return y


if __name__ == "__main__":
    num_filters, num_blocks, N, S = 4, 2, 2, 16
    key = jax.random.PRNGKey(0)
    keys = jax.random.split(key, num_blocks + 2)
    acts = []
    for l in range(num_blocks + 1):
        c = num_filters * 2 ** l
        s = S // 2 ** l
        acts.append(jax.random.normal(keys[l], (N, s, s, c), jnp.float32))
    params = init_params(keys[-1], num_filters, num_blocks)

    y = decoder_conv_block_forward(acts, params, num_blocks)
    y = jax.block_until_ready(y)

    assert y.shape == (N, S, S, num_filters), y.shape
    assert bool(jnp.all(jnp.isfinite(y)))

    # Check against a pure-JAX f32 reference (loose tolerance: kernel is bf16).
    y_ref = jax.block_until_ready(_ref_forward(acts, params, num_blocks))
    np.testing.assert_allclose(np.asarray(y), np.asarray(y_ref), rtol=0.2, atol=0.2)

    print("KERNEL_OK")
</pallas_src>

<mosaic_0001>
module attributes {stable_mosaic.version = 11 : i64} {
  func.func @_decoder_level_kernel(%arg0: i32, %arg1: memref<1x4x2x32xbf16, #tpu.memory_space<vmem>>, %arg2: memref<1x8x2x32xbf16, #tpu.memory_space<vmem>>, %arg3: memref<2x32x32xbf16, #tpu.memory_space<vmem>>, %arg4: memref<1x32xf32, #tpu.memory_space<vmem>>, %arg5: memref<3x3x32x32xbf16, #tpu.memory_space<vmem>>, %arg6: memref<3x3x32x32xbf16, #tpu.memory_space<vmem>>, %arg7: memref<1x32xf32, #tpu.memory_space<vmem>>, %arg8: memref<3x3x32x32xbf16, #tpu.memory_space<vmem>>, %arg9: memref<1x32xf32, #tpu.memory_space<vmem>>, %arg10: memref<1x8x2x32xbf16, #tpu.memory_space<vmem>>, %arg11: memref<10x4x32xbf16, #tpu.memory_space<vmem>>, %arg12: memref<10x4x32xbf16, #tpu.memory_space<vmem>>, %arg13: memref<10x4x32xbf16, #tpu.memory_space<vmem>>) attributes {dimension_semantics = [#tpu.dimension_semantics<parallel>], iteration_bounds = array<i64: 2>, scalar_prefetch = 0 : i64, scratch_operands = 3 : i64, tpu.core_type = #tpu.core_type<tc>, window_params = [{transform_indices = @transform_0, window_bounds = array<i64: 1, 4, 2, 32>}, {transform_indices = @transform_1, window_bounds = array<i64: 1, 8, 2, 32>}, {pipeline_mode = #tpu.pipeline_mode<synchronous>, transform_indices = @transform_2, window_bounds = array<i64: 2, 32, 32>}, {pipeline_mode = #tpu.pipeline_mode<synchronous>, transform_indices = @transform_3, window_bounds = array<i64: 1, 32>}, {pipeline_mode = #tpu.pipeline_mode<synchronous>, transform_indices = @transform_4, window_bounds = array<i64: 3, 3, 32, 32>}, {pipeline_mode = #tpu.pipeline_mode<synchronous>, transform_indices = @transform_5, window_bounds = array<i64: 3, 3, 32, 32>}, {pipeline_mode = #tpu.pipeline_mode<synchronous>, transform_indices = @transform_6, window_bounds = array<i64: 1, 32>}, {pipeline_mode = #tpu.pipeline_mode<synchronous>, transform_indices = @transform_7, window_bounds = array<i64: 3, 3, 32, 32>}, {pipeline_mode = #tpu.pipeline_mode<synchronous>, transform_indices = @transform_8, window_bounds = array<i64: 1, 32>}, {transform_indices = @transform_9, window_bounds = array<i64: 1, 8, 2, 32>}]} {
    %cst = arith.constant 0.000000e+00 : bf16
    %0 = vector.broadcast %cst : bf16 to vector<10x4x32xbf16>
    %c0 = arith.constant 0 : index
    %c0_0 = arith.constant 0 : index
    %c0_1 = arith.constant 0 : index
    %1 = vector.load %arg11[%c0, %c0_0, %c0_1] : memref<10x4x32xbf16, #tpu.memory_space<vmem>>, vector<10x4x32xbf16>
    tpu.vector_store %arg11[%c0, %c0_0, %c0_1], %0 {strides = array<i32>} : memref<10x4x32xbf16, #tpu.memory_space<vmem>>, vector<10x4x32xbf16>,
    %cst_2 = arith.constant 0.000000e+00 : bf16
    %2 = vector.broadcast %cst_2 : bf16 to vector<10x4x32xbf16>
    %c0_3 = arith.constant 0 : index
    %c0_4 = arith.constant 0 : index
    %c0_5 = arith.constant 0 : index
    %3 = vector.load %arg12[%c0_3, %c0_4, %c0_5] : memref<10x4x32xbf16, #tpu.memory_space<vmem>>, vector<10x4x32xbf16>
    tpu.vector_store %arg12[%c0_3, %c0_4, %c0_5], %2 {strides = array<i32>} : memref<10x4x32xbf16, #tpu.memory_space<vmem>>, vector<10x4x32xbf16>,
    %cst_6 = arith.constant 0.000000e+00 : bf16
    %4 = vector.broadcast %cst_6 : bf16 to vector<10x4x32xbf16>
    %c0_7 = arith.constant 0 : index
    %c0_8 = arith.constant 0 : index
    %c0_9 = arith.constant 0 : index
    %5 = vector.load %arg13[%c0_7, %c0_8, %c0_9] : memref<10x4x32xbf16, #tpu.memory_space<vmem>>, vector<10x4x32xbf16>
    tpu.vector_store %arg13[%c0_7, %c0_8, %c0_9], %4 {strides = array<i32>} : memref<10x4x32xbf16, #tpu.memory_space<vmem>>, vector<10x4x32xbf16>,
    %c0_10 = arith.constant 0 : index
    %c0_11 = arith.constant 0 : index
    %c0_12 = arith.constant 0 : index
    %c0_13 = arith.constant 0 : index
    %6 = vector.load %arg1[%c0_10, %c0_11, %c0_12, %c0_13] : memref<1x4x2x32xbf16, #tpu.memory_space<vmem>>, vector<1x4x2x32xbf16>
    %7 = vector.shape_cast %6 : vector<1x4x2x32xbf16> to vector<4x2x32xbf16>
    %8 = vector.shape_cast %7 : vector<4x2x32xbf16> to vector<8x32xbf16>
    %c0_14 = arith.constant 0 : index
    %c0_15 = arith.constant 0 : index
    %c0_16 = arith.constant 0 : index
    %9 = vector.load %arg3[%c0_14, %c0_15, %c0_16] : memref<2x32x32xbf16, #tpu.memory_space<vmem>>, vector<1x32x32xbf16>
    %10 = vector.shape_cast %9 : vector<1x32x32xbf16> to vector<32x32xbf16>
    %cst_17 = arith.constant dense<0.000000e+00> : vector<8x32xf32>
    %11 = tpu.matmul %8, %10, %cst_17 {dimension_numbers = #tpu.dot_dimension_numbers<[1], [0], [0], [1], [0, 0, 1, 1], [], []>} : vector<8x32xbf16>, vector<32x32xbf16>, vector<8x32xf32> -> vector<8x32xf32>
    %c0_18 = arith.constant 0 : index
    %c0_19 = arith.constant 0 : index
    %12 = vector.load %arg4[%c0_18, %c0_19] : memref<1x32xf32, #tpu.memory_space<vmem>>, vector<1x32xf32>
    %13 = vector.broadcast %12 : vector<1x32xf32> to vector<8x32xf32>
    %14 = arith.addf %11, %13 : vector<8x32xf32>
    %15 = arith.truncf %14 : vector<8x32xf32> to vector<8x32xbf16>
    %16 = vector.shape_cast %15 : vector<8x32xbf16> to vector<4x2x32xbf16>
    %17 = vector.extract_strided_slice %16 {offsets = [0, 0, 0], sizes = [1, 2, 32], strides = [1, 1, 1]} : vector<4x2x32xbf16> to vector<1x2x32xbf16>
    %18 = vector.shape_cast %17 : vector<1x2x32xbf16> to vector<2x32xbf16>
    %c1 = arith.constant 1 : index
    %c1_20 = arith.constant 1 : index
    %c0_21 = arith.constant 0 : index
    %19 = vector.load %arg11[%c1, %c1_20, %c0_21] : memref<10x4x32xbf16, #tpu.memory_space<vmem>>, vector<1x2x32xbf16>
    %20 = vector.shape_cast %19 : vector<1x2x32xbf16> to vector<2x32xbf16>
    %21 = vector.shape_cast %18 : vector<2x32xbf16> to vector<1x2x32xbf16>
    tpu.vector_store %arg11[%c1, %c1_20, %c0_21], %21 {strides = array<i32>} : memref<10x4x32xbf16, #tpu.memory_space<vmem>>, vector<1x2x32xbf16>,
    %22 = vector.extract_strided_slice %16 {offsets = [1, 0, 0], sizes = [1, 2, 32], strides = [1, 1, 1]} : vector<4x2x32xbf16> to vector<1x2x32xbf16>
    %23 = vector.shape_cast %22 : vector<1x2x32xbf16> to vector<2x32xbf16>
    %c3 = arith.constant 3 : index
    %c1_22 = arith.constant 1 : index
    %c0_23 = arith.constant 0 : index
    %24 = vector.load %arg11[%c3, %c1_22, %c0_23] : memref<10x4x32xbf16, #tpu.memory_space<vmem>>, vector<1x2x32xbf16>
    %25 = vector.shape_cast %24 : vector<1x2x32xbf16> to vector<2x32xbf16>
    %26 = vector.shape_cast %23 : vector<2x32xbf16> to vector<1x2x32xbf16>
    tpu.vector_store %arg11[%c3, %c1_22, %c0_23], %26 {strides = array<i32>} : memref<10x4x32xbf16, #tpu.memory_space<vmem>>, vector<1x2x32xbf16>,
    %27 = vector.extract_strided_slice %16 {offsets = [2, 0, 0], sizes = [1, 2, 32], strides = [1, 1, 1]} : vector<4x2x32xbf16> to vector<1x2x32xbf16>
    %28 = vector.shape_cast %27 : vector<1x2x32xbf16> to vector<2x32xbf16>
    %c5 = arith.constant 5 : index
    %c1_24 = arith.constant 1 : index
    %c0_25 = arith.constant 0 : index
    %29 = vector.load %arg11[%c5, %c1_24, %c0_25] : memref<10x4x32xbf16, #tpu.memory_space<vmem>>, vector<1x2x32xbf16>
    %30 = vector.shape_cast %29 : vector<1x2x32xbf16> to vector<2x32xbf16>
    %31 = vector.shape_cast %28 : vector<2x32xbf16> to vector<1x2x32xbf16>
    tpu.vector_store %arg11[%c5, %c1_24, %c0_25], %31 {strides = array<i32>} : memref<10x4x32xbf16, #tpu.memory_space<vmem>>, vector<1x2x32xbf16>,
    %32 = vector.extract_strided_slice %16 {offsets = [3, 0, 0], sizes = [1, 2, 32], strides = [1, 1, 1]} : vector<4x2x32xbf16> to vector<1x2x32xbf16>
    %33 = vector.shape_cast %32 : vector<1x2x32xbf16> to vector<2x32xbf16>
    %c7 = arith.constant 7 : index
    %c1_26 = arith.constant 1 : index
    %c0_27 = arith.constant 0 : index
    %34 = vector.load %arg11[%c7, %c1_26, %c0_27] : memref<10x4x32xbf16, #tpu.memory_space<vmem>>, vector<1x2x32xbf16>
    %35 = vector.shape_cast %34 : vector<1x2x32xbf16> to vector<2x32xbf16>
    %36 = vector.shape_cast %33 : vector<2x32xbf16> to vector<1x2x32xbf16>
    tpu.vector_store %arg11[%c7, %c1_26, %c0_27], %36 {strides = array<i32>} : memref<10x4x32xbf16, #tpu.memory_space<vmem>>, vector<1x2x32xbf16>,
    %c1_28 = arith.constant 1 : index
    %c0_29 = arith.constant 0 : index
    %c0_30 = arith.constant 0 : index
    %37 = vector.load %arg3[%c1_28, %c0_29, %c0_30] : memref<2x32x32xbf16, #tpu.memory_space<vmem>>, vector<1x32x32xbf16>
    %38 = vector.shape_cast %37 : vector<1x32x32xbf16> to vector<32x32xbf16>
    %cst_31 = arith.constant dense<0.000000e+00> : vector<8x32xf32>
    %39 = tpu.matmul %8, %38, %cst_31 {dimension_numbers = #tpu.dot_dimension_numbers<[1], [0], [0], [1], [0, 0, 1, 1], [], []>} : vector<8x32xbf16>, vector<32x32xbf16>, vector<8x32xf32> -> vector<8x32xf32>
    %c0_32 = arith.constant 0 : index
    %c0_33 = arith.constant 0 : index
    %40 = vector.load %arg4[%c0_32, %c0_33] : memref<1x32xf32, #tpu.memory_space<vmem>>, vector<1x32xf32>
    %41 = vector.broadcast %40 : vector<1x32xf32> to vector<8x32xf32>
    %42 = arith.addf %39, %41 : vector<8x32xf32>
    %43 = arith.truncf %42 : vector<8x32xf32> to vector<8x32xbf16>
    %44 = vector.shape_cast %43 : vector<8x32xbf16> to vector<4x2x32xbf16>
    %45 = vector.extract_strided_slice %44 {offsets = [0, 0, 0], sizes = [1, 2, 32], strides = [1, 1, 1]} : vector<4x2x32xbf16> to vector<1x2x32xbf16>
    %46 = vector.shape_cast %45 : vector<1x2x32xbf16> to vector<2x32xbf16>
    %c2 = arith.constant 2 : index
    %c1_34 = arith.constant 1 : index
    %c0_35 = arith.constant 0 : index
    %47 = vector.load %arg11[%c2, %c1_34, %c0_35] : memref<10x4x32xbf16, #tpu.memory_space<vmem>>, vector<1x2x32xbf16>
    %48 = vector.shape_cast %47 : vector<1x2x32xbf16> to vector<2x32xbf16>
    %49 = vector.shape_cast %46 : vector<2x32xbf16> to vector<1x2x32xbf16>
    tpu.vector_store %arg11[%c2, %c1_34, %c0_35], %49 {strides = array<i32>} : memref<10x4x32xbf16, #tpu.memory_space<vmem>>, vector<1x2x32xbf16>,
    %50 = vector.extract_strided_slice %44 {offsets = [1, 0, 0], sizes = [1, 2, 32], strides = [1, 1, 1]} : vector<4x2x32xbf16> to vector<1x2x32xbf16>
    %51 = vector.shape_cast %50 : vector<1x2x32xbf16> to vector<2x32xbf16>
    %c4 = arith.constant 4 : index
    %c1_36 = arith.constant 1 : index
    %c0_37 = arith.constant 0 : index
    %52 = vector.load %arg11[%c4, %c1_36, %c0_37] : memref<10x4x32xbf16, #tpu.memory_space<vmem>>, vector<1x2x32xbf16>
    %53 = vector.shape_cast %52 : vector<1x2x32xbf16> to vector<2x32xbf16>
    %54 = vector.shape_cast %51 : vector<2x32xbf16> to vector<1x2x32xbf16>
    tpu.vector_store %arg11[%c4, %c1_36, %c0_37], %54 {strides = array<i32>} : memref<10x4x32xbf16, #tpu.memory_space<vmem>>, vector<1x2x32xbf16>,
    %55 = vector.extract_strided_slice %44 {offsets = [2, 0, 0], sizes = [1, 2, 32], strides = [1, 1, 1]} : vector<4x2x32xbf16> to vector<1x2x32xbf16>
    %56 = vector.shape_cast %55 : vector<1x2x32xbf16> to vector<2x32xbf16>
    %c6 = arith.constant 6 : index
    %c1_38 = arith.constant 1 : index
    %c0_39 = arith.constant 0 : index
    %57 = vector.load %arg11[%c6, %c1_38, %c0_39] : memref<10x4x32xbf16, #tpu.memory_space<vmem>>, vector<1x2x32xbf16>
    %58 = vector.shape_cast %57 : vector<1x2x32xbf16> to vector<2x32xbf16>
    %59 = vector.shape_cast %56 : vector<2x32xbf16> to vector<1x2x32xbf16>
    tpu.vector_store %arg11[%c6, %c1_38, %c0_39], %59 {strides = array<i32>} : memref<10x4x32xbf16, #tpu.memory_space<vmem>>, vector<1x2x32xbf16>,
    %60 = vector.extract_strided_slice %44 {offsets = [3, 0, 0], sizes = [1, 2, 32], strides = [1, 1, 1]} : vector<4x2x32xbf16> to vector<1x2x32xbf16>
    %61 = vector.shape_cast %60 : vector<1x2x32xbf16> to vector<2x32xbf16>
    %c8 = arith.constant 8 : index
    %c1_40 = arith.constant 1 : index
    %c0_41 = arith.constant 0 : index
    %62 = vector.load %arg11[%c8, %c1_40, %c0_41] : memref<10x4x32xbf16, #tpu.memory_space<vmem>>, vector<1x2x32xbf16>
    %63 = vector.shape_cast %62 : vector<1x2x32xbf16> to vector<2x32xbf16>
    %64 = vector.shape_cast %61 : vector<2x32xbf16> to vector<1x2x32xbf16>
    tpu.vector_store %arg11[%c8, %c1_40, %c0_41], %64 {strides = array<i32>} : memref<10x4x32xbf16, #tpu.memory_space<vmem>>, vector<1x2x32xbf16>,
    %c0_42 = arith.constant 0 : index
    %c0_43 = arith.constant 0 : index
    %c0_44 = arith.constant 0 : index
    %c0_45 = arith.constant 0 : index
    %65 = vector.load %arg2[%c0_42, %c0_43, %c0_44, %c0_45] : memref<1x8x2x32xbf16, #tpu.memory_space<vmem>>, vector<1x8x2x32xbf16>
    %66 = vector.shape_cast %65 : vector<1x8x2x32xbf16> to vector<8x2x32xbf16>
    %c1_46 = arith.constant 1 : index
    %c1_47 = arith.constant 1 : index
    %c0_48 = arith.constant 0 : index
    %67 = vector.load %arg12[%c1_46, %c1_47, %c0_48] : memref<10x4x32xbf16, #tpu.memory_space<vmem>>, vector<8x2x32xbf16>
    tpu.vector_store %arg12[%c1_46, %c1_47, %c0_48], %66 {strides = array<i32>} : memref<10x4x32xbf16, #tpu.memory_space<vmem>>, vector<8x2x32xbf16>,
    %c0_49 = arith.constant 0 : index
    %c0_50 = arith.constant 0 : index
    %c0_51 = arith.constant 0 : index
    %68 = vector.load %arg11[%c0_49, %c0_50, %c0_51] : memref<10x4x32xbf16, #tpu.memory_space<vmem>>, vector<10x4x32xbf16>
    %c0_52 = arith.constant 0 : index
    %c0_53 = arith.constant 0 : index
    %c0_54 = arith.constant 0 : index
    %69 = vector.load %arg12[%c0_52, %c0_53, %c0_54] : memref<10x4x32xbf16, #tpu.memory_space<vmem>>, vector<10x4x32xbf16>
    %cst_55 = arith.constant 0.000000e+00 : f32
    %70 = vector.broadcast %cst_55 : f32 to vector<16x32xf32>
    %71 = vector.extract_strided_slice %68 {offsets = [0, 0, 0], sizes = [8, 2, 32], strides = [1, 1, 1]} : vector<10x4x32xbf16> to vector<8x2x32xbf16>
    %72 = vector.shape_cast %71 : vector<8x2x32xbf16> to vector<16x32xbf16>
    %c0_56 = arith.constant 0 : index
    %c0_57 = arith.constant 0 : index
    %c0_58 = arith.constant 0 : index
    %c0_59 = arith.constant 0 : index
    %73 = vector.load %arg5[%c0_56, %c0_57, %c0_58, %c0_59] : memref<3x3x32x32xbf16, #tpu.memory_space<vmem>>, vector<1x1x32x32xbf16>
    %74 = vector.shape_cast %73 : vector<1x1x32x32xbf16> to vector<32x32xbf16>
    %cst_60 = arith.constant dense<0.000000e+00> : vector<16x32xf32>
    %75 = tpu.matmul %72, %74, %cst_60 {dimension_numbers = #tpu.dot_dimension_numbers<[1], [0], [0], [1], [0, 0, 1, 1], [], []>} : vector<16x32xbf16>, vector<32x32xbf16>, vector<16x32xf32> -> vector<16x32xf32>
    %76 = arith.addf %70, %75 : vector<16x32xf32>
    %77 = vector.extract_strided_slice %68 {offsets = [0, 1, 0], sizes = [8, 2, 32], strides = [1, 1, 1]} : vector<10x4x32xbf16> to vector<8x2x32xbf16>
    %78 = vector.shape_cast %77 : vector<8x2x32xbf16> to vector<16x32xbf16>
    %c0_61 = arith.constant 0 : index
    %c1_62 = arith.constant 1 : index
    %c0_63 = arith.constant 0 : index
    %c0_64 = arith.constant 0 : index
    %79 = vector.load %arg5[%c0_61, %c1_62, %c0_63, %c0_64] : memref<3x3x32x32xbf16, #tpu.memory_space<vmem>>, vector<1x1x32x32xbf16>
    %80 = vector.shape_cast %79 : vector<1x1x32x32xbf16> to vector<32x32xbf16>
    %cst_65 = arith.constant dense<0.000000e+00> : vector<16x32xf32>
    %81 = tpu.matmul %78, %80, %cst_65 {dimension_numbers = #tpu.dot_dimension_numbers<[1], [0], [0], [1], [0, 0, 1, 1], [], []>} : vector<16x32xbf16>, vector<32x32xbf16>, vector<16x32xf32> -> vector<16x32xf32>
    %82 = arith.addf %76, %81 : vector<16x32xf32>
    %83 = vector.extract_strided_slice %68 {offsets = [0, 2, 0], sizes = [8, 2, 32], strides = [1, 1, 1]} : vector<10x4x32xbf16> to vector<8x2x32xbf16>
    %84 = vector.shape_cast %83 : vector<8x2x32xbf16> to vector<16x32xbf16>
    %c0_66 = arith.constant 0 : index
    %c2_67 = arith.constant 2 : index
    %c0_68 = arith.constant 0 : index
    %c0_69 = arith.constant 0 : index
    %85 = vector.load %arg5[%c0_66, %c2_67, %c0_68, %c0_69] : memref<3x3x32x32xbf16, #tpu.memory_space<vmem>>, vector<1x1x32x32xbf16>
    %86 = vector.shape_cast %85 : vector<1x1x32x32xbf16> to vector<32x32xbf16>
    %cst_70 = arith.constant dense<0.000000e+00> : vector<16x32xf32>
    %87 = tpu.matmul %84, %86, %cst_70 {dimension_numbers = #tpu.dot_dimension_numbers<[1], [0], [0], [1], [0, 0, 1, 1], [], []>} : vector<16x32xbf16>, vector<32x32xbf16>, vector<16x32xf32> -> vector<16x32xf32>
    %88 = arith.addf %82, %87 : vector<16x32xf32>
    %89 = vector.extract_strided_slice %68 {offsets = [1, 0, 0], sizes = [8, 2, 32], strides = [1, 1, 1]} : vector<10x4x32xbf16> to vector<8x2x32xbf16>
    %90 = vector.shape_cast %89 : vector<8x2x32xbf16> to vector<16x32xbf16>
    %c1_71 = arith.constant 1 : index
    %c0_72 = arith.constant 0 : index
    %c0_73 = arith.constant 0 : index
    %c0_74 = arith.constant 0 : index
    %91 = vector.load %arg5[%c1_71, %c0_72, %c0_73, %c0_74] : memref<3x3x32x32xbf16, #tpu.memory_space<vmem>>, vector<1x1x32x32xbf16>
    %92 = vector.shape_cast %91 : vector<1x1x32x32xbf16> to vector<32x32xbf16>
    %cst_75 = arith.constant dense<0.000000e+00> : vector<16x32xf32>
    %93 = tpu.matmul %90, %92, %cst_75 {dimension_numbers = #tpu.dot_dimension_numbers<[1], [0], [0], [1], [0, 0, 1, 1], [], []>} : vector<16x32xbf16>, vector<32x32xbf16>, vector<16x32xf32> -> vector<16x32xf32>
    %94 = arith.addf %88, %93 : vector<16x32xf32>
    %95 = vector.extract_strided_slice %68 {offsets = [1, 1, 0], sizes = [8, 2, 32], strides = [1, 1, 1]} : vector<10x4x32xbf16> to vector<8x2x32xbf16>
    %96 = vector.shape_cast %95 : vector<8x2x32xbf16> to vector<16x32xbf16>
    %c1_76 = arith.constant 1 : index
    %c1_77 = arith.constant 1 : index
    %c0_78 = arith.constant 0 : index
    %c0_79 = arith.constant 0 : index
    %97 = vector.load %arg5[%c1_76, %c1_77, %c0_78, %c0_79] : memref<3x3x32x32xbf16, #tpu.memory_space<vmem>>, vector<1x1x32x32xbf16>
    %98 = vector.shape_cast %97 : vector<1x1x32x32xbf16> to vector<32x32xbf16>
    %cst_80 = arith.constant dense<0.000000e+00> : vector<16x32xf32>
    %99 = tpu.matmul %96, %98, %cst_80 {dimension_numbers = #tpu.dot_dimension_numbers<[1], [0], [0], [1], [0, 0, 1, 1], [], []>} : vector<16x32xbf16>, vector<32x32xbf16>, vector<16x32xf32> -> vector<16x32xf32>
    %100 = arith.addf %94, %99 : vector<16x32xf32>
    %101 = vector.extract_strided_slice %68 {offsets = [1, 2, 0], sizes = [8, 2, 32], strides = [1, 1, 1]} : vector<10x4x32xbf16> to vector<8x2x32xbf16>
    %102 = vector.shape_cast %101 : vector<8x2x32xbf16> to vector<16x32xbf16>
    %c1_81 = arith.constant 1 : index
    %c2_82 = arith.constant 2 : index
    %c0_83 = arith.constant 0 : index
    %c0_84 = arith.constant 0 : index
    %103 = vector.load %arg5[%c1_81, %c2_82, %c0_83, %c0_84] : memref<3x3x32x32xbf16, #tpu.memory_space<vmem>>, vector<1x1x32x32xbf16>
    %104 = vector.shape_cast %103 : vector<1x1x32x32xbf16> to vector<32x32xbf16>
    %cst_85 = arith.constant dense<0.000000e+00> : vector<16x32xf32>
    %105 = tpu.matmul %102, %104, %cst_85 {dimension_numbers = #tpu.dot_dimension_numbers<[1], [0], [0], [1], [0, 0, 1, 1], [], []>} : vector<16x32xbf16>, vector<32x32xbf16>, vector<16x32xf32> -> vector<16x32xf32>
    %106 = arith.addf %100, %105 : vector<16x32xf32>
    %107 = vector.extract_strided_slice %68 {offsets = [2, 0, 0], sizes = [8, 2, 32], strides = [1, 1, 1]} : vector<10x4x32xbf16> to vector<8x2x32xbf16>
    %108 = vector.shape_cast %107 : vector<8x2x32xbf16> to vector<16x32xbf16>
    %c2_86 = arith.constant 2 : index
    %c0_87 = arith.constant 0 : index
    %c0_88 = arith.constant 0 : index
    %c0_89 = arith.constant 0 : index
    %109 = vector.load %arg5[%c2_86, %c0_87, %c0_88, %c0_89] : memref<3x3x32x32xbf16, #tpu.memory_space<vmem>>, vector<1x1x32x32xbf16>
    %110 = vector.shape_cast %109 : vector<1x1x32x32xbf16> to vector<32x32xbf16>
    %cst_90 = arith.constant dense<0.000000e+00> : vector<16x32xf32>
    %111 = tpu.matmul %108, %110, %cst_90 {dimension_numbers = #tpu.dot_dimension_numbers<[1], [0], [0], [1], [0, 0, 1, 1], [], []>} : vector<16x32xbf16>, vector<32x32xbf16>, vector<16x32xf32> -> vector<16x32xf32>
    %112 = arith.addf %106, %111 : vector<16x32xf32>
    %113 = vector.extract_strided_slice %68 {offsets = [2, 1, 0], sizes = [8, 2, 32], strides = [1, 1, 1]} : vector<10x4x32xbf16> to vector<8x2x32xbf16>
    %114 = vector.shape_cast %113 : vector<8x2x32xbf16> to vector<16x32xbf16>
    %c2_91 = arith.constant 2 : index
    %c1_92 = arith.constant 1 : index
    %c0_93 = arith.constant 0 : index
    %c0_94 = arith.constant 0 : index
    %115 = vector.load %arg5[%c2_91, %c1_92, %c0_93, %c0_94] : memref<3x3x32x32xbf16, #tpu.memory_space<vmem>>, vector<1x1x32x32xbf16>
    %116 = vector.shape_cast %115 : vector<1x1x32x32xbf16> to vector<32x32xbf16>
    %cst_95 = arith.constant dense<0.000000e+00> : vector<16x32xf32>
    %117 = tpu.matmul %114, %116, %cst_95 {dimension_numbers = #tpu.dot_dimension_numbers<[1], [0], [0], [1], [0, 0, 1, 1], [], []>} : vector<16x32xbf16>, vector<32x32xbf16>, vector<16x32xf32> -> vector<16x32xf32>
    %118 = arith.addf %112, %117 : vector<16x32xf32>
    %119 = vector.extract_strided_slice %68 {offsets = [2, 2, 0], sizes = [8, 2, 32], strides = [1, 1, 1]} : vector<10x4x32xbf16> to vector<8x2x32xbf16>
    %120 = vector.shape_cast %119 : vector<8x2x32xbf16> to vector<16x32xbf16>
    %c2_96 = arith.constant 2 : index
    %c2_97 = arith.constant 2 : index
    %c0_98 = arith.constant 0 : index
    %c0_99 = arith.constant 0 : index
    %121 = vector.load %arg5[%c2_96, %c2_97, %c0_98, %c0_99] : memref<3x3x32x32xbf16, #tpu.memory_space<vmem>>, vector<1x1x32x32xbf16>
    %122 = vector.shape_cast %121 : vector<1x1x32x32xbf16> to vector<32x32xbf16>
    %cst_100 = arith.constant dense<0.000000e+00> : vector<16x32xf32>
    %123 = tpu.matmul %120, %122, %cst_100 {dimension_numbers = #tpu.dot_dimension_numbers<[1], [0], [0], [1], [0, 0, 1, 1], [], []>} : vector<16x32xbf16>, vector<32x32xbf16>, vector<16x32xf32> -> vector<16x32xf32>
    %124 = arith.addf %118, %123 : vector<16x32xf32>
    %125 = vector.extract_strided_slice %69 {offsets = [0, 0, 0], sizes = [8, 2, 32], strides = [1, 1, 1]} : vector<10x4x32xbf16> to vector<8x2x32xbf16>
    %126 = vector.shape_cast %125 : vector<8x2x32xbf16> to vector<16x32xbf16>
    %c0_101 = arith.constant 0 : index
    %c0_102 = arith.constant 0 : index
    %c0_103 = arith.constant 0 : index
    %c0_104 = arith.constant 0 : index
    %127 = vector.load %arg6[%c0_101, %c0_102, %c0_103, %c0_104] : memref<3x3x32x32xbf16, #tpu.memory_space<vmem>>, vector<1x1x32x32xbf16>
    %128 = vector.shape_cast %127 : vector<1x1x32x32xbf16> to vector<32x32xbf16>
    %cst_105 = arith.constant dense<0.000000e+00> : vector<16x32xf32>
    %129 = tpu.matmul %126, %128, %cst_105 {dimension_numbers = #tpu.dot_dimension_numbers<[1], [0], [0], [1], [0, 0, 1, 1], [], []>} : vector<16x32xbf16>, vector<32x32xbf16>, vector<16x32xf32> -> vector<16x32xf32>
    %130 = arith.addf %124, %129 : vector<16x32xf32>
    %131 = vector.extract_strided_slice %69 {offsets = [0, 1, 0], sizes = [8, 2, 32], strides = [1, 1, 1]} : vector<10x4x32xbf16> to vector<8x2x32xbf16>
    %132 = vector.shape_cast %131 : vector<8x2x32xbf16> to vector<16x32xbf16>
    %c0_106 = arith.constant 0 : index
    %c1_107 = arith.constant 1 : index
    %c0_108 = arith.constant 0 : index
    %c0_109 = arith.constant 0 : index
    %133 = vector.load %arg6[%c0_106, %c1_107, %c0_108, %c0_109] : memref<3x3x32x32xbf16, #tpu.memory_space<vmem>>, vector<1x1x32x32xbf16>
    %134 = vector.shape_cast %133 : vector<1x1x32x32xbf16> to vector<32x32xbf16>
    %cst_110 = arith.constant dense<0.000000e+00> : vector<16x32xf32>
    %135 = tpu.matmul %132, %134, %cst_110 {dimension_numbers = #tpu.dot_dimension_numbers<[1], [0], [0], [1], [0, 0, 1, 1], [], []>} : vector<16x32xbf16>, vector<32x32xbf16>, vector<16x32xf32> -> vector<16x32xf32>
    %136 = arith.addf %130, %135 : vector<16x32xf32>
    %137 = vector.extract_strided_slice %69 {offsets = [0, 2, 0], sizes = [8, 2, 32], strides = [1, 1, 1]} : vector<10x4x32xbf16> to vector<8x2x32xbf16>
    %138 = vector.shape_cast %137 : vector<8x2x32xbf16> to vector<16x32xbf16>
    %c0_111 = arith.constant 0 : index
    %c2_112 = arith.constant 2 : index
    %c0_113 = arith.constant 0 : index
    %c0_114 = arith.constant 0 : index
    %139 = vector.load %arg6[%c0_111, %c2_112, %c0_113, %c0_114] : memref<3x3x32x32xbf16, #tpu.memory_space<vmem>>, vector<1x1x32x32xbf16>
    %140 = vector.shape_cast %139 : vector<1x1x32x32xbf16> to vector<32x32xbf16>
    %cst_115 = arith.constant dense<0.000000e+00> : vector<16x32xf32>
    %141 = tpu.matmul %138, %140, %cst_115 {dimension_numbers = #tpu.dot_dimension_numbers<[1], [0], [0], [1], [0, 0, 1, 1], [], []>} : vector<16x32xbf16>, vector<32x32xbf16>, vector<16x32xf32> -> vector<16x32xf32>
    %142 = arith.addf %136, %141 : vector<16x32xf32>
    %143 = vector.extract_strided_slice %69 {offsets = [1, 0, 0], sizes = [8, 2, 32], strides = [1, 1, 1]} : vector<10x4x32xbf16> to vector<8x2x32xbf16>
    %144 = vector.shape_cast %143 : vector<8x2x32xbf16> to vector<16x32xbf16>
    %c1_116 = arith.constant 1 : index
    %c0_117 = arith.constant 0 : index
    %c0_118 = arith.constant 0 : index
    %c0_119 = arith.constant 0 : index
    %145 = vector.load %arg6[%c1_116, %c0_117, %c0_118, %c0_119] : memref<3x3x32x32xbf16, #tpu.memory_space<vmem>>, vector<1x1x32x32xbf16>
    %146 = vector.shape_cast %145 : vector<1x1x32x32xbf16> to vector<32x32xbf16>
    %cst_120 = arith.constant dense<0.000000e+00> : vector<16x32xf32>
    %147 = tpu.matmul %144, %146, %cst_120 {dimension_numbers = #tpu.dot_dimension_numbers<[1], [0], [0], [1], [0, 0, 1, 1], [], []>} : vector<16x32xbf16>, vector<32x32xbf16>, vector<16x32xf32> -> vector<16x32xf32>
    %148 = arith.addf %142, %147 : vector<16x32xf32>
    %149 = vector.extract_strided_slice %69 {offsets = [1, 1, 0], sizes = [8, 2, 32], strides = [1, 1, 1]} : vector<10x4x32xbf16> to vector<8x2x32xbf16>
    %150 = vector.shape_cast %149 : vector<8x2x32xbf16> to vector<16x32xbf16>
    %c1_121 = arith.constant 1 : index
    %c1_122 = arith.constant 1 : index
    %c0_123 = arith.constant 0 : index
    %c0_124 = arith.constant 0 : index
    %151 = vector.load %arg6[%c1_121, %c1_122, %c0_123, %c0_124] : memref<3x3x32x32xbf16, #tpu.memory_space<vmem>>, vector<1x1x32x32xbf16>
    %152 = vector.shape_cast %151 : vector<1x1x32x32xbf16> to vector<32x32xbf16>
    %cst_125 = arith.constant dense<0.000000e+00> : vector<16x32xf32>
    %153 = tpu.matmul %150, %152, %cst_125 {dimension_numbers = #tpu.dot_dimension_numbers<[1], [0], [0], [1], [0, 0, 1, 1], [], []>} : vector<16x32xbf16>, vector<32x32xbf16>, vector<16x32xf32> -> vector<16x32xf32>
    %154 = arith.addf %148, %153 : vector<16x32xf32>
    %155 = vector.extract_strided_slice %69 {offsets = [1, 2, 0], sizes = [8, 2, 32], strides = [1, 1, 1]} : vector<10x4x32xbf16> to vector<8x2x32xbf16>
    %156 = vector.shape_cast %155 : vector<8x2x32xbf16> to vector<16x32xbf16>
    %c1_126 = arith.constant 1 : index
    %c2_127 = arith.constant 2 : index
    %c0_128 = arith.constant 0 : index
    %c0_129 = arith.constant 0 : index
    %157 = vector.load %arg6[%c1_126, %c2_127, %c0_128, %c0_129] : memref<3x3x32x32xbf16, #tpu.memory_space<vmem>>, vector<1x1x32x32xbf16>
    %158 = vector.shape_cast %157 : vector<1x1x32x32xbf16> to vector<32x32xbf16>
    %cst_130 = arith.constant dense<0.000000e+00> : vector<16x32xf32>
    %159 = tpu.matmul %156, %158, %cst_130 {dimension_numbers = #tpu.dot_dimension_numbers<[1], [0], [0], [1], [0, 0, 1, 1], [], []>} : vector<16x32xbf16>, vector<32x32xbf16>, vector<16x32xf32> -> vector<16x32xf32>
    %160 = arith.addf %154, %159 : vector<16x32xf32>
    %161 = vector.extract_strided_slice %69 {offsets = [2, 0, 0], sizes = [8, 2, 32], strides = [1, 1, 1]} : vector<10x4x32xbf16> to vector<8x2x32xbf16>
    %162 = vector.shape_cast %161 : vector<8x2x32xbf16> to vector<16x32xbf16>
    %c2_131 = arith.constant 2 : index
    %c0_132 = arith.constant 0 : index
    %c0_133 = arith.constant 0 : index
    %c0_134 = arith.constant 0 : index
    %163 = vector.load %arg6[%c2_131, %c0_132, %c0_133, %c0_134] : memref<3x3x32x32xbf16, #tpu.memory_space<vmem>>, vector<1x1x32x32xbf16>
    %164 = vector.shape_cast %163 : vector<1x1x32x32xbf16> to vector<32x32xbf16>
    %cst_135 = arith.constant dense<0.000000e+00> : vector<16x32xf32>
    %165 = tpu.matmul %162, %164, %cst_135 {dimension_numbers = #tpu.dot_dimension_numbers<[1], [0], [0], [1], [0, 0, 1, 1], [], []>} : vector<16x32xbf16>, vector<32x32xbf16>, vector<16x32xf32> -> vector<16x32xf32>
    %166 = arith.addf %160, %165 : vector<16x32xf32>
    %167 = vector.extract_strided_slice %69 {offsets = [2, 1, 0], sizes = [8, 2, 32], strides = [1, 1, 1]} : vector<10x4x32xbf16> to vector<8x2x32xbf16>
    %168 = vector.shape_cast %167 : vector<8x2x32xbf16> to vector<16x32xbf16>
    %c2_136 = arith.constant 2 : index
    %c1_137 = arith.constant 1 : index
    %c0_138 = arith.constant 0 : index
    %c0_139 = arith.constant 0 : index
    %169 = vector.load %arg6[%c2_136, %c1_137, %c0_138, %c0_139] : memref<3x3x32x32xbf16, #tpu.memory_space<vmem>>, vector<1x1x32x32xbf16>
    %170 = vector.shape_cast %169 : vector<1x1x32x32xbf16> to vector<32x32xbf16>
    %cst_140 = arith.constant dense<0.000000e+00> : vector<16x32xf32>
    %171 = tpu.matmul %168, %170, %cst_140 {dimension_numbers = #tpu.dot_dimension_numbers<[1], [0], [0], [1], [0, 0, 1, 1], [], []>} : vector<16x32xbf16>, vector<32x32xbf16>, vector<16x32xf32> -> vector<16x32xf32>
    %172 = arith.addf %166, %171 : vector<16x32xf32>
    %173 = vector.extract_strided_slice %69 {offsets = [2, 2, 0], sizes = [8, 2, 32], strides = [1, 1, 1]} : vector<10x4x32xbf16> to vector<8x2x32xbf16>
    %174 = vector.shape_cast %173 : vector<8x2x32xbf16> to vector<16x32xbf16>
    %c2_141 = arith.constant 2 : index
    %c2_142 = arith.constant 2 : index
    %c0_143 = arith.constant 0 : index
    %c0_144 = arith.constant 0 : index
    %175 = vector.load %arg6[%c2_141, %c2_142, %c0_143, %c0_144] : memref<3x3x32x32xbf16, #tpu.memory_space<vmem>>, vector<1x1x32x32xbf16>
    %176 = vector.shape_cast %175 : vector<1x1x32x32xbf16> to vector<32x32xbf16>
    %cst_145 = arith.constant dense<0.000000e+00> : vector<16x32xf32>
    %177 = tpu.matmul %174, %176, %cst_145 {dimension_numbers = #tpu.dot_dimension_numbers<[1], [0], [0], [1], [0, 0, 1, 1], [], []>} : vector<16x32xbf16>, vector<32x32xbf16>, vector<16x32xf32> -> vector<16x32xf32>
    %178 = arith.addf %172, %177 : vector<16x32xf32>
    %c0_146 = arith.constant 0 : index
    %c0_147 = arith.constant 0 : index
    %179 = vector.load %arg7[%c0_146, %c0_147] : memref<1x32xf32, #tpu.memory_space<vmem>>, vector<1x32xf32>
    %180 = vector.broadcast %179 : vector<1x32xf32> to vector<16x32xf32>
    %181 = arith.addf %178, %180 : vector<16x32xf32>
    %cst_148 = arith.constant 0.000000e+00 : f32
    %182 = vector.broadcast %cst_148 : f32 to vector<16x32xf32>
    %183 = arith.maximumf %181, %182 : vector<16x32xf32>
    %184 = arith.truncf %183 : vector<16x32xf32> to vector<16x32xbf16>
    %185 = vector.shape_cast %184 : vector<16x32xbf16> to vector<8x2x32xbf16>
    %c1_149 = arith.constant 1 : index
    %c1_150 = arith.constant 1 : index
    %c0_151 = arith.constant 0 : index
    %186 = vector.load %arg13[%c1_149, %c1_150, %c0_151] : memref<10x4x32xbf16, #tpu.memory_space<vmem>>, vector<8x2x32xbf16>
    tpu.vector_store %arg13[%c1_149, %c1_150, %c0_151], %185 {strides = array<i32>} : memref<10x4x32xbf16, #tpu.memory_space<vmem>>, vector<8x2x32xbf16>,
    %c0_152 = arith.constant 0 : index
    %c0_153 = arith.constant 0 : index
    %c0_154 = arith.constant 0 : index
    %187 = vector.load %arg13[%c0_152, %c0_153, %c0_154] : memref<10x4x32xbf16, #tpu.memory_space<vmem>>, vector<10x4x32xbf16>
    %cst_155 = arith.constant 0.000000e+00 : f32
    %188 = vector.broadcast %cst_155 : f32 to vector<16x32xf32>
    %189 = vector.extract_strided_slice %187 {offsets = [0, 0, 0], sizes = [8, 2, 32], strides = [1, 1, 1]} : vector<10x4x32xbf16> to vector<8x2x32xbf16>
    %190 = vector.shape_cast %189 : vector<8x2x32xbf16> to vector<16x32xbf16>
    %c0_156 = arith.constant 0 : index
    %c0_157 = arith.constant 0 : index
    %c0_158 = arith.constant 0 : index
    %c0_159 = arith.constant 0 : index
    %191 = vector.load %arg8[%c0_156, %c0_157, %c0_158, %c0_159] : memref<3x3x32x32xbf16, #tpu.memory_space<vmem>>, vector<1x1x32x32xbf16>
    %192 = vector.shape_cast %191 : vector<1x1x32x32xbf16> to vector<32x32xbf16>
    %cst_160 = arith.constant dense<0.000000e+00> : vector<16x32xf32>
    %193 = tpu.matmul %190, %192, %cst_160 {dimension_numbers = #tpu.dot_dimension_numbers<[1], [0], [0], [1], [0, 0, 1, 1], [], []>} : vector<16x32xbf16>, vector<32x32xbf16>, vector<16x32xf32> -> vector<16x32xf32>
    %194 = arith.addf %188, %193 : vector<16x32xf32>
    %195 = vector.extract_strided_slice %187 {offsets = [0, 1, 0], sizes = [8, 2, 32], strides = [1, 1, 1]} : vector<10x4x32xbf16> to vector<8x2x32xbf16>
    %196 = vector.shape_cast %195 : vector<8x2x32xbf16> to vector<16x32xbf16>
    %c0_161 = arith.constant 0 : index
    %c1_162 = arith.constant 1 : index
    %c0_163 = arith.constant 0 : index
    %c0_164 = arith.constant 0 : index
    %197 = vector.load %arg8[%c0_161, %c1_162, %c0_163, %c0_164] : memref<3x3x32x32xbf16, #tpu.memory_space<vmem>>, vector<1x1x32x32xbf16>
    %198 = vector.shape_cast %197 : vector<1x1x32x32xbf16> to vector<32x32xbf16>
    %cst_165 = arith.constant dense<0.000000e+00> : vector<16x32xf32>
    %199 = tpu.matmul %196, %198, %cst_165 {dimension_numbers = #tpu.dot_dimension_numbers<[1], [0], [0], [1], [0, 0, 1, 1], [], []>} : vector<16x32xbf16>, vector<32x32xbf16>, vector<16x32xf32> -> vector<16x32xf32>
    %200 = arith.addf %194, %199 : vector<16x32xf32>
    %201 = vector.extract_strided_slice %187 {offsets = [0, 2, 0], sizes = [8, 2, 32], strides = [1, 1, 1]} : vector<10x4x32xbf16> to vector<8x2x32xbf16>
    %202 = vector.shape_cast %201 : vector<8x2x32xbf16> to vector<16x32xbf16>
    %c0_166 = arith.constant 0 : index
    %c2_167 = arith.constant 2 : index
    %c0_168 = arith.constant 0 : index
    %c0_169 = arith.constant 0 : index
    %203 = vector.load %arg8[%c0_166, %c2_167, %c0_168, %c0_169] : memref<3x3x32x32xbf16, #tpu.memory_space<vmem>>, vector<1x1x32x32xbf16>
    %204 = vector.shape_cast %203 : vector<1x1x32x32xbf16> to vector<32x32xbf16>
    %cst_170 = arith.constant dense<0.000000e+00> : vector<16x32xf32>
    %205 = tpu.matmul %202, %204, %cst_170 {dimension_numbers = #tpu.dot_dimension_numbers<[1], [0], [0], [1], [0, 0, 1, 1], [], []>} : vector<16x32xbf16>, vector<32x32xbf16>, vector<16x32xf32> -> vector<16x32xf32>
    %206 = arith.addf %200, %205 : vector<16x32xf32>
    %207 = vector.extract_strided_slice %187 {offsets = [1, 0, 0], sizes = [8, 2, 32], strides = [1, 1, 1]} : vector<10x4x32xbf16> to vector<8x2x32xbf16>
    %208 = vector.shape_cast %207 : vector<8x2x32xbf16> to vector<16x32xbf16>
    %c1_171 = arith.constant 1 : index
    %c0_172 = arith.constant 0 : index
    %c0_173 = arith.constant 0 : index
    %c0_174 = arith.constant 0 : index
    %209 = vector.load %arg8[%c1_171, %c0_172, %c0_173, %c0_174] : memref<3x3x32x32xbf16, #tpu.memory_space<vmem>>, vector<1x1x32x32xbf16>
    %210 = vector.shape_cast %209 : vector<1x1x32x32xbf16> to vector<32x32xbf16>
    %cst_175 = arith.constant dense<0.000000e+00> : vector<16x32xf32>
    %211 = tpu.matmul %208, %210, %cst_175 {dimension_numbers = #tpu.dot_dimension_numbers<[1], [0], [0], [1], [0, 0, 1, 1], [], []>} : vector<16x32xbf16>, vector<32x32xbf16>, vector<16x32xf32> -> vector<16x32xf32>
    %212 = arith.addf %206, %211 : vector<16x32xf32>
    %213 = vector.extract_strided_slice %187 {offsets = [1, 1, 0], sizes = [8, 2, 32], strides = [1, 1, 1]} : vector<10x4x32xbf16> to vector<8x2x32xbf16>
    %214 = vector.shape_cast %213 : vector<8x2x32xbf16> to vector<16x32xbf16>
    %c1_176 = arith.constant 1 : index
    %c1_177 = arith.constant 1 : index
    %c0_178 = arith.constant 0 : index
    %c0_179 = arith.constant 0 : index
    %215 = vector.load %arg8[%c1_176, %c1_177, %c0_178, %c0_179] : memref<3x3x32x32xbf16, #tpu.memory_space<vmem>>, vector<1x1x32x32xbf16>
    %216 = vector.shape_cast %215 : vector<1x1x32x32xbf16> to vector<32x32xbf16>
    %cst_180 = arith.constant dense<0.000000e+00> : vector<16x32xf32>
    %217 = tpu.matmul %214, %216, %cst_180 {dimension_numbers = #tpu.dot_dimension_numbers<[1], [0], [0], [1], [0, 0, 1, 1], [], []>} : vector<16x32xbf16>, vector<32x32xbf16>, vector<16x32xf32> -> vector<16x32xf32>
    %218 = arith.addf %212, %217 : vector<16x32xf32>
    %219 = vector.extract_strided_slice %187 {offsets = [1, 2, 0], sizes = [8, 2, 32], strides = [1, 1, 1]} : vector<10x4x32xbf16> to vector<8x2x32xbf16>
    %220 = vector.shape_cast %219 : vector<8x2x32xbf16> to vector<16x32xbf16>
    %c1_181 = arith.constant 1 : index
    %c2_182 = arith.constant 2 : index
    %c0_183 = arith.constant 0 : index
    %c0_184 = arith.constant 0 : index
    %221 = vector.load %arg8[%c1_181, %c2_182, %c0_183, %c0_184] : memref<3x3x32x32xbf16, #tpu.memory_space<vmem>>, vector<1x1x32x32xbf16>
    %222 = vector.shape_cast %221 : vector<1x1x32x32xbf16> to vector<32x32xbf16>
    %cst_185 = arith.constant dense<0.000000e+00> : vector<16x32xf32>
    %223 = tpu.matmul %220, %222, %cst_185 {dimension_numbers = #tpu.dot_dimension_numbers<[1], [0], [0], [1], [0, 0, 1, 1], [], []>} : vector<16x32xbf16>, vector<32x32xbf16>, vector<16x32xf32> -> vector<16x32xf32>
    %224 = arith.addf %218, %223 : vector<16x32xf32>
    %225 = vector.extract_strided_slice %187 {offsets = [2, 0, 0], sizes = [8, 2, 32], strides = [1, 1, 1]} : vector<10x4x32xbf16> to vector<8x2x32xbf16>
    %226 = vector.shape_cast %225 : vector<8x2x32xbf16> to vector<16x32xbf16>
    %c2_186 = arith.constant 2 : index
    %c0_187 = arith.constant 0 : index
    %c0_188 = arith.constant 0 : index
    %c0_189 = arith.constant 0 : index
    %227 = vector.load %arg8[%c2_186, %c0_187, %c0_188, %c0_189] : memref<3x3x32x32xbf16, #tpu.memory_space<vmem>>, vector<1x1x32x32xbf16>
    %228 = vector.shape_cast %227 : vector<1x1x32x32xbf16> to vector<32x32xbf16>
    %cst_190 = arith.constant dense<0.000000e+00> : vector<16x32xf32>
    %229 = tpu.matmul %226, %228, %cst_190 {dimension_numbers = #tpu.dot_dimension_numbers<[1], [0], [0], [1], [0, 0, 1, 1], [], []>} : vector<16x32xbf16>, vector<32x32xbf16>, vector<16x32xf32> -> vector<16x32xf32>
    %230 = arith.addf %224, %229 : vector<16x32xf32>
    %231 = vector.extract_strided_slice %187 {offsets = [2, 1, 0], sizes = [8, 2, 32], strides = [1, 1, 1]} : vector<10x4x32xbf16> to vector<8x2x32xbf16>
    %232 = vector.shape_cast %231 : vector<8x2x32xbf16> to vector<16x32xbf16>
    %c2_191 = arith.constant 2 : index
    %c1_192 = arith.constant 1 : index
    %c0_193 = arith.constant 0 : index
    %c0_194 = arith.constant 0 : index
    %233 = vector.load %arg8[%c2_191, %c1_192, %c0_193, %c0_194] : memref<3x3x32x32xbf16, #tpu.memory_space<vmem>>, vector<1x1x32x32xbf16>
    %234 = vector.shape_cast %233 : vector<1x1x32x32xbf16> to vector<32x32xbf16>
    %cst_195 = arith.constant dense<0.000000e+00> : vector<16x32xf32>
    %235 = tpu.matmul %232, %234, %cst_195 {dimension_numbers = #tpu.dot_dimension_numbers<[1], [0], [0], [1], [0, 0, 1, 1], [], []>} : vector<16x32xbf16>, vector<32x32xbf16>, vector<16x32xf32> -> vector<16x32xf32>
    %236 = arith.addf %230, %235 : vector<16x32xf32>
    %237 = vector.extract_strided_slice %187 {offsets = [2, 2, 0], sizes = [8, 2, 32], strides = [1, 1, 1]} : vector<10x4x32xbf16> to vector<8x2x32xbf16>
    %238 = vector.shape_cast %237 : vector<8x2x32xbf16> to vector<16x32xbf16>
    %c2_196 = arith.constant 2 : index
    %c2_197 = arith.constant 2 : index
    %c0_198 = arith.constant 0 : index
    %c0_199 = arith.constant 0 : index
    %239 = vector.load %arg8[%c2_196, %c2_197, %c0_198, %c0_199] : memref<3x3x32x32xbf16, #tpu.memory_space<vmem>>, vector<1x1x32x32xbf16>
    %240 = vector.shape_cast %239 : vector<1x1x32x32xbf16> to vector<32x32xbf16>
    %cst_200 = arith.constant dense<0.000000e+00> : vector<16x32xf32>
    %241 = tpu.matmul %238, %240, %cst_200 {dimension_numbers = #tpu.dot_dimension_numbers<[1], [0], [0], [1], [0, 0, 1, 1], [], []>} : vector<16x32xbf16>, vector<32x32xbf16>, vector<16x32xf32> -> vector<16x32xf32>
    %242 = arith.addf %236, %241 : vector<16x32xf32>
    %c0_201 = arith.constant 0 : index
    %c0_202 = arith.constant 0 : index
    %243 = vector.load %arg9[%c0_201, %c0_202] : memref<1x32xf32, #tpu.memory_space<vmem>>, vector<1x32xf32>
    %244 = vector.broadcast %243 : vector<1x32xf32> to vector<16x32xf32>
    %245 = arith.addf %242, %244 : vector<16x32xf32>
    %cst_203 = arith.constant 0.000000e+00 : f32
    %246 = vector.broadcast %cst_203 : f32 to vector<16x32xf32>
    %247 = arith.maximumf %245, %246 : vector<16x32xf32>
    %248 = arith.truncf %247 : vector<16x32xf32> to vector<16x32xbf16>
    %249 = vector.shape_cast %248 : vector<16x32xbf16> to vector<8x2x32xbf16>
    %c0_204 = arith.constant 0 : index
    %c0_205 = arith.constant 0 : index
    %c0_206 = arith.constant 0 : index
    %c0_207 = arith.constant 0 : index
    %250 = vector.load %arg10[%c0_204, %c0_205, %c0_206, %c0_207] : memref<1x8x2x32xbf16, #tpu.memory_space<vmem>>, vector<1x8x2x32xbf16>
    %251 = vector.shape_cast %250 : vector<1x8x2x32xbf16> to vector<8x2x32xbf16>
    %252 = vector.shape_cast %249 : vector<8x2x32xbf16> to vector<1x8x2x32xbf16>
    tpu.vector_store %arg10[%c0_204, %c0_205, %c0_206, %c0_207], %252 {strides = array<i32>} : memref<1x8x2x32xbf16, #tpu.memory_space<vmem>>, vector<1x8x2x32xbf16>,
    return
  }
  func.func @transform_0(%arg0: i32) -> (i32, i32, i32, i32) {
    %c0_i32 = arith.constant 0 : i32
    %c0_i32_0 = arith.constant 0 : i32
    %c0_i32_1 = arith.constant 0 : i32
    %c0_i32_2 = arith.constant 0 : i32
    return %arg0, %c0_i32, %c0_i32_0, %c0_i32_1 : i32, i32, i32, i32
  }
  func.func @transform_1(%arg0: i32) -> (i32, i32, i32, i32) {
    %c0_i32 = arith.constant 0 : i32
    %c0_i32_0 = arith.constant 0 : i32
    %c0_i32_1 = arith.constant 0 : i32
    %c0_i32_2 = arith.constant 0 : i32
    return %arg0, %c0_i32, %c0_i32_0, %c0_i32_1 : i32, i32, i32, i32
  }
  func.func @transform_2(%arg0: i32) -> (i32, i32, i32) {
    %c0_i32 = arith.constant 0 : i32
    %c0_i32_0 = arith.constant 0 : i32
    %c0_i32_1 = arith.constant 0 : i32
    %c0_i32_2 = arith.constant 0 : i32
    return %c0_i32, %c0_i32_0, %c0_i32_1 : i32, i32, i32
  }
  func.func @transform_3(%arg0: i32) -> (i32, i32) {
    %c0_i32 = arith.constant 0 : i32
    %c0_i32_0 = arith.constant 0 : i32
    %c0_i32_1 = arith.constant 0 : i32
    return %c0_i32, %c0_i32_0 : i32, i32
  }
  func.func @transform_4(%arg0: i32) -> (i32, i32, i32, i32) {
    %c0_i32 = arith.constant 0 : i32
    %c0_i32_0 = arith.constant 0 : i32
    %c0_i32_1 = arith.constant 0 : i32
    %c0_i32_2 = arith.constant 0 : i32
    %c0_i32_3 = arith.constant 0 : i32
    return %c0_i32, %c0_i32_0, %c0_i32_1, %c0_i32_2 : i32, i32, i32, i32
  }
  func.func @transform_5(%arg0: i32) -> (i32, i32, i32, i32) {
    %c0_i32 = arith.constant 0 : i32
    %c0_i32_0 = arith.constant 0 : i32
    %c0_i32_1 = arith.constant 0 : i32
    %c0_i32_2 = arith.constant 0 : i32
    %c0_i32_3 = arith.constant 0 : i32
    return %c0_i32, %c0_i32_0, %c0_i32_1, %c0_i32_2 : i32, i32, i32, i32
  }
  func.func @transform_6(%arg0: i32) -> (i32, i32) {
    %c0_i32 = arith.constant 0 : i32
    %c0_i32_0 = arith.constant 0 : i32
    %c0_i32_1 = arith.constant 0 : i32
    return %c0_i32, %c0_i32_0 : i32, i32
  }
  func.func @transform_7(%arg0: i32) -> (i32, i32, i32, i32) {
    %c0_i32 = arith.constant 0 : i32
    %c0_i32_0 = arith.constant 0 : i32
    %c0_i32_1 = arith.constant 0 : i32
    %c0_i32_2 = arith.constant 0 : i32
    %c0_i32_3 = arith.constant 0 : i32
    return %c0_i32, %c0_i32_0, %c0_i32_1, %c0_i32_2 : i32, i32, i32, i32
  }
  func.func @transform_8(%arg0: i32) -> (i32, i32) {
    %c0_i32 = arith.constant 0 : i32
    %c0_i32_0 = arith.constant 0 : i32
    %c0_i32_1 = arith.constant 0 : i32
    return %c0_i32, %c0_i32_0 : i32, i32
  }
  func.func @transform_9(%arg0: i32) -> (i32, i32, i32, i32) {
    %c0_i32 = arith.constant 0 : i32
    %c0_i32_0 = arith.constant 0 : i32
    %c0_i32_1 = arith.constant 0 : i32
    %c0_i32_2 = arith.constant 0 : i32
    return %arg0, %c0_i32, %c0_i32_0, %c0_i32_1 : i32, i32, i32, i32
  }
}

</mosaic_0001>

<llo_original>
// kernel: tpu_custom_call.1
$region0: #{tpu_custom_call.1}
  #allocation0 [shape = 'u32[]', space=smem, size = 0x4, offset = 0x4, fixed_abs, tag = 'smem constant byte address 0x4 - core index']
  #allocation1 [shape = 'u32[144,128]{1,0:T(1,128)}', space=vmem, size = 0x12000, scoped, tag = 'internal scratch']
  #allocation2 [shape = 'bf16[10,4,32]{2,1,0:T(4,128)(2,1)}', space=vmem, size = 0x2800, scoped, tag = 'scratch operand']
  #allocation3 [shape = 'bf16[10,4,32]{2,1,0:T(4,128)(2,1)}', space=vmem, size = 0x2800, scoped, tag = 'scratch operand']
  #allocation4 [shape = 'bf16[10,4,32]{2,1,0:T(4,128)(2,1)}', space=vmem, size = 0x2800, scoped, tag = 'scratch operand']
  %s0 = inlined_call_operand.hbm [shape: bf16[2,4,2,32], index: 0, kind: input, shape index: {}]
  %s1 = inlined_call_operand.hbm [shape: bf16[2,8,2,32], index: 1, kind: input, shape index: {}]
  %s2 = inlined_call_operand.hbm [shape: bf16[2,32,32], index: 2, kind: input, shape index: {}]
  %s3 = inlined_call_operand.vmem [shape: f32[1,32], index: 3, kind: input, shape index: {}]
  %s4 = inlined_call_operand.hbm [shape: bf16[3,3,32,32], index: 4, kind: input, shape index: {}]
  %s5 = inlined_call_operand.hbm [shape: bf16[3,3,32,32], index: 5, kind: input, shape index: {}]
  %s6 = inlined_call_operand.vmem [shape: f32[1,32], index: 6, kind: input, shape index: {}]
  %s7 = inlined_call_operand.hbm [shape: bf16[3,3,32,32], index: 7, kind: input, shape index: {}]
  %s8 = inlined_call_operand.vmem [shape: f32[1,32], index: 8, kind: input, shape index: {}]
  %s9 = inlined_call_operand.hbm [shape: bf16[2,8,2,32], index: 9, kind: output, shape index: {}]
  %s10 = sld [smem:[#allocation0]]
  $region93: #{tpu_custom_call.1} parent=0
    _
  %s12 = ssub.s32 1, %s10
  %s13 = scalar_select 0, %s12, %s10
  $region1: #{tpu_custom_call.1} parent=0
    #allocation5 [shape = 'u8[4096]{0}', space=vmem, size = 0x1000, scoped, tag = 'input window, operand 0']
    #allocation6 [shape = 's32[2]{0}', space=sflag, size = 0x8, scoped, tag = 'scoped memory for tpu_custom_call.1']
    #allocation7 [shape = 's32[2]{0}', space=sflag, size = 0x8, scoped, tag = 'scoped memory for tpu_custom_call.1']
    #allocation8 [shape = 'u8[8192]{0}', space=vmem, size = 0x2000, scoped, tag = 'input window, operand 1']
    #allocation9 [shape = 's32[2]{0}', space=sflag, size = 0x8, scoped, tag = 'scoped memory for tpu_custom_call.1']
    #allocation10 [shape = 'u8[16384]{0}', space=vmem, size = 0x4000, scoped, tag = 'input window, operand 2, single buffered']
    #allocation11 [shape = 'u8[73728]{0}', space=vmem, size = 0x12000, scoped, tag = 'input window, operand 4, single buffered']
    #allocation12 [shape = 's32[1]{0}', space=sflag, size = 0x4, scoped, tag = 'scoped memory for tpu_custom_call.1']
    #allocation13 [shape = 'u8[73728]{0}', space=vmem, size = 0x12000, scoped, tag = 'input window, operand 5, single buffered']
    #allocation14 [shape = 'u8[73728]{0}', space=vmem, size = 0x12000, scoped, tag = 'input window, operand 7, single buffered']
    #allocation15 [shape = 's32[1]{0}', space=sflag, size = 0x4, scoped, tag = 'scoped memory for tpu_custom_call.1']
    #allocation16 [shape = 'u8[8192]{0}', space=vmem, size = 0x2000, scoped, tag = 'output window, operand 0']
    %14 = vsyncpa [#allocation6], 0
    %s15 = scalar_lea.sflag [#allocation6], 1
    %16 = vsyncpa %s15, 0
    %17 = vsyncpa [#allocation9], 0
    %s18 = scalar_lea.sflag [#allocation9], 1
    %19 = vsyncpa %s18, 0
    %20 = vsyncpa [#allocation12], 0
    %21 = vsyncpa [#allocation15], 0
    %22 = vsyncpa [#allocation7], 0
    %s23 = scalar_lea.sflag [#allocation7], 1
    %24 = vsyncpa %s23, 0
    loop: start=0, step=1, limit=4
    $region2: #{tpu_custom_call.1} parent=1 // loop_pre_header
      _
    $region3: #{tpu_custom_call.1} parent=1 // loop_header
      %s26 = sphi 0, %s30
      %p27 = scmp.ge.s32.totalorder %s26, 4
      %s36 = sphi 0, %s38
      %s39 = sphi 0, %s36
      %s40 = sphi 0, %s39
      %s56 = sphi 0, %s40
      %s62 = sphi 0, %s64
      %s65 = sphi 0, %s62
      %s66 = sphi 0, %s65
      %s82 = sphi 0, %s66
      %s86 = sphi 0, %s86
      %s88 = sphi 0, %s86
      %s89 = sphi 0, %s88
      %s103 = sphi 0, %s89
      %s107 = sphi 0, %s107
      %s109 = sphi 0, %s107
      %s110 = sphi 0, %s109
      %s124 = sphi 0, %s110
      %s128 = sphi 0, %s128
      %s130 = sphi 0, %s128
      %s131 = sphi 0, %s130
      %s145 = sphi 0, %s131
      %s149 = sphi 0, %s149
      %s151 = sphi 0, %s149
      %s152 = sphi 0, %s151
      %s166 = sphi 0, %s152
      %s170 = sphi 0, %s170
      %s172 = sphi 0, %s170
      %s173 = sphi 0, %s172
      %s187 = sphi 0, %s173
      %s191 = sphi 0, %s191
      %s193 = sphi 0, %s191
      %s194 = sphi 0, %s193
      %s208 = sphi 0, %s194
      %s212 = sphi 0, %s212
      %s214 = sphi 0, %s212
      %s215 = sphi 0, %s214
      %s229 = sphi 0, %s215
      %s235 = sphi 0, %s237
      %s238 = sphi 0, %s235
      %s239 = sphi 0, %s238
      %s255 = sphi 0, %s239
    $region4: #{tpu_custom_call.1} parent=1 // loop_header_branch
      %29 = sbr.rel (%p27) target = $region8
    $region5: #{tpu_custom_call.1} parent=1 // loop_body
      %s31 = ssub.s32 %s26, 1
      %s32 = ssub.s32 %s26, 2
      %s33 = sadd.s32 %s26, 1
      %s34 = ssub.s32 %s26, %s33
      %p35 = scmp.eq.s32.totalorder %s34, 0
      %s37 = sadd.s32 %s36, 1
      %s38 = scalar_select %p35, %s36, %s37
      %p41 = pneg %p35
      %p42 = scmp.eq.s32.totalorder %s26, 1
      %p43 = por %p41, %p42
      %p44 = scmp.ne.s32.totalorder %s36, %s39
      %p45 = scmp.eq.s32.totalorder %s26, 0
      %p46 = por %p44, %p45
      %p47 = scmp.ne.s32.totalorder %s36, %s39
      %p48 = scmp.eq.s32.totalorder %s31, 1
      %p49 = por %p47, %p48
      %p50 = scmp.ne.s32.totalorder %s39, %s40
      %p51 = scmp.eq.s32.totalorder %s31, 0
      %p52 = por %p50, %p51
      %p53 = scmp.ne.s32.totalorder %s39, %s40
      %p54 = scmp.eq.s32.totalorder %s32, 1
      %p55 = por %p53, %p54
      %p57 = scmp.ne.s32.totalorder %s40, %s56
      %p58 = scmp.eq.s32.totalorder %s32, 0
      %p59 = por %p57, %p58
      %s60 = ssub.s32 %s26, %s33
      %p61 = scmp.eq.s32.totalorder %s60, 0
      %s63 = sadd.s32 %s62, 1
      %s64 = scalar_select %p61, %s62, %s63
      %p67 = pneg %p61
      %p68 = scmp.eq.s32.totalorder %s26, 1
      %p69 = por %p67, %p68
      %p70 = scmp.ne.s32.totalorder %s62, %s65
      %p71 = scmp.eq.s32.totalorder %s26, 0
      %p72 = por %p70, %p71
      %p73 = scmp.ne.s32.totalorder %s62, %s65
      %p74 = scmp.eq.s32.totalorder %s31, 1
      %p75 = por %p73, %p74
      %p76 = scmp.ne.s32.totalorder %s65, %s66
      %p77 = scmp.eq.s32.totalorder %s31, 0
      %p78 = por %p76, %p77
      %p79 = scmp.ne.s32.totalorder %s65, %s66
      %p80 = scmp.eq.s32.totalorder %s32, 1
      %p81 = por %p79, %p80
      %p83 = scmp.ne.s32.totalorder %s66, %s82
      %p84 = scmp.eq.s32.totalorder %s32, 0
      %p85 = por %p83, %p84
      %s87 = sadd.s32 %s86, 1
      %p90 = scmp.eq.s32.totalorder %s26, 1
      %p91 = scmp.ne.s32.totalorder %s86, %s88
      %p92 = scmp.eq.s32.totalorder %s26, 0
      %p93 = por %p91, %p92
      %p94 = scmp.ne.s32.totalorder %s86, %s88
      %p95 = scmp.eq.s32.totalorder %s31, 1
      %p96 = por %p94, %p95
      %p97 = scmp.ne.s32.totalorder %s88, %s89
      %p98 = scmp.eq.s32.totalorder %s31, 0
      %p99 = por %p97, %p98
      %p100 = scmp.ne.s32.totalorder %s88, %s89
      %p101 = scmp.eq.s32.totalorder %s32, 1
      %p102 = por %p100, %p101
      %p104 = scmp.ne.s32.totalorder %s89, %s103
      %p105 = scmp.eq.s32.totalorder %s32, 0
      %p106 = por %p104, %p105
      %s108 = sadd.s32 %s107, 1
      %p111 = scmp.eq.s32.totalorder %s26, 1
      %p112 = scmp.ne.s32.totalorder %s107, %s109
      %p113 = scmp.eq.s32.totalorder %s26, 0
      %p114 = por %p112, %p113
      %p115 = scmp.ne.s32.totalorder %s107, %s109
      %p116 = scmp.eq.s32.totalorder %s31, 1
      %p117 = por %p115, %p116
      %p118 = scmp.ne.s32.totalorder %s109, %s110
      %p119 = scmp.eq.s32.totalorder %s31, 0
      %p120 = por %p118, %p119
      %p121 = scmp.ne.s32.totalorder %s109, %s110
      %p122 = scmp.eq.s32.totalorder %s32, 1
      %p123 = por %p121, %p122
      %p125 = scmp.ne.s32.totalorder %s110, %s124
      %p126 = scmp.eq.s32.totalorder %s32, 0
      %p127 = por %p125, %p126
      %s129 = sadd.s32 %s128, 1
      %p132 = scmp.eq.s32.totalorder %s26, 1
      %p133 = scmp.ne.s32.totalorder %s128, %s130
      %p134 = scmp.eq.s32.totalorder %s26, 0
      %p135 = por %p133, %p134
      %p136 = scmp.ne.s32.totalorder %s128, %s130
      %p137 = scmp.eq.s32.totalorder %s31, 1
      %p138 = por %p136, %p137
      %p139 = scmp.ne.s32.totalorder %s130, %s131
      %p140 = scmp.eq.s32.totalorder %s31, 0
      %p141 = por %p139, %p140
      %p142 = scmp.ne.s32.totalorder %s130, %s131
      %p143 = scmp.eq.s32.totalorder %s32, 1
      %p144 = por %p142, %p143
      %p146 = scmp.ne.s32.totalorder %s131, %s145
      %p147 = scmp.eq.s32.totalorder %s32, 0
      %p148 = por %p146, %p147
      %s150 = sadd.s32 %s149, 1
      %p153 = scmp.eq.s32.totalorder %s26, 1
      %p154 = scmp.ne.s32.totalorder %s149, %s151
      %p155 = scmp.eq.s32.totalorder %s26, 0
      %p156 = por %p154, %p155
      %p157 = scmp.ne.s32.totalorder %s149, %s151
      %p158 = scmp.eq.s32.totalorder %s31, 1
      %p159 = por %p157, %p158
      %p160 = scmp.ne.s32.totalorder %s151, %s152
      %p161 = scmp.eq.s32.totalorder %s31, 0
      %p162 = por %p160, %p161
      %p163 = scmp.ne.s32.totalorder %s151, %s152
      %p164 = scmp.eq.s32.totalorder %s32, 1
      %p165 = por %p163, %p164
      %p167 = scmp.ne.s32.totalorder %s152, %s166
      %p168 = scmp.eq.s32.totalorder %s32, 0
      %p169 = por %p167, %p168
      %s171 = sadd.s32 %s170, 1
      %p174 = scmp.eq.s32.totalorder %s26, 1
      %p175 = scmp.ne.s32.totalorder %s170, %s172
      %p176 = scmp.eq.s32.totalorder %s26, 0
      %p177 = por %p175, %p176
      %p178 = scmp.ne.s32.totalorder %s170, %s172
      %p179 = scmp.eq.s32.totalorder %s31, 1
      %p180 = por %p178, %p179
      %p181 = scmp.ne.s32.totalorder %s172, %s173
      %p182 = scmp.eq.s32.totalorder %s31, 0
      %p183 = por %p181, %p182
      %p184 = scmp.ne.s32.totalorder %s172, %s173
      %p185 = scmp.eq.s32.totalorder %s32, 1
      %p186 = por %p184, %p185
      %p188 = scmp.ne.s32.totalorder %s173, %s187
      %p189 = scmp.eq.s32.totalorder %s32, 0
      %p190 = por %p188, %p189
      %s192 = sadd.s32 %s191, 1
      %p195 = scmp.eq.s32.totalorder %s26, 1
      %p196 = scmp.ne.s32.totalorder %s191, %s193
      %p197 = scmp.eq.s32.totalorder %s26, 0
      %p198 = por %p196, %p197
      %p199 = scmp.ne.s32.totalorder %s191, %s193
      %p200 = scmp.eq.s32.totalorder %s31, 1
      %p201 = por %p199, %p200
      %p202 = scmp.ne.s32.totalorder %s193, %s194
      %p203 = scmp.eq.s32.totalorder %s31, 0
      %p204 = por %p202, %p203
      %p205 = scmp.ne.s32.totalorder %s193, %s194
      %p206 = scmp.eq.s32.totalorder %s32, 1
      %p207 = por %p205, %p206
      %p209 = scmp.ne.s32.totalorder %s194, %s208
      %p210 = scmp.eq.s32.totalorder %s32, 0
      %p211 = por %p209, %p210
      %s213 = sadd.s32 %s212, 1
      %p216 = scmp.eq.s32.totalorder %s26, 1
      %p217 = scmp.ne.s32.totalorder %s212, %s214
      %p218 = scmp.eq.s32.totalorder %s26, 0
      %p219 = por %p217, %p218
      %p220 = scmp.ne.s32.totalorder %s212, %s214
      %p221 = scmp.eq.s32.totalorder %s31, 1
      %p222 = por %p220, %p221
      %p223 = scmp.ne.s32.totalorder %s214, %s215
      %p224 = scmp.eq.s32.totalorder %s31, 0
      %p225 = por %p223, %p224
      %p226 = scmp.ne.s32.totalorder %s214, %s215
      %p227 = scmp.eq.s32.totalorder %s32, 1
      %p228 = por %p226, %p227
      %p230 = scmp.ne.s32.totalorder %s215, %s229
      %p231 = scmp.eq.s32.totalorder %s32, 0
      %p232 = por %p230, %p231
      %s233 = ssub.s32 %s26, %s33
      %p234 = scmp.eq.s32.totalorder %s233, 0
      %s236 = sadd.s32 %s235, 1
      %s237 = scalar_select %p234, %s235, %s236
      %p240 = pneg %p234
      %p241 = scmp.eq.s32.totalorder %s26, 1
      %p242 = por %p240, %p241
      %p243 = scmp.ne.s32.totalorder %s235, %s238
      %p244 = scmp.eq.s32.totalorder %s26, 0
      %p245 = por %p243, %p244
      %p246 = scmp.ne.s32.totalorder %s235, %s238
      %p247 = scmp.eq.s32.totalorder %s31, 1
      %p248 = por %p246, %p247
      %p249 = scmp.ne.s32.totalorder %s238, %s239
      %p250 = scmp.eq.s32.totalorder %s31, 0
      %p251 = por %p249, %p250
      %p252 = scmp.ne.s32.totalorder %s238, %s239
      %p253 = scmp.eq.s32.totalorder %s32, 1
      %p254 = por %p252, %p253
      %p256 = scmp.ne.s32.totalorder %s239, %s255
      %p257 = scmp.eq.s32.totalorder %s32, 0
      %p258 = por %p256, %p257
      %p259 = scmp.le.s32.totalorder 1, %s26
      %p260 = scmp.lt.s32.totalorder %s26, 3
      %p261 = pnand %p259, %p260
      %p262 = pneg %p261
      // Predicated region
      $region9: #{tpu_custom_call.1} parent=5 // pred_check
        _
      $region10: #{tpu_custom_call.1} parent=5 // pred_check_branch
        %264 = sbr.rel (%p261) target = $region12
      $region11: #{tpu_custom_call.1} parent=5 // pred_region
        %s265 = ssub.s32 %s26, 1
        // Predicated region
        $region13: #{tpu_custom_call.1} parent=11 // pred_check
          %p266 = pneg %p99
        $region14: #{tpu_custom_call.1} parent=11 // pred_check_branch
          %268 = sbr.rel (%p266) target = $region16
        $region15: #{tpu_custom_call.1} parent=11 // pred_region
          %s270 = ssub.s32 512, 512
          %271 = vsyncadd [#allocation9], %s270
          %s272 = sshll.u32 [#allocation10], 4
          %s273 = int_to_ptr.vmem [resolvable:$true] %s272
          %278 = dma.hbm_to_vmem [thread:$0]  %s2, 512, %s273, [#allocation9], 64, 64, 4
        $region16: #{tpu_custom_call.1} parent=11 // pred_fallthru
          _
        // Predicated region
        $region17: #{tpu_custom_call.1} parent=11 // pred_check
          %p279 = pneg %p120
        $region18: #{tpu_custom_call.1} parent=11 // pred_check_branch
          %281 = sbr.rel (%p279) target = $region20
        $region19: #{tpu_custom_call.1} parent=11 // pred_region
          _
        $region20: #{tpu_custom_call.1} parent=11 // pred_fallthru
          _
        // Predicated region
        $region21: #{tpu_custom_call.1} parent=11 // pred_check
          %p282 = pneg %p141
        $region22: #{tpu_custom_call.1} parent=11 // pred_check_branch
          %284 = sbr.rel (%p282) target = $region24
        $region23: #{tpu_custom_call.1} parent=11 // pred_region
          %s286 = ssub.s32 2304, 2304
          %287 = vsyncadd [#allocation12], %s286
          %s288 = sshll.u32 [#allocation11], 4
          %s289 = int_to_ptr.vmem [resolvable:$true] %s288
          %294 = dma.hbm_to_vmem [thread:$0]  %s4, 2304, %s289, [#allocation12], 64, 64, 4
        $region24: #{tpu_custom_call.1} parent=11 // pred_fallthru
          _
        // Predicated region
        $region25: #{tpu_custom_call.1} parent=11 // pred_check
          %p295 = pneg %p162
        $region26: #{tpu_custom_call.1} parent=11 // pred_check_branch
          %297 = sbr.rel (%p295) target = $region28
        $region27: #{tpu_custom_call.1} parent=11 // pred_region
          %s299 = ssub.s32 2304, 2304
          %300 = vsyncadd [#allocation12], %s299
          %s301 = sshll.u32 [#allocation13], 4
          %s302 = int_to_ptr.vmem [resolvable:$true] %s301
          %307 = dma.hbm_to_vmem [thread:$0]  %s5, 2304, %s302, [#allocation12], 64, 64, 4
        $region28: #{tpu_custom_call.1} parent=11 // pred_fallthru
          _
        // Predicated region
        $region29: #{tpu_custom_call.1} parent=11 // pred_check
          %p308 = pneg %p183
        $region30: #{tpu_custom_call.1} parent=11 // pred_check_branch
          %310 = sbr.rel (%p308) target = $region32
        $region31: #{tpu_custom_call.1} parent=11 // pred_region
          _
        $region32: #{tpu_custom_call.1} parent=11 // pred_fallthru
          _
        // Predicated region
        $region33: #{tpu_custom_call.1} parent=11 // pred_check
          %p311 = pneg %p204
        $region34: #{tpu_custom_call.1} parent=11 // pred_check_branch
          %313 = sbr.rel (%p311) target = $region36
        $region35: #{tpu_custom_call.1} parent=11 // pred_region
          %s315 = ssub.s32 2304, 2304
          %316 = vsyncadd [#allocation15], %s315
          %s317 = sshll.u32 [#allocation14], 4
          %s318 = int_to_ptr.vmem [resolvable:$true] %s317
          %323 = dma.hbm_to_vmem [thread:$0]  %s7, 2304, %s318, [#allocation15], 64, 64, 4
        $region36: #{tpu_custom_call.1} parent=11 // pred_fallthru
          _
        // Predicated region
        $region37: #{tpu_custom_call.1} parent=11 // pred_check
          %p324 = pneg %p225
        $region38: #{tpu_custom_call.1} parent=11 // pred_check_branch
          %326 = sbr.rel (%p324) target = $region40
        $region39: #{tpu_custom_call.1} parent=11 // pred_region
          _
        $region40: #{tpu_custom_call.1} parent=11 // pred_fallthru
          _
      $region12: #{tpu_custom_call.1} parent=5 // pred_fallthru
        _
      %p327 = scmp.lt.s32.totalorder %s26, 2
      // Predicated region
      $region41: #{tpu_custom_call.1} parent=5 // pred_check
        %p328 = pneg %p327
      $region42: #{tpu_custom_call.1} parent=5 // pred_check_branch
        %330 = sbr.rel (%p328) target = $region44
      $region43: #{tpu_custom_call.1} parent=5 // pred_region
        // Predicated region
        $region45: #{tpu_custom_call.1} parent=43 // pred_check
          %p331 = pneg %p46
        $region46: #{tpu_custom_call.1} parent=43 // pred_check_branch
          %333 = sbr.rel (%p331) target = $region48
        $region47: #{tpu_custom_call.1} parent=43 // pred_region
          %s334 = sand.u32 %s36, 1
          %s335 = scalar_lea.sflag [#allocation6], %s334
          %s336 = sand.u32 %s36, 1
          %s337 = smul.addr %s336, 4
          %s338 = scalar_lea.vmem [#allocation5], %s337
          %s340 = ssub.s32 64, 64
          %341 = vsyncadd %s335, %s340
          %s342 = smul.addr %s26, 4
          %s343 = smul.addr %s342, 16
          %s344 = scalar_lea.hbm %s0, %s343
          %s345 = sshll.u32 %s338, 4
          %s346 = int_to_ptr.vmem [resolvable:$true] %s345
          %351 = dma.hbm_to_vmem [thread:$0]  %s344, 64, %s346, %s335, 16, 16, 1
        $region48: #{tpu_custom_call.1} parent=43 // pred_fallthru
          _
        // Predicated region
        $region49: #{tpu_custom_call.1} parent=43 // pred_check
          %p352 = pneg %p72
        $region50: #{tpu_custom_call.1} parent=43 // pred_check_branch
          %354 = sbr.rel (%p352) target = $region52
        $region51: #{tpu_custom_call.1} parent=43 // pred_region
          %s355 = sand.u32 %s26, 1
          %s356 = scalar_lea.sflag [#allocation9], %s355
          %s357 = sand.u32 %s62, 1
          %s358 = smul.addr %s357, 8
          %s359 = scalar_lea.vmem [#allocation8], %s358
          %s361 = ssub.s32 128, 128
          %362 = vsyncadd %s356, %s361
          %s363 = smul.addr %s26, 8
          %s364 = smul.addr %s363, 16
          %s365 = scalar_lea.hbm %s1, %s364
          %s366 = sshll.u32 %s359, 4
          %s367 = int_to_ptr.vmem [resolvable:$true] %s366
          %372 = dma.hbm_to_vmem [thread:$0]  %s365, 128, %s367, %s356, 16, 16, 1
        $region52: #{tpu_custom_call.1} parent=43 // pred_fallthru
          _
      $region44: #{tpu_custom_call.1} parent=5 // pred_fallthru
        _
      %p373 = scmp.le.s32.totalorder 1, %s26
      %p374 = scmp.lt.s32.totalorder %s26, 3
      %p375 = pnand %p373, %p374
      %p376 = pneg %p375
      // Predicated region
      $region53: #{tpu_custom_call.1} parent=5 // pred_check
        _
      $region54: #{tpu_custom_call.1} parent=5 // pred_check_branch
        %378 = sbr.rel (%p375) target = $region56
      $region55: #{tpu_custom_call.1} parent=5 // pred_region
        %s379 = ssub.s32 %s26, 1
        %s380 = sand.u32 %s39, 1
        %s381 = scalar_lea.sflag [#allocation6], %s380
        %s382 = sand.u32 %s39, 1
        %s383 = smul.addr %s382, 4
        %s384 = scalar_lea.vmem [#allocation5], %s383
        // Predicated region
        $region57: #{tpu_custom_call.1} parent=55 // pred_check
          %p385 = pneg %p52
        $region58: #{tpu_custom_call.1} parent=55 // pred_check_branch
          %387 = sbr.rel (%p385) target = $region60
        $region59: #{tpu_custom_call.1} parent=55 // pred_region
          %388 = dma.done %s381, 64
        $region60: #{tpu_custom_call.1} parent=55 // pred_fallthru
          _
        %s389 = sand.u32 %s31, 1
        %s390 = scalar_lea.sflag [#allocation9], %s389
        %s391 = sand.u32 %s65, 1
        %s392 = smul.addr %s391, 8
        %s393 = scalar_lea.vmem [#allocation8], %s392
        // Predicated region
        $region61: #{tpu_custom_call.1} parent=55 // pred_check
          %p394 = pneg %p78
        $region62: #{tpu_custom_call.1} parent=55 // pred_check_branch
          %396 = sbr.rel (%p394) target = $region64
        $region63: #{tpu_custom_call.1} parent=55 // pred_region
          %397 = dma.done %s390, 128
        $region64: #{tpu_custom_call.1} parent=55 // pred_fallthru
          _
        // Predicated region
        $region65: #{tpu_custom_call.1} parent=55 // pred_check
          %p398 = pneg %p99
        $region66: #{tpu_custom_call.1} parent=55 // pred_check_branch
          %400 = sbr.rel (%p398) target = $region68
        $region67: #{tpu_custom_call.1} parent=55 // pred_region
          %401 = dma.done [#allocation9], 512
        $region68: #{tpu_custom_call.1} parent=55 // pred_fallthru
          _
        // Predicated region
        $region69: #{tpu_custom_call.1} parent=55 // pred_check
          %p402 = pneg %p141
        $region70: #{tpu_custom_call.1} parent=55 // pred_check_branch
          %404 = sbr.rel (%p402) target = $region72
        $region71: #{tpu_custom_call.1} parent=55 // pred_region
          %405 = dma.done [#allocation12], 2304
        $region72: #{tpu_custom_call.1} parent=55 // pred_fallthru
          _
        // Predicated region
        $region73: #{tpu_custom_call.1} parent=55 // pred_check
          %p406 = pneg %p162
        $region74: #{tpu_custom_call.1} parent=55 // pred_check_branch
          %408 = sbr.rel (%p406) target = $region76
        $region75: #{tpu_custom_call.1} parent=55 // pred_region
          %409 = dma.done [#allocation12], 2304
        $region76: #{tpu_custom_call.1} parent=55 // pred_fallthru
          _
        // Predicated region
        $region77: #{tpu_custom_call.1} parent=55 // pred_check
          %p410 = pneg %p204
        $region78: #{tpu_custom_call.1} parent=55 // pred_check_branch
          %412 = sbr.rel (%p410) target = $region80
        $region79: #{tpu_custom_call.1} parent=55 // pred_region
          %413 = dma.done [#allocation15], 2304
        $region80: #{tpu_custom_call.1} parent=55 // pred_fallthru
          _
        %s414 = sand.u32 %s39, 1
        %s415 = scalar_lea.sflag [#allocation6], %s414
        %s416 = sand.u32 %s39, 1
        %s417 = smul.addr %s416, 4
        %s418 = scalar_lea.vmem [#allocation5], %s417
        %p419 = pneg %p52
        %p420 = pneg %p49
        %s421 = sand.u32 %s31, 1
        %s422 = scalar_lea.sflag [#allocation9], %s421
        %s423 = sand.u32 %s65, 1
        %s424 = smul.addr %s423, 8
        %s425 = scalar_lea.vmem [#allocation8], %s424
        %p426 = pneg %p78
        %p427 = pneg %p75
        %p428 = pneg %p99
        %p429 = pneg %p96
        %p430 = pneg %p120
        %p431 = pneg %p117
        %p432 = pneg %p141
        %p433 = pneg %p138
        %p434 = pneg %p162
        %p435 = pneg %p159
        %p436 = pneg %p183
        %p437 = pneg %p180
        %p438 = pneg %p204
        %p439 = pneg %p201
        %p440 = pneg %p225
        %p441 = pneg %p222
        %p442 = pneg %p251
        %p443 = pneg %p248
        %s444 = sand.u32 %s238, 1
        %s445 = scalar_lea.sflag [#allocation7], %s444
        %s446 = sand.u32 %s238, 1
        %s447 = smul.addr %s446, 8
        %s448 = scalar_lea.vmem [#allocation16], %s447
        %vm450 = vcmask 254976
        %451 = vst.msk [vmem:[#allocation2] sm:$0x3] %vm450, 0
        %452 = vst.msk [vmem:[#allocation2 + $0x2] sm:$0x3] %vm450, 0
        %453 = vst.msk [vmem:[#allocation2 + $0x4] sm:$0x3] %vm450, 0
        %454 = vst.msk [vmem:[#allocation2 + $0x6] sm:$0x3] %vm450, 0
        %455 = vst.msk [vmem:[#allocation2 + $0x8] sm:$0x3] %vm450, 0
        %456 = vst.msk [vmem:[#allocation2 + $0xa] sm:$0x3] %vm450, 0
        %457 = vst.msk [vmem:[#allocation2 + $0xc] sm:$0x3] %vm450, 0
        %458 = vst.msk [vmem:[#allocation2 + $0xe] sm:$0x3] %vm450, 0
        %459 = vst.msk [vmem:[#allocation2 + $0x10] sm:$0x3] %vm450, 0
        %460 = vst.msk [vmem:[#allocation2 + $0x12] sm:$0x3] %vm450, 0
        %461 = vst.msk [vmem:[#allocation3] sm:$0x3] %vm450, 0
        %462 = vst.msk [vmem:[#allocation3 + $0x2] sm:$0x3] %vm450, 0
        %463 = vst.msk [vmem:[#allocation3 + $0x4] sm:$0x3] %vm450, 0
        %464 = vst.msk [vmem:[#allocation3 + $0x6] sm:$0x3] %vm450, 0
        %465 = vst.msk [vmem:[#allocation3 + $0x8] sm:$0x3] %vm450, 0
        %466 = vst.msk [vmem:[#allocation3 + $0xa] sm:$0x3] %vm450, 0
        %467 = vst.msk [vmem:[#allocation3 + $0xc] sm:$0x3] %vm450, 0
        %468 = vst.msk [vmem:[#allocation3 + $0xe] sm:$0x3] %vm450, 0
        %469 = vst.msk [vmem:[#allocation3 + $0x10] sm:$0x3] %vm450, 0
        %470 = vst.msk [vmem:[#allocation3 + $0x12] sm:$0x3] %vm450, 0
        %471 = vst.msk [vmem:[#allocation4] sm:$0x3] %vm450, 0
        %472 = vst.msk [vmem:[#allocation4 + $0x2] sm:$0x3] %vm450, 0
        %473 = vst.msk [vmem:[#allocation4 + $0x4] sm:$0x3] %vm450, 0
        %474 = vst.msk [vmem:[#allocation4 + $0x6] sm:$0x3] %vm450, 0
        %475 = vst.msk [vmem:[#allocation4 + $0x8] sm:$0x3] %vm450, 0
        %476 = vst.msk [vmem:[#allocation4 + $0xa] sm:$0x3] %vm450, 0
        %477 = vst.msk [vmem:[#allocation4 + $0xc] sm:$0x3] %vm450, 0
        %478 = vst.msk [vmem:[#allocation4 + $0xe] sm:$0x3] %vm450, 0
        %479 = vst.msk [vmem:[#allocation4 + $0x10] sm:$0x3] %vm450, 0
        %480 = vst.msk [vmem:[#allocation4 + $0x12] sm:$0x3] %vm450, 0
        %v481 = vld [vmem:[%s384] sm:$0x1]
        %v482 = vld [vmem:[%s384 + $0x1] sm:$0x1]
        %v483 = vld [vmem:[%s384 + $0x2] sm:$0x1]
        %v484 = vld [vmem:[%s384 + $0x3] sm:$0x1]
        %v485 = vld [vmem:[#allocation10] sm:$0xf]
        %v486 = vld [vmem:[#allocation10 + $0x4] sm:$0xf]
        %v487 = vld [vmem:[#allocation10 + $0x8] sm:$0xf]
        %v488 = vld [vmem:[#allocation10 + $0xc] sm:$0xf]
        %v489 = vld [vmem:[%s3] sm:$0x1]
        %v491 = vlaneseq
        %v492 = vshrl.u32 %v491, 7
        %v493 = vsub.s32 0, %v492
        %v494 = vrot.slane %v489, %v493
        %v500 = vcombine.low %v481, %v482
        %v501 = vcombine.low %v483, %v484
        %v503 = vunpack.c.l.s4 1966171168
        %v504 = vunpack.c.0.s8 %v503
        %v505 = vlaneseq
        %v506 = vshrl.u32 %v505, 7
        %v507 = vsub.s32 %v504, %v506
        %v508 = vrot.slane %v500, %v507
        %v510 = vunpack.c.l.s4 1966171168
        %v511 = vunpack.c.0.s8 %v510
        %v512 = vlaneseq
        %v513 = vshrl.u32 %v512, 7
        %v514 = vsub.s32 %v511, %v513
        %v515 = vrot.slane %v501, %v514
        %v516 = vcombine.low %v508, %v515
        %v518 = vunpack.c.l.s4 1966171168
        %v519 = vunpack.c.0.s8 %v518
        %v520 = vlaneseq
        %v521 = vshrl.u32 %v520, 7
        %v522 = vsub.s32 %v519, %v521
        %v523 = vrot.slane %v516, %v522
        %v528 = vunpack.c.l.b16 %v485
        %v529 = vunpack.c.l.b16 %v486
        %v530 = vunpack.c.l.b16 %v487
        %v531 = vunpack.c.l.b16 %v488
        %v532 = vpack.c.b16 %v529, %v528
        %v533 = vpack.c.b16 %v531, %v530
        %vm536 = vcmask 261120
        %v538 = vsel %vm536, %v523, 0
        %540 = vmatprep.subr.bf16.mxu0 0
        %541 = vmatpush1.bf16.msra.mxu0 %v532
        %542 = vmatprep.subr.bf16.mxu0 0
        %543 = vmatpush1.bf16.msra.mxu0 %v533
        %544 = vmatprep.subr.bf16.mxu0 0
        %545 = vmatpush1.bf16.msra.mxu0 0
        %546 = vmatprep.subr.bf16.mxu0 0
        %547 = vmatpush1.bf16.msra.mxu0 0
        %548 = vmatprep.subr.bf16.mxu0 0
        %549 = vmatpush1.bf16.msra.mxu0 0
        %550 = vmatprep.subr.bf16.mxu0 0
        %551 = vmatpush1.bf16.msra.mxu0 0
        %552 = vmatprep.subr.bf16.mxu0 0
        %553 = vmatpush1.bf16.msra.mxu0 0
        %554 = vmatprep.subr.bf16.mxu0 0
        %555 = vmatpush1.bf16.msra.mxu0 0
        %556 = vmatprep.subr.bf16.mxu0 0
        %557 = vmatpush1.bf16.msra.mxu0 0
        %558 = vmatprep.subr.bf16.mxu0 0
        %559 = vmatpush1.bf16.msra.mxu0 0
        %560 = vmatprep.subr.bf16.mxu0 0
        %561 = vmatpush1.bf16.msra.mxu0 0
        %562 = vmatprep.subr.bf16.mxu0 0
        %563 = vmatpush1.bf16.msra.mxu0 0
        %564 = vmatprep.subr.bf16.mxu0 0
        %565 = vmatpush1.bf16.msra.mxu0 0
        %566 = vmatprep.subr.bf16.mxu0 0
        %567 = vmatpush1.bf16.msra.mxu0 0
        %568 = vmatprep.subr.bf16.mxu0 0
        %569 = vmatpush1.bf16.msra.mxu0 0
        %570 = vmatprep.subr.bf16.mxu0 0
        %571 = vmatpush1.bf16.msra.mxu0 0
        %572 = vmatprep.mubr.bf16.mxu0 0
        %573 = vmatmul.mubr.bf16.gmra.mrb[0].mxu0 %v538
        %v574 = vpop.f32.mrb[0].mxu0
        %v575 = vadd.f32 %v494, %v574
        %v576 = vpop.f32.mrb[0].mxu0
        %v577 = vpop.f32.mrb[0].mxu0
        %v578 = vpop.f32.mrb[0].mxu0
        %579 = vdwg.mxu0
        %v580 = vpack.c.bf16 %v575, %v575
        %v583 = vunpack.c.l.s4 1966171168
        %v584 = vunpack.c.0.s8 %v583
        %v585 = vlaneseq
        %v586 = vshrl.u32 %v585, 7
        %v587 = vsub.s32 %v584, %v586
        %v588 = vrot.slane %v580, %v587
        %v589 = vcombine.high %v588, %v588
        %v591 = vunpack.c.l.s4 1966171168
        %v592 = vunpack.c.0.s8 %v591
        %v593 = vlaneseq
        %v594 = vshrl.u32 %v593, 7
        %v595 = vsub.s32 %v592, %v594
        %v596 = vrot.slane %v588, %v595
        %v598 = vunpack.c.l.s4 1966171168
        %v599 = vunpack.c.0.s8 %v598
        %v600 = vlaneseq
        %v601 = vshrl.u32 %v600, 7
        %v602 = vsub.s32 %v599, %v601
        %v603 = vrot.slane %v589, %v602
        %v604 = vcombine.high %v596, %v596
        %v605 = vcombine.high %v603, %v603
        %v607 = vunpack.c.l.s4 1935823168
        %v608 = vunpack.c.0.s8 %v607
        %v609 = vlaneseq
        %v610 = vshrl.u32 %v609, 7
        %v611 = vsub.s32 %v608, %v610
        %v612 = vrot.slane %v596, %v611
        %v614 = vshrl.u32 %v612, 16
        %v616 = vrot.slane %v614, 7
        %v617 = vshll.u32 %v612, 16
        %v619 = vor.u32 %v616, %v617
        %s621 = scalar_lea.vmem [#allocation2], 2
        %vm622 = vcmask 254976
        %vm623 = vsmask.f32 1282
        %vm624 = vmand %vm622, %vm623
        %v625 = vld [vmem:[%s621] sm:$0x3]
        %v626 = vsel %vm624, %v619, %v625
        %627 = vst [vmem:[%s621] sm:$0x3] %v626
        %v629 = vunpack.c.l.s4 1935823168
        %v630 = vunpack.c.0.s8 %v629
        %v631 = vlaneseq
        %v632 = vshrl.u32 %v631, 7
        %v633 = vsub.s32 %v630, %v632
        %v634 = vrot.slane %v603, %v633
        %v636 = vshrl.u32 %v634, 16
        %v638 = vrot.slane %v636, 7
        %v639 = vshll.u32 %v634, 16
        %v641 = vor.u32 %v638, %v639
        %s643 = scalar_lea.vmem [#allocation2], 6
        %v644 = vld [vmem:[%s643] sm:$0x3]
        %v645 = vsel %vm624, %v641, %v644
        %646 = vst [vmem:[%s643] sm:$0x3] %v645
        %v648 = vunpack.c.l.s4 1935823168
        %v649 = vunpack.c.0.s8 %v648
        %v650 = vlaneseq
        %v651 = vshrl.u32 %v650, 7
        %v652 = vsub.s32 %v649, %v651
        %v653 = vrot.slane %v604, %v652
        %v655 = vshrl.u32 %v653, 16
        %v657 = vrot.slane %v655, 7
        %v658 = vshll.u32 %v653, 16
        %v660 = vor.u32 %v657, %v658
        %s662 = scalar_lea.vmem [#allocation2], 10
        %v663 = vld [vmem:[%s662] sm:$0x3]
        %v664 = vsel %vm624, %v660, %v663
        %665 = vst [vmem:[%s662] sm:$0x3] %v664
        %v667 = vunpack.c.l.s4 1935823168
        %v668 = vunpack.c.0.s8 %v667
        %v669 = vlaneseq
        %v670 = vshrl.u32 %v669, 7
        %v671 = vsub.s32 %v668, %v670
        %v672 = vrot.slane %v605, %v671
        %v674 = vshrl.u32 %v672, 16
        %v676 = vrot.slane %v674, 7
        %v677 = vshll.u32 %v672, 16
        %v679 = vor.u32 %v676, %v677
        %s681 = scalar_lea.vmem [#allocation2], 14
        %v682 = vld [vmem:[%s681] sm:$0x3]
        %v683 = vsel %vm624, %v679, %v682
        %684 = vst [vmem:[%s681] sm:$0x3] %v683
        %s685 = scalar_lea.vmem [#allocation10], 16
        %v686 = vld [vmem:[%s685] sm:$0xf]
        %v687 = vld [vmem:[%s685 + $0x4] sm:$0xf]
        %v688 = vld [vmem:[%s685 + $0x8] sm:$0xf]
        %v689 = vld [vmem:[%s685 + $0xc] sm:$0xf]
        %v690 = vld [vmem:[%s3] sm:$0x1]
        %v692 = vlaneseq
        %v693 = vshrl.u32 %v692, 7
        %v694 = vsub.s32 0, %v693
        %v695 = vrot.slane %v690, %v694
        %v701 = vunpack.c.l.b16 %v686
        %v702 = vunpack.c.l.b16 %v687
        %v703 = vunpack.c.l.b16 %v688
        %v704 = vunpack.c.l.b16 %v689
        %v705 = vpack.c.b16 %v702, %v701
        %v706 = vpack.c.b16 %v704, %v703
        %709 = vmatprep.subr.bf16.mxu0 0
        %710 = vmatpush1.bf16.msra.mxu0 %v705
        %711 = vmatprep.subr.bf16.mxu0 0
        %712 = vmatpush1.bf16.msra.mxu0 %v706
        %713 = vmatprep.subr.bf16.mxu0 0
        %714 = vmatpush1.bf16.msra.mxu0 0
        %715 = vmatprep.subr.bf16.mxu0 0
        %716 = vmatpush1.bf16.msra.mxu0 0
        %717 = vmatprep.subr.bf16.mxu0 0
        %718 = vmatpush1.bf16.msra.mxu0 0
        %719 = vmatprep.subr.bf16.mxu0 0
        %720 = vmatpush1.bf16.msra.mxu0 0
        %721 = vmatprep.subr.bf16.mxu0 0
        %722 = vmatpush1.bf16.msra.mxu0 0
        %723 = vmatprep.subr.bf16.mxu0 0
        %724 = vmatpush1.bf16.msra.mxu0 0
        %725 = vmatprep.subr.bf16.mxu0 0
        %726 = vmatpush1.bf16.msra.mxu0 0
        %727 = vmatprep.subr.bf16.mxu0 0
        %728 = vmatpush1.bf16.msra.mxu0 0
        %729 = vmatprep.subr.bf16.mxu0 0
        %730 = vmatpush1.bf16.msra.mxu0 0
        %731 = vmatprep.subr.bf16.mxu0 0
        %732 = vmatpush1.bf16.msra.mxu0 0
        %733 = vmatprep.subr.bf16.mxu0 0
        %734 = vmatpush1.bf16.msra.mxu0 0
        %735 = vmatprep.subr.bf16.mxu0 0
        %736 = vmatpush1.bf16.msra.mxu0 0
        %737 = vmatprep.subr.bf16.mxu0 0
        %738 = vmatpush1.bf16.msra.mxu0 0
        %739 = vmatprep.subr.bf16.mxu0 0
        %740 = vmatpush1.bf16.msra.mxu0 0
        %741 = vmatprep.mubr.bf16.mxu0 0
        %742 = vmatmul.mubr.bf16.gmra.mrb[0].mxu0 %v538
        %v743 = vpop.f32.mrb[0].mxu0
        %v744 = vadd.f32 %v695, %v743
        %v745 = vpop.f32.mrb[0].mxu0
        %v746 = vpop.f32.mrb[0].mxu0
        %v747 = vpop.f32.mrb[0].mxu0
        %748 = vdwg.mxu0
        %v749 = vpack.c.bf16 %v744, %v744
        %v752 = vunpack.c.l.s4 1966171168
        %v753 = vunpack.c.0.s8 %v752
        %v754 = vlaneseq
        %v755 = vshrl.u32 %v754, 7
        %v756 = vsub.s32 %v753, %v755
        %v757 = vrot.slane %v749, %v756
        %v758 = vcombine.high %v757, %v757
        %v760 = vunpack.c.l.s4 1966171168
        %v761 = vunpack.c.0.s8 %v760
        %v762 = vlaneseq
        %v763 = vshrl.u32 %v762, 7
        %v764 = vsub.s32 %v761, %v763
        %v765 = vrot.slane %v757, %v764
        %v767 = vunpack.c.l.s4 1966171168
        %v768 = vunpack.c.0.s8 %v767
        %v769 = vlaneseq
        %v770 = vshrl.u32 %v769, 7
        %v771 = vsub.s32 %v768, %v770
        %v772 = vrot.slane %v758, %v771
        %v773 = vcombine.high %v765, %v765
        %v774 = vcombine.high %v772, %v772
        %v776 = vunpack.c.l.s4 1935823168
        %v777 = vunpack.c.0.s8 %v776
        %v778 = vlaneseq
        %v779 = vshrl.u32 %v778, 7
        %v780 = vsub.s32 %v777, %v779
        %v781 = vrot.slane %v765, %v780
        %v783 = vshrl.u32 %v781, 16
        %v785 = vrot.slane %v783, 7
        %v786 = vshll.u32 %v781, 16
        %v788 = vor.u32 %v785, %v786
        %s790 = scalar_lea.vmem [#allocation2], 4
        %v791 = vld [vmem:[%s790] sm:$0x3]
        %v792 = vsel %vm624, %v788, %v791
        %793 = vst [vmem:[%s790] sm:$0x3] %v792
        %v795 = vunpack.c.l.s4 1935823168
        %v796 = vunpack.c.0.s8 %v795
        %v797 = vlaneseq
        %v798 = vshrl.u32 %v797, 7
        %v799 = vsub.s32 %v796, %v798
        %v800 = vrot.slane %v772, %v799
        %v802 = vshrl.u32 %v800, 16
        %v804 = vrot.slane %v802, 7
        %v805 = vshll.u32 %v800, 16
        %v807 = vor.u32 %v804, %v805
        %s809 = scalar_lea.vmem [#allocation2], 8
        %v810 = vld [vmem:[%s809] sm:$0x3]
        %v811 = vsel %vm624, %v807, %v810
        %812 = vst [vmem:[%s809] sm:$0x3] %v811
        %v814 = vunpack.c.l.s4 1935823168
        %v815 = vunpack.c.0.s8 %v814
        %v816 = vlaneseq
        %v817 = vshrl.u32 %v816, 7
        %v818 = vsub.s32 %v815, %v817
        %v819 = vrot.slane %v773, %v818
        %v821 = vshrl.u32 %v819, 16
        %v823 = vrot.slane %v821, 7
        %v824 = vshll.u32 %v819, 16
        %v826 = vor.u32 %v823, %v824
        %s828 = scalar_lea.vmem [#allocation2], 12
        %v829 = vld [vmem:[%s828] sm:$0x3]
        %v830 = vsel %vm624, %v826, %v829
        %831 = vst [vmem:[%s828] sm:$0x3] %v830
        %v833 = vunpack.c.l.s4 1935823168
        %v834 = vunpack.c.0.s8 %v833
        %v835 = vlaneseq
        %v836 = vshrl.u32 %v835, 7
        %v837 = vsub.s32 %v834, %v836
        %v838 = vrot.slane %v774, %v837
        %v840 = vshrl.u32 %v838, 16
        %v842 = vrot.slane %v840, 7
        %v843 = vshll.u32 %v838, 16
        %v845 = vor.u32 %v842, %v843
        %s847 = scalar_lea.vmem [#allocation2], 16
        %v848 = vld [vmem:[%s847] sm:$0x3]
        %v849 = vsel %vm624, %v845, %v848
        %850 = vst [vmem:[%s847] sm:$0x3] %v849
        %v851 = vld [vmem:[%s393] sm:$0x1]
        %v852 = vld [vmem:[%s393 + $0x1] sm:$0x1]
        %v853 = vld [vmem:[%s393 + $0x2] sm:$0x1]
        %v854 = vld [vmem:[%s393 + $0x3] sm:$0x1]
        %v855 = vld [vmem:[%s393 + $0x4] sm:$0x1]
        %v856 = vld [vmem:[%s393 + $0x5] sm:$0x1]
        %v857 = vld [vmem:[%s393 + $0x6] sm:$0x1]
        %v858 = vld [vmem:[%s393 + $0x7] sm:$0x1]
        %v868 = vunpack.c.l.s4 1935823168
        %v869 = vunpack.c.0.s8 %v868
        %v870 = vlaneseq
        %v871 = vshrl.u32 %v870, 7
        %v872 = vsub.s32 %v869, %v871
        %v873 = vrot.slane %v851, %v872
        %v875 = vunpack.c.l.s4 1935823168
        %v876 = vunpack.c.0.s8 %v875
        %v877 = vlaneseq
        %v878 = vshrl.u32 %v877, 7
        %v879 = vsub.s32 %v876, %v878
        %v880 = vrot.slane %v852, %v879
        %v882 = vunpack.c.l.s4 1935823168
        %v883 = vunpack.c.0.s8 %v882
        %v884 = vlaneseq
        %v885 = vshrl.u32 %v884, 7
        %v886 = vsub.s32 %v883, %v885
        %v887 = vrot.slane %v853, %v886
        %v889 = vunpack.c.l.s4 1935823168
        %v890 = vunpack.c.0.s8 %v889
        %v891 = vlaneseq
        %v892 = vshrl.u32 %v891, 7
        %v893 = vsub.s32 %v890, %v892
        %v894 = vrot.slane %v854, %v893
        %v896 = vunpack.c.l.s4 1935823168
        %v897 = vunpack.c.0.s8 %v896
        %v898 = vlaneseq
        %v899 = vshrl.u32 %v898, 7
        %v900 = vsub.s32 %v897, %v899
        %v901 = vrot.slane %v855, %v900
        %v903 = vunpack.c.l.s4 1935823168
        %v904 = vunpack.c.0.s8 %v903
        %v905 = vlaneseq
        %v906 = vshrl.u32 %v905, 7
        %v907 = vsub.s32 %v904, %v906
        %v908 = vrot.slane %v856, %v907
        %v910 = vunpack.c.l.s4 1935823168
        %v911 = vunpack.c.0.s8 %v910
        %v912 = vlaneseq
        %v913 = vshrl.u32 %v912, 7
        %v914 = vsub.s32 %v911, %v913
        %v915 = vrot.slane %v857, %v914
        %v917 = vunpack.c.l.s4 1935823168
        %v918 = vunpack.c.0.s8 %v917
        %v919 = vlaneseq
        %v920 = vshrl.u32 %v919, 7
        %v921 = vsub.s32 %v918, %v920
        %v922 = vrot.slane %v858, %v921
        %v924 = vshrl.u32 %v873, 16
        %v926 = vrot.slane %v924, 7
        %v927 = vshll.u32 %v873, 16
        %v929 = vor.u32 %v926, %v927
        %v931 = vshrl.u32 %v880, 16
        %v933 = vrot.slane %v931, 7
        %v934 = vshll.u32 %v880, 16
        %v936 = vor.u32 %v933, %v934
        %v938 = vshrl.u32 %v887, 16
        %v940 = vrot.slane %v938, 7
        %v941 = vshll.u32 %v887, 16
        %v943 = vor.u32 %v940, %v941
        %v945 = vshrl.u32 %v894, 16
        %v947 = vrot.slane %v945, 7
        %v948 = vshll.u32 %v894, 16
        %v950 = vor.u32 %v947, %v948
        %v952 = vshrl.u32 %v901, 16
        %v954 = vrot.slane %v952, 7
        %v955 = vshll.u32 %v901, 16
        %v957 = vor.u32 %v954, %v955
        %v959 = vshrl.u32 %v908, 16
        %v961 = vrot.slane %v959, 7
        %v962 = vshll.u32 %v908, 16
        %v964 = vor.u32 %v961, %v962
        %v966 = vshrl.u32 %v915, 16
        %v968 = vrot.slane %v966, 7
        %v969 = vshll.u32 %v915, 16
        %v971 = vor.u32 %v968, %v969
        %v973 = vshrl.u32 %v922, 16
        %v975 = vrot.slane %v973, 7
        %v976 = vshll.u32 %v922, 16
        %v978 = vor.u32 %v975, %v976
        %s987 = scalar_lea.vmem [#allocation3], 2
        %v988 = vld [vmem:[%s987] sm:$0x3]
        %v989 = vsel %vm624, %v929, %v988
        %990 = vst [vmem:[%s987] sm:$0x3] %v989
        %v991 = vld [vmem:[%s987 + $0x2] sm:$0x3]
        %v992 = vsel %vm624, %v936, %v991
        %993 = vst [vmem:[%s987 + $0x2] sm:$0x3] %v992
        %v994 = vld [vmem:[%s987 + $0x4] sm:$0x3]
        %v995 = vsel %vm624, %v943, %v994
        %996 = vst [vmem:[%s987 + $0x4] sm:$0x3] %v995
        %v997 = vld [vmem:[%s987 + $0x6] sm:$0x3]
        %v998 = vsel %vm624, %v950, %v997
        %999 = vst [vmem:[%s987 + $0x6] sm:$0x3] %v998
        %v1000 = vld [vmem:[%s987 + $0x8] sm:$0x3]
        %v1001 = vsel %vm624, %v957, %v1000
        %1002 = vst [vmem:[%s987 + $0x8] sm:$0x3] %v1001
        %v1003 = vld [vmem:[%s987 + $0xa] sm:$0x3]
        %v1004 = vsel %vm624, %v964, %v1003
        %1005 = vst [vmem:[%s987 + $0xa] sm:$0x3] %v1004
        %v1006 = vld [vmem:[%s987 + $0xc] sm:$0x3]
        %v1007 = vsel %vm624, %v971, %v1006
        %1008 = vst [vmem:[%s987 + $0xc] sm:$0x3] %v1007
        %v1009 = vld [vmem:[%s987 + $0xe] sm:$0x3]
        %v1010 = vsel %vm624, %v978, %v1009
        %1011 = vst [vmem:[%s987 + $0xe] sm:$0x3] %v1010
        %v1012 = vld [vmem:[#allocation2] sm:$0x3]
        %v1013 = vld [vmem:[#allocation2 + $0x2] sm:$0x3]
        %v1014 = vld [vmem:[#allocation2 + $0x4] sm:$0x3]
        %v1015 = vld [vmem:[#allocation2 + $0x6] sm:$0x3]
        %v1016 = vld [vmem:[#allocation2 + $0x8] sm:$0x3]
        %v1017 = vld [vmem:[#allocation2 + $0xa] sm:$0x3]
        %v1018 = vld [vmem:[#allocation2 + $0xc] sm:$0x3]
        %v1019 = vld [vmem:[#allocation2 + $0xe] sm:$0x3]
        %v1020 = vld [vmem:[#allocation2 + $0x10] sm:$0x3]
        %v1021 = vld [vmem:[#allocation2 + $0x12] sm:$0x3]
        %v1022 = vld [vmem:[#allocation3] sm:$0x3]
        %v1023 = vld [vmem:[#allocation3 + $0x2] sm:$0x3]
        %v1024 = vld [vmem:[#allocation3 + $0x4] sm:$0x3]
        %v1025 = vld [vmem:[#allocation3 + $0x6] sm:$0x3]
        %v1026 = vld [vmem:[#allocation3 + $0x8] sm:$0x3]
        %v1027 = vld [vmem:[#allocation3 + $0xa] sm:$0x3]
        %v1028 = vld [vmem:[#allocation3 + $0xc] sm:$0x3]
        %v1029 = vld [vmem:[#allocation3 + $0xe] sm:$0x3]
        %v1030 = vld [vmem:[#allocation3 + $0x10] sm:$0x3]
        %v1031 = vld [vmem:[#allocation3 + $0x12] sm:$0x3]
        %v1032 = vld [vmem:[#allocation11] sm:$0xf]
        %v1033 = vld [vmem:[#allocation11 + $0x4] sm:$0xf]
        %v1034 = vld [vmem:[#allocation11 + $0x8] sm:$0xf]
        %v1035 = vld [vmem:[#allocation11 + $0xc] sm:$0xf]
        %v1045 = vunpack.c.l.s4 1966171168
        %v1046 = vunpack.c.0.s8 %v1045
        %v1047 = vlaneseq
        %v1048 = vshrl.u32 %v1047, 7
        %v1049 = vsub.s32 %v1046, %v1048
        %v1050 = vrot.slane %v1012, %v1049
        %v1051 = vcombine.high %v1050, %v1050
        %v1053 = vunpack.c.l.s4 1966171168
        %v1054 = vunpack.c.0.s8 %v1053
        %v1055 = vlaneseq
        %v1056 = vshrl.u32 %v1055, 7
        %v1057 = vsub.s32 %v1054, %v1056
        %v1058 = vrot.slane %v1013, %v1057
        %v1059 = vcombine.high %v1058, %v1058
        %v1061 = vunpack.c.l.s4 1966171168
        %v1062 = vunpack.c.0.s8 %v1061
        %v1063 = vlaneseq
        %v1064 = vshrl.u32 %v1063, 7
        %v1065 = vsub.s32 %v1062, %v1064
        %v1066 = vrot.slane %v1014, %v1065
        %v1067 = vcombine.high %v1066, %v1066
        %v1069 = vunpack.c.l.s4 1966171168
        %v1070 = vunpack.c.0.s8 %v1069
        %v1071 = vlaneseq
        %v1072 = vshrl.u32 %v1071, 7
        %v1073 = vsub.s32 %v1070, %v1072
        %v1074 = vrot.slane %v1015, %v1073
        %v1075 = vcombine.high %v1074, %v1074
        %v1077 = vunpack.c.l.s4 1966171168
        %v1078 = vunpack.c.0.s8 %v1077
        %v1079 = vlaneseq
        %v1080 = vshrl.u32 %v1079, 7
        %v1081 = vsub.s32 %v1078, %v1080
        %v1082 = vrot.slane %v1016, %v1081
        %v1083 = vcombine.high %v1082, %v1082
        %v1085 = vunpack.c.l.s4 1966171168
        %v1086 = vunpack.c.0.s8 %v1085
        %v1087 = vlaneseq
        %v1088 = vshrl.u32 %v1087, 7
        %v1089 = vsub.s32 %v1086, %v1088
        %v1090 = vrot.slane %v1017, %v1089
        %v1091 = vcombine.high %v1090, %v1090
        %v1093 = vunpack.c.l.s4 1966171168
        %v1094 = vunpack.c.0.s8 %v1093
        %v1095 = vlaneseq
        %v1096 = vshrl.u32 %v1095, 7
        %v1097 = vsub.s32 %v1094, %v1096
        %v1098 = vrot.slane %v1018, %v1097
        %v1099 = vcombine.high %v1098, %v1098
        %v1101 = vunpack.c.l.s4 1966171168
        %v1102 = vunpack.c.0.s8 %v1101
        %v1103 = vlaneseq
        %v1104 = vshrl.u32 %v1103, 7
        %v1105 = vsub.s32 %v1102, %v1104
        %v1106 = vrot.slane %v1019, %v1105
        %v1107 = vcombine.high %v1106, %v1106
        %vm1108 = vsmask.f32 256
        %vm1109 = vsmask.f32 1284
        %vm1110 = vmor %vm1108, %vm1109
        %vm1111 = vsmask.f32 2312
        %vm1112 = vmor %vm1110, %vm1111
        %vm1113 = vsmask.f32 3340
        %vm1114 = vmor %vm1112, %vm1113
        %vm1115 = vsmask.f32 4368
        %vm1116 = vmor %vm1114, %vm1115
        %vm1117 = vsmask.f32 5396
        %vm1118 = vmor %vm1116, %vm1117
        %vm1119 = vsmask.f32 6424
        %vm1120 = vmor %vm1118, %vm1119
        %vm1121 = vsmask.f32 7452
        %vm1122 = vmor %vm1120, %vm1121
        %v1124 = vshrl.u32 %v1050, 16
        %v1126 = vrot.slane %v1124, 7
        %v1127 = vrot.slane %v1126, 1
        %v1129 = vshll.u32 %v1051, 16
        %v1131 = vsel %vm1122, %v1127, %v1129
        %v1133 = vshrl.u32 %v1058, 16
        %v1135 = vrot.slane %v1133, 7
        %v1136 = vrot.slane %v1135, 1
        %v1138 = vshll.u32 %v1059, 16
        %v1140 = vsel %vm1122, %v1136, %v1138
        %v1142 = vshrl.u32 %v1066, 16
        %v1144 = vrot.slane %v1142, 7
        %v1145 = vrot.slane %v1144, 1
        %v1147 = vshll.u32 %v1067, 16
        %v1149 = vsel %vm1122, %v1145, %v1147
        %v1151 = vshrl.u32 %v1074, 16
        %v1153 = vrot.slane %v1151, 7
        %v1154 = vrot.slane %v1153, 1
        %v1156 = vshll.u32 %v1075, 16
        %v1158 = vsel %vm1122, %v1154, %v1156
        %v1160 = vshrl.u32 %v1082, 16
        %v1162 = vrot.slane %v1160, 7
        %v1163 = vrot.slane %v1162, 1
        %v1165 = vshll.u32 %v1083, 16
        %v1167 = vsel %vm1122, %v1163, %v1165
        %v1169 = vshrl.u32 %v1090, 16
        %v1171 = vrot.slane %v1169, 7
        %v1172 = vrot.slane %v1171, 1
        %v1174 = vshll.u32 %v1091, 16
        %v1176 = vsel %vm1122, %v1172, %v1174
        %v1178 = vshrl.u32 %v1098, 16
        %v1180 = vrot.slane %v1178, 7
        %v1181 = vrot.slane %v1180, 1
        %v1183 = vshll.u32 %v1099, 16
        %v1185 = vsel %vm1122, %v1181, %v1183
        %v1187 = vshrl.u32 %v1106, 16
        %v1189 = vrot.slane %v1187, 7
        %v1190 = vrot.slane %v1189, 1
        %v1192 = vshll.u32 %v1107, 16
        %v1194 = vsel %vm1122, %v1190, %v1192
        %s1195 = scalar_lea.vmem [#allocation11], 16
        %v1196 = vld [vmem:[%s1195] sm:$0xf]
        %v1197 = vld [vmem:[%s1195 + $0x4] sm:$0xf]
        %v1198 = vld [vmem:[%s1195 + $0x8] sm:$0xf]
        %v1199 = vld [vmem:[%s1195 + $0xc] sm:$0xf]
        %v1200 = vcombine.low %v1131, %v1140
        %v1201 = vcombine.low %v1149, %v1158
        %v1202 = vcombine.low %v1167, %v1176
        %v1203 = vcombine.low %v1185, %v1194
        %v1205 = vunpack.c.l.s4 1966171168
        %v1206 = vunpack.c.0.s8 %v1205
        %v1207 = vlaneseq
        %v1208 = vshrl.u32 %v1207, 7
        %v1209 = vsub.s32 %v1206, %v1208
        %v1210 = vrot.slane %v1200, %v1209
        %v1212 = vunpack.c.l.s4 1966171168
        %v1213 = vunpack.c.0.s8 %v1212
        %v1214 = vlaneseq
        %v1215 = vshrl.u32 %v1214, 7
        %v1216 = vsub.s32 %v1213, %v1215
        %v1217 = vrot.slane %v1201, %v1216
        %v1219 = vunpack.c.l.s4 1966171168
        %v1220 = vunpack.c.0.s8 %v1219
        %v1221 = vlaneseq
        %v1222 = vshrl.u32 %v1221, 7
        %v1223 = vsub.s32 %v1220, %v1222
        %v1224 = vrot.slane %v1202, %v1223
        %v1226 = vunpack.c.l.s4 1966171168
        %v1227 = vunpack.c.0.s8 %v1226
        %v1228 = vlaneseq
        %v1229 = vshrl.u32 %v1228, 7
        %v1230 = vsub.s32 %v1227, %v1229
        %v1231 = vrot.slane %v1203, %v1230
        %v1232 = vcombine.low %v1210, %v1217
        %v1233 = vcombine.low %v1224, %v1231
        %v1235 = vunpack.c.l.s4 1966171168
        %v1236 = vunpack.c.0.s8 %v1235
        %v1237 = vlaneseq
        %v1238 = vshrl.u32 %v1237, 7
        %v1239 = vsub.s32 %v1236, %v1238
        %v1240 = vrot.slane %v1232, %v1239
        %v1242 = vunpack.c.l.s4 1966171168
        %v1243 = vunpack.c.0.s8 %v1242
        %v1244 = vlaneseq
        %v1245 = vshrl.u32 %v1244, 7
        %v1246 = vsub.s32 %v1243, %v1245
        %v1247 = vrot.slane %v1233, %v1246
        %v1248 = vcombine.low %v1240, %v1247
        %v1253 = vunpack.c.l.b16 %v1196
        %v1254 = vunpack.c.l.b16 %v1197
        %v1255 = vunpack.c.l.b16 %v1198
        %v1256 = vunpack.c.l.b16 %v1199
        %v1257 = vpack.c.b16 %v1254, %v1253
        %v1258 = vpack.c.b16 %v1256, %v1255
        %v1262 = vsel %vm536, %v1248, 0
        %1264 = vmatprep.subr.bf16.mxu0 0
        %1265 = vmatpush1.bf16.msra.mxu0 %v1257
        %1266 = vmatprep.subr.bf16.mxu0 0
        %1267 = vmatpush1.bf16.msra.mxu0 %v1258
        %1268 = vmatprep.subr.bf16.mxu0 0
        %1269 = vmatpush1.bf16.msra.mxu0 0
        %1270 = vmatprep.subr.bf16.mxu0 0
        %1271 = vmatpush1.bf16.msra.mxu0 0
        %1272 = vmatprep.subr.bf16.mxu0 0
        %1273 = vmatpush1.bf16.msra.mxu0 0
        %1274 = vmatprep.subr.bf16.mxu0 0
        %1275 = vmatpush1.bf16.msra.mxu0 0
        %1276 = vmatprep.subr.bf16.mxu0 0
        %1277 = vmatpush1.bf16.msra.mxu0 0
        %1278 = vmatprep.subr.bf16.mxu0 0
        %1279 = vmatpush1.bf16.msra.mxu0 0
        %1280 = vmatprep.subr.bf16.mxu0 0
        %1281 = vmatpush1.bf16.msra.mxu0 0
        %1282 = vmatprep.subr.bf16.mxu0 0
        %1283 = vmatpush1.bf16.msra.mxu0 0
        %1284 = vmatprep.subr.bf16.mxu0 0
        %1285 = vmatpush1.bf16.msra.mxu0 0
        %1286 = vmatprep.subr.bf16.mxu0 0
        %1287 = vmatpush1.bf16.msra.mxu0 0
        %1288 = vmatprep.subr.bf16.mxu0 0
        %1289 = vmatpush1.bf16.msra.mxu0 0
        %1290 = vmatprep.subr.bf16.mxu0 0
        %1291 = vmatpush1.bf16.msra.mxu0 0
        %1292 = vmatprep.subr.bf16.mxu0 0
        %1293 = vmatpush1.bf16.msra.mxu0 0
        %1294 = vmatprep.subr.bf16.mxu0 0
        %1295 = vmatpush1.bf16.msra.mxu0 0
        %1296 = vmatprep.mubr.bf16.mxu0 0
        %1297 = vmatmul.mubr.bf16.gmra.mrb[0].mxu0 %v1262
        %v1298 = vpop.f32.mrb[0].mxu0
        %v1299 = vadd.f32 0.0, %v1298
        %v1300 = vpop.f32.mrb[0].mxu0
        %v1301 = vpop.f32.mrb[0].mxu0
        %v1302 = vadd.f32 0.0, %v1301
        %v1303 = vpop.f32.mrb[0].mxu0
        %1304 = vdwg.mxu0
        %v1305 = vcombine.low %v1012, %v1013
        %v1306 = vcombine.low %v1014, %v1015
        %v1307 = vcombine.low %v1016, %v1017
        %v1308 = vcombine.low %v1018, %v1019
        %v1310 = vunpack.c.l.s4 1966171168
        %v1311 = vunpack.c.0.s8 %v1310
        %v1312 = vlaneseq
        %v1313 = vshrl.u32 %v1312, 7
        %v1314 = vsub.s32 %v1311, %v1313
        %v1315 = vrot.slane %v1305, %v1314
        %v1317 = vunpack.c.l.s4 1966171168
        %v1318 = vunpack.c.0.s8 %v1317
        %v1319 = vlaneseq
        %v1320 = vshrl.u32 %v1319, 7
        %v1321 = vsub.s32 %v1318, %v1320
        %v1322 = vrot.slane %v1306, %v1321
        %v1324 = vunpack.c.l.s4 1966171168
        %v1325 = vunpack.c.0.s8 %v1324
        %v1326 = vlaneseq
        %v1327 = vshrl.u32 %v1326, 7
        %v1328 = vsub.s32 %v1325, %v1327
        %v1329 = vrot.slane %v1307, %v1328
        %v1331 = vunpack.c.l.s4 1966171168
        %v1332 = vunpack.c.0.s8 %v1331
        %v1333 = vlaneseq
        %v1334 = vshrl.u32 %v1333, 7
        %v1335 = vsub.s32 %v1332, %v1334
        %v1336 = vrot.slane %v1308, %v1335
        %v1337 = vcombine.low %v1315, %v1322
        %v1338 = vcombine.low %v1329, %v1336
        %v1340 = vunpack.c.l.s4 1966171168
        %v1341 = vunpack.c.0.s8 %v1340
        %v1342 = vlaneseq
        %v1343 = vshrl.u32 %v1342, 7
        %v1344 = vsub.s32 %v1341, %v1343
        %v1345 = vrot.slane %v1337, %v1344
        %v1347 = vunpack.c.l.s4 1966171168
        %v1348 = vunpack.c.0.s8 %v1347
        %v1349 = vlaneseq
        %v1350 = vshrl.u32 %v1349, 7
        %v1351 = vsub.s32 %v1348, %v1350
        %v1352 = vrot.slane %v1338, %v1351
        %v1353 = vcombine.low %v1345, %v1352
        %v1358 = vunpack.c.l.b16 %v1032
        %v1359 = vunpack.c.l.b16 %v1033
        %v1360 = vunpack.c.l.b16 %v1034
        %v1361 = vunpack.c.l.b16 %v1035
        %v1362 = vpack.c.b16 %v1359, %v1358
        %v1363 = vpack.c.b16 %v1361, %v1360
        %v1367 = vsel %vm536, %v1353, 0
        %1369 = vmatprep.subr.bf16.mxu0 0
        %1370 = vmatpush1.bf16.msra.mxu0 %v1362
        %1371 = vmatprep.subr.bf16.mxu0 0
        %1372 = vmatpush1.bf16.msra.mxu0 %v1363
        %1373 = vmatprep.subr.bf16.mxu0 0
        %1374 = vmatpush1.bf16.msra.mxu0 0
        %1375 = vmatprep.subr.bf16.mxu0 0
        %1376 = vmatpush1.bf16.msra.mxu0 0
        %1377 = vmatprep.subr.bf16.mxu0 0
        %1378 = vmatpush1.bf16.msra.mxu0 0
        %1379 = vmatprep.subr.bf16.mxu0 0
        %1380 = vmatpush1.bf16.msra.mxu0 0
        %1381 = vmatprep.subr.bf16.mxu0 0
        %1382 = vmatpush1.bf16.msra.mxu0 0
        %1383 = vmatprep.subr.bf16.mxu0 0
        %1384 = vmatpush1.bf16.msra.mxu0 0
        %1385 = vmatprep.subr.bf16.mxu0 0
        %1386 = vmatpush1.bf16.msra.mxu0 0
        %1387 = vmatprep.subr.bf16.mxu0 0
        %1388 = vmatpush1.bf16.msra.mxu0 0
        %1389 = vmatprep.subr.bf16.mxu0 0
        %1390 = vmatpush1.bf16.msra.mxu0 0
        %1391 = vmatprep.subr.bf16.mxu0 0
        %1392 = vmatpush1.bf16.msra.mxu0 0
        %1393 = vmatprep.subr.bf16.mxu0 0
        %1394 = vmatpush1.bf16.msra.mxu0 0
        %1395 = vmatprep.subr.bf16.mxu0 0
        %1396 = vmatpush1.bf16.msra.mxu0 0
        %1397 = vmatprep.subr.bf16.mxu0 0
        %1398 = vmatpush1.bf16.msra.mxu0 0
        %1399 = vmatprep.subr.bf16.mxu0 0
        %1400 = vmatpush1.bf16.msra.mxu0 0
        %1401 = vmatprep.mubr.bf16.mxu0 0
        %1402 = vmatmul.mubr.bf16.gmra.mrb[0].mxu0 %v1367
        %v1403 = vpop.f32.mrb[0].mxu0
        %v1404 = vadd.f32 %v1299, %v1403
        %v1405 = vpop.f32.mrb[0].mxu0
        %v1406 = vpop.f32.mrb[0].mxu0
        %v1407 = vadd.f32 %v1302, %v1406
        %v1408 = vpop.f32.mrb[0].mxu0
        %1409 = vdwg.mxu0
        %s1410 = scalar_lea.vmem [#allocation11], 32
        %v1411 = vld [vmem:[%s1410] sm:$0xf]
        %v1412 = vld [vmem:[%s1410 + $0x4] sm:$0xf]
        %v1413 = vld [vmem:[%s1410 + $0x8] sm:$0xf]
        %v1414 = vld [vmem:[%s1410 + $0xc] sm:$0xf]
        %v1415 = vcombine.low %v1051, %v1059
        %v1416 = vcombine.low %v1067, %v1075
        %v1417 = vcombine.low %v1083, %v1091
        %v1418 = vcombine.low %v1099, %v1107
        %v1420 = vunpack.c.l.s4 1966171168
        %v1421 = vunpack.c.0.s8 %v1420
        %v1422 = vlaneseq
        %v1423 = vshrl.u32 %v1422, 7
        %v1424 = vsub.s32 %v1421, %v1423
        %v1425 = vrot.slane %v1415, %v1424
        %v1427 = vunpack.c.l.s4 1966171168
        %v1428 = vunpack.c.0.s8 %v1427
        %v1429 = vlaneseq
        %v1430 = vshrl.u32 %v1429, 7
        %v1431 = vsub.s32 %v1428, %v1430
        %v1432 = vrot.slane %v1416, %v1431
        %v1434 = vunpack.c.l.s4 1966171168
        %v1435 = vunpack.c.0.s8 %v1434
        %v1436 = vlaneseq
        %v1437 = vshrl.u32 %v1436, 7
        %v1438 = vsub.s32 %v1435, %v1437
        %v1439 = vrot.slane %v1417, %v1438
        %v1441 = vunpack.c.l.s4 1966171168
        %v1442 = vunpack.c.0.s8 %v1441
        %v1443 = vlaneseq
        %v1444 = vshrl.u32 %v1443, 7
        %v1445 = vsub.s32 %v1442, %v1444
        %v1446 = vrot.slane %v1418, %v1445
        %v1447 = vcombine.low %v1425, %v1432
        %v1448 = vcombine.low %v1439, %v1446
        %v1450 = vunpack.c.l.s4 1966171168
        %v1451 = vunpack.c.0.s8 %v1450
        %v1452 = vlaneseq
        %v1453 = vshrl.u32 %v1452, 7
        %v1454 = vsub.s32 %v1451, %v1453
        %v1455 = vrot.slane %v1447, %v1454
        %v1457 = vunpack.c.l.s4 1966171168
        %v1458 = vunpack.c.0.s8 %v1457
        %v1459 = vlaneseq
        %v1460 = vshrl.u32 %v1459, 7
        %v1461 = vsub.s32 %v1458, %v1460
        %v1462 = vrot.slane %v1448, %v1461
        %v1463 = vcombine.low %v1455, %v1462
        %v1468 = vunpack.c.l.b16 %v1411
        %v1469 = vunpack.c.l.b16 %v1412
        %v1470 = vunpack.c.l.b16 %v1413
        %v1471 = vunpack.c.l.b16 %v1414
        %v1472 = vpack.c.b16 %v1469, %v1468
        %v1473 = vpack.c.b16 %v1471, %v1470
        %v1477 = vsel %vm536, %v1463, 0
        %1479 = vmatprep.subr.bf16.mxu0 0
        %1480 = vmatpush1.bf16.msra.mxu0 %v1472
        %1481 = vmatprep.subr.bf16.mxu0 0
        %1482 = vmatpush1.bf16.msra.mxu0 %v1473
        %1483 = vmatprep.subr.bf16.mxu0 0
        %1484 = vmatpush1.bf16.msra.mxu0 0
        %1485 = vmatprep.subr.bf16.mxu0 0
        %1486 = vmatpush1.bf16.msra.mxu0 0
        %1487 = vmatprep.subr.bf16.mxu0 0
        %1488 = vmatpush1.bf16.msra.mxu0 0
        %1489 = vmatprep.subr.bf16.mxu0 0
        %1490 = vmatpush1.bf16.msra.mxu0 0
        %1491 = vmatprep.subr.bf16.mxu0 0
        %1492 = vmatpush1.bf16.msra.mxu0 0
        %1493 = vmatprep.subr.bf16.mxu0 0
        %1494 = vmatpush1.bf16.msra.mxu0 0
        %1495 = vmatprep.subr.bf16.mxu0 0
        %1496 = vmatpush1.bf16.msra.mxu0 0
        %1497 = vmatprep.subr.bf16.mxu0 0
        %1498 = vmatpush1.bf16.msra.mxu0 0
        %1499 = vmatprep.subr.bf16.mxu0 0
        %1500 = vmatpush1.bf16.msra.mxu0 0
        %1501 = vmatprep.subr.bf16.mxu0 0
        %1502 = vmatpush1.bf16.msra.mxu0 0
        %1503 = vmatprep.subr.bf16.mxu0 0
        %1504 = vmatpush1.bf16.msra.mxu0 0
        %1505 = vmatprep.subr.bf16.mxu0 0
        %1506 = vmatpush1.bf16.msra.mxu0 0
        %1507 = vmatprep.subr.bf16.mxu0 0
        %1508 = vmatpush1.bf16.msra.mxu0 0
        %1509 = vmatprep.subr.bf16.mxu0 0
        %1510 = vmatpush1.bf16.msra.mxu0 0
        %1511 = vmatprep.mubr.bf16.mxu0 0
        %1512 = vmatmul.mubr.bf16.gmra.mrb[0].mxu0 %v1477
        %v1513 = vpop.f32.mrb[0].mxu0
        %v1514 = vadd.f32 0.0, %v1513
        %v1515 = vpop.f32.mrb[0].mxu0
        %v1516 = vpop.f32.mrb[0].mxu0
        %v1517 = vadd.f32 0.0, %v1516
        %v1518 = vpop.f32.mrb[0].mxu0
        %1519 = vdwg.mxu0
        %v1520 = vadd.f32 %v1404, %v1514
        %v1521 = vadd.f32 %v1407, %v1517
        %s1522 = scalar_lea.vmem [#allocation11], 48
        %v1523 = vld [vmem:[%s1522] sm:$0xf]
        %v1524 = vld [vmem:[%s1522 + $0x4] sm:$0xf]
        %v1525 = vld [vmem:[%s1522 + $0x8] sm:$0xf]
        %v1526 = vld [vmem:[%s1522 + $0xc] sm:$0xf]
        %v1528 = vcombine.low %v1013, %v1014
        %v1529 = vcombine.low %v1015, %v1016
        %v1530 = vcombine.low %v1017, %v1018
        %v1531 = vcombine.low %v1019, %v1020
        %v1533 = vunpack.c.l.s4 1966171168
        %v1534 = vunpack.c.0.s8 %v1533
        %v1535 = vlaneseq
        %v1536 = vshrl.u32 %v1535, 7
        %v1537 = vsub.s32 %v1534, %v1536
        %v1538 = vrot.slane %v1528, %v1537
        %v1540 = vunpack.c.l.s4 1966171168
        %v1541 = vunpack.c.0.s8 %v1540
        %v1542 = vlaneseq
        %v1543 = vshrl.u32 %v1542, 7
        %v1544 = vsub.s32 %v1541, %v1543
        %v1545 = vrot.slane %v1529, %v1544
        %v1547 = vunpack.c.l.s4 1966171168
        %v1548 = vunpack.c.0.s8 %v1547
        %v1549 = vlaneseq
        %v1550 = vshrl.u32 %v1549, 7
        %v1551 = vsub.s32 %v1548, %v1550
        %v1552 = vrot.slane %v1530, %v1551
        %v1554 = vunpack.c.l.s4 1966171168
        %v1555 = vunpack.c.0.s8 %v1554
        %v1556 = vlaneseq
        %v1557 = vshrl.u32 %v1556, 7
        %v1558 = vsub.s32 %v1555, %v1557
        %v1559 = vrot.slane %v1531, %v1558
        %v1560 = vcombine.low %v1538, %v1545
        %v1561 = vcombine.low %v1552, %v1559
        %v1563 = vunpack.c.l.s4 1966171168
        %v1564 = vunpack.c.0.s8 %v1563
        %v1565 = vlaneseq
        %v1566 = vshrl.u32 %v1565, 7
        %v1567 = vsub.s32 %v1564, %v1566
        %v1568 = vrot.slane %v1560, %v1567
        %v1570 = vunpack.c.l.s4 1966171168
        %v1571 = vunpack.c.0.s8 %v1570
        %v1572 = vlaneseq
        %v1573 = vshrl.u32 %v1572, 7
        %v1574 = vsub.s32 %v1571, %v1573
        %v1575 = vrot.slane %v1561, %v1574
        %v1576 = vcombine.low %v1568, %v1575
        %v1581 = vunpack.c.l.b16 %v1523
        %v1582 = vunpack.c.l.b16 %v1524
        %v1583 = vunpack.c.l.b16 %v1525
        %v1584 = vunpack.c.l.b16 %v1526
        %v1585 = vpack.c.b16 %v1582, %v1581
        %v1586 = vpack.c.b16 %v1584, %v1583
        %v1590 = vsel %vm536, %v1576, 0
        %1592 = vmatprep.subr.bf16.mxu0 0
        %1593 = vmatpush1.bf16.msra.mxu0 %v1585
        %1594 = vmatprep.subr.bf16.mxu0 0
        %1595 = vmatpush1.bf16.msra.mxu0 %v1586
        %1596 = vmatprep.subr.bf16.mxu0 0
        %1597 = vmatpush1.bf16.msra.mxu0 0
        %1598 = vmatprep.subr.bf16.mxu0 0
        %1599 = vmatpush1.bf16.msra.mxu0 0
        %1600 = vmatprep.subr.bf16.mxu0 0
        %1601 = vmatpush1.bf16.msra.mxu0 0
        %1602 = vmatprep.subr.bf16.mxu0 0
        %1603 = vmatpush1.bf16.msra.mxu0 0
        %1604 = vmatprep.subr.bf16.mxu0 0
        %1605 = vmatpush1.bf16.msra.mxu0 0
        %1606 = vmatprep.subr.bf16.mxu0 0
        %1607 = vmatpush1.bf16.msra.mxu0 0
        %1608 = vmatprep.subr.bf16.mxu0 0
        %1609 = vmatpush1.bf16.msra.mxu0 0
        %1610 = vmatprep.subr.bf16.mxu0 0
        %1611 = vmatpush1.bf16.msra.mxu0 0
        %1612 = vmatprep.subr.bf16.mxu0 0
        %1613 = vmatpush1.bf16.msra.mxu0 0
        %1614 = vmatprep.subr.bf16.mxu0 0
        %1615 = vmatpush1.bf16.msra.mxu0 0
        %1616 = vmatprep.subr.bf16.mxu0 0
        %1617 = vmatpush1.bf16.msra.mxu0 0
        %1618 = vmatprep.subr.bf16.mxu0 0
        %1619 = vmatpush1.bf16.msra.mxu0 0
        %1620 = vmatprep.subr.bf16.mxu0 0
        %1621 = vmatpush1.bf16.msra.mxu0 0
        %1622 = vmatprep.subr.bf16.mxu0 0
        %1623 = vmatpush1.bf16.msra.mxu0 0
        %1624 = vmatprep.mubr.bf16.mxu0 0
        %1625 = vmatmul.mubr.bf16.gmra.mrb[0].mxu0 %v1590
        %v1626 = vpop.f32.mrb[0].mxu0
        %v1627 = vadd.f32 0.0, %v1626
        %v1628 = vpop.f32.mrb[0].mxu0
        %v1629 = vpop.f32.mrb[0].mxu0
        %v1630 = vadd.f32 0.0, %v1629
        %v1631 = vpop.f32.mrb[0].mxu0
        %1632 = vdwg.mxu0
        %v1633 = vadd.f32 %v1520, %v1627
        %v1634 = vadd.f32 %v1521, %v1630
        %v1636 = vunpack.c.l.s4 1966171168
        %v1637 = vunpack.c.0.s8 %v1636
        %v1638 = vlaneseq
        %v1639 = vshrl.u32 %v1638, 7
        %v1640 = vsub.s32 %v1637, %v1639
        %v1641 = vrot.slane %v1020, %v1640
        %v1642 = vcombine.high %v1641, %v1641
        %v1644 = vshrl.u32 %v1641, 16
        %v1646 = vrot.slane %v1644, 7
        %v1647 = vrot.slane %v1646, 1
        %v1649 = vshll.u32 %v1642, 16
        %v1651 = vsel %vm1122, %v1647, %v1649
        %s1652 = scalar_lea.vmem [#allocation11], 64
        %v1653 = vld [vmem:[%s1652] sm:$0xf]
        %v1654 = vld [vmem:[%s1652 + $0x4] sm:$0xf]
        %v1655 = vld [vmem:[%s1652 + $0x8] sm:$0xf]
        %v1656 = vld [vmem:[%s1652 + $0xc] sm:$0xf]
        %v1657 = vcombine.low %v1140, %v1149
        %v1658 = vcombine.low %v1158, %v1167
        %v1659 = vcombine.low %v1176, %v1185
        %v1660 = vcombine.low %v1194, %v1651
        %v1662 = vunpack.c.l.s4 1966171168
        %v1663 = vunpack.c.0.s8 %v1662
        %v1664 = vlaneseq
        %v1665 = vshrl.u32 %v1664, 7
        %v1666 = vsub.s32 %v1663, %v1665
        %v1667 = vrot.slane %v1657, %v1666
        %v1669 = vunpack.c.l.s4 1966171168
        %v1670 = vunpack.c.0.s8 %v1669
        %v1671 = vlaneseq
        %v1672 = vshrl.u32 %v1671, 7
        %v1673 = vsub.s32 %v1670, %v1672
        %v1674 = vrot.slane %v1658, %v1673
        %v1676 = vunpack.c.l.s4 1966171168
        %v1677 = vunpack.c.0.s8 %v1676
        %v1678 = vlaneseq
        %v1679 = vshrl.u32 %v1678, 7
        %v1680 = vsub.s32 %v1677, %v1679
        %v1681 = vrot.slane %v1659, %v1680
        %v1683 = vunpack.c.l.s4 1966171168
        %v1684 = vunpack.c.0.s8 %v1683
        %v1685 = vlaneseq
        %v1686 = vshrl.u32 %v1685, 7
        %v1687 = vsub.s32 %v1684, %v1686
        %v1688 = vrot.slane %v1660, %v1687
        %v1689 = vcombine.low %v1667, %v1674
        %v1690 = vcombine.low %v1681, %v1688
        %v1692 = vunpack.c.l.s4 1966171168
        %v1693 = vunpack.c.0.s8 %v1692
        %v1694 = vlaneseq
        %v1695 = vshrl.u32 %v1694, 7
        %v1696 = vsub.s32 %v1693, %v1695
        %v1697 = vrot.slane %v1689, %v1696
        %v1699 = vunpack.c.l.s4 1966171168
        %v1700 = vunpack.c.0.s8 %v1699
        %v1701 = vlaneseq
        %v1702 = vshrl.u32 %v1701, 7
        %v1703 = vsub.s32 %v1700, %v1702
        %v1704 = vrot.slane %v1690, %v1703
        %v1705 = vcombine.low %v1697, %v1704
        %v1710 = vunpack.c.l.b16 %v1653
        %v1711 = vunpack.c.l.b16 %v1654
        %v1712 = vunpack.c.l.b16 %v1655
        %v1713 = vunpack.c.l.b16 %v1656
        %v1714 = vpack.c.b16 %v1711, %v1710
        %v1715 = vpack.c.b16 %v1713, %v1712
        %v1719 = vsel %vm536, %v1705, 0
        %1721 = vmatprep.subr.bf16.mxu0 0
        %1722 = vmatpush1.bf16.msra.mxu0 %v1714
        %1723 = vmatprep.subr.bf16.mxu0 0
        %1724 = vmatpush1.bf16.msra.mxu0 %v1715
        %1725 = vmatprep.subr.bf16.mxu0 0
        %1726 = vmatpush1.bf16.msra.mxu0 0
        %1727 = vmatprep.subr.bf16.mxu0 0
        %1728 = vmatpush1.bf16.msra.mxu0 0
        %1729 = vmatprep.subr.bf16.mxu0 0
        %1730 = vmatpush1.bf16.msra.mxu0 0
        %1731 = vmatprep.subr.bf16.mxu0 0
        %1732 = vmatpush1.bf16.msra.mxu0 0
        %1733 = vmatprep.subr.bf16.mxu0 0
        %1734 = vmatpush1.bf16.msra.mxu0 0
        %1735 = vmatprep.subr.bf16.mxu0 0
        %1736 = vmatpush1.bf16.msra.mxu0 0
        %1737 = vmatprep.subr.bf16.mxu0 0
        %1738 = vmatpush1.bf16.msra.mxu0 0
        %1739 = vmatprep.subr.bf16.mxu0 0
        %1740 = vmatpush1.bf16.msra.mxu0 0
        %1741 = vmatprep.subr.bf16.mxu0 0
        %1742 = vmatpush1.bf16.msra.mxu0 0
        %1743 = vmatprep.subr.bf16.mxu0 0
        %1744 = vmatpush1.bf16.msra.mxu0 0
        %1745 = vmatprep.subr.bf16.mxu0 0
        %1746 = vmatpush1.bf16.msra.mxu0 0
        %1747 = vmatprep.subr.bf16.mxu0 0
        %1748 = vmatpush1.bf16.msra.mxu0 0
        %1749 = vmatprep.subr.bf16.mxu0 0
        %1750 = vmatpush1.bf16.msra.mxu0 0
        %1751 = vmatprep.subr.bf16.mxu0 0
        %1752 = vmatpush1.bf16.msra.mxu0 0
        %1753 = vmatprep.mubr.bf16.mxu0 0
        %1754 = vmatmul.mubr.bf16.gmra.mrb[0].mxu0 %v1719
        %v1755 = vpop.f32.mrb[0].mxu0
        %v1756 = vadd.f32 0.0, %v1755
        %v1757 = vpop.f32.mrb[0].mxu0
        %v1758 = vpop.f32.mrb[0].mxu0
        %v1759 = vadd.f32 0.0, %v1758
        %v1760 = vpop.f32.mrb[0].mxu0
        %1761 = vdwg.mxu0
        %v1762 = vadd.f32 %v1633, %v1756
        %v1763 = vadd.f32 %v1634, %v1759
        %s1764 = scalar_lea.vmem [#allocation11], 80
        %v1765 = vld [vmem:[%s1764] sm:$0xf]
        %v1766 = vld [vmem:[%s1764 + $0x4] sm:$0xf]
        %v1767 = vld [vmem:[%s1764 + $0x8] sm:$0xf]
        %v1768 = vld [vmem:[%s1764 + $0xc] sm:$0xf]
        %v1769 = vcombine.low %v1059, %v1067
        %v1770 = vcombine.low %v1075, %v1083
        %v1771 = vcombine.low %v1091, %v1099
        %v1772 = vcombine.low %v1107, %v1642
        %v1774 = vunpack.c.l.s4 1966171168
        %v1775 = vunpack.c.0.s8 %v1774
        %v1776 = vlaneseq
        %v1777 = vshrl.u32 %v1776, 7
        %v1778 = vsub.s32 %v1775, %v1777
        %v1779 = vrot.slane %v1769, %v1778
        %v1781 = vunpack.c.l.s4 1966171168
        %v1782 = vunpack.c.0.s8 %v1781
        %v1783 = vlaneseq
        %v1784 = vshrl.u32 %v1783, 7
        %v1785 = vsub.s32 %v1782, %v1784
        %v1786 = vrot.slane %v1770, %v1785
        %v1788 = vunpack.c.l.s4 1966171168
        %v1789 = vunpack.c.0.s8 %v1788
        %v1790 = vlaneseq
        %v1791 = vshrl.u32 %v1790, 7
        %v1792 = vsub.s32 %v1789, %v1791
        %v1793 = vrot.slane %v1771, %v1792
        %v1795 = vunpack.c.l.s4 1966171168
        %v1796 = vunpack.c.0.s8 %v1795
        %v1797 = vlaneseq
        %v1798 = vshrl.u32 %v1797, 7
        %v1799 = vsub.s32 %v1796, %v1798
        %v1800 = vrot.slane %v1772, %v1799
        %v1801 = vcombine.low %v1779, %v1786
        %v1802 = vcombine.low %v1793, %v1800
        %v1804 = vunpack.c.l.s4 1966171168
        %v1805 = vunpack.c.0.s8 %v1804
        %v1806 = vlaneseq
        %v1807 = vshrl.u32 %v1806, 7
        %v1808 = vsub.s32 %v1805, %v1807
        %v1809 = vrot.slane %v1801, %v1808
        %v1811 = vunpack.c.l.s4 1966171168
        %v1812 = vunpack.c.0.s8 %v1811
        %v1813 = vlaneseq
        %v1814 = vshrl.u32 %v1813, 7
        %v1815 = vsub.s32 %v1812, %v1814
        %v1816 = vrot.slane %v1802, %v1815
        %v1817 = vcombine.low %v1809, %v1816
        %v1822 = vunpack.c.l.b16 %v1765
        %v1823 = vunpack.c.l.b16 %v1766
        %v1824 = vunpack.c.l.b16 %v1767
        %v1825 = vunpack.c.l.b16 %v1768
        %v1826 = vpack.c.b16 %v1823, %v1822
        %v1827 = vpack.c.b16 %v1825, %v1824
        %v1831 = vsel %vm536, %v1817, 0
        %1833 = vmatprep.subr.bf16.mxu0 0
        %1834 = vmatpush1.bf16.msra.mxu0 %v1826
        %1835 = vmatprep.subr.bf16.mxu0 0
        %1836 = vmatpush1.bf16.msra.mxu0 %v1827
        %1837 = vmatprep.subr.bf16.mxu0 0
        %1838 = vmatpush1.bf16.msra.mxu0 0
        %1839 = vmatprep.subr.bf16.mxu0 0
        %1840 = vmatpush1.bf16.msra.mxu0 0
        %1841 = vmatprep.subr.bf16.mxu0 0
        %1842 = vmatpush1.bf16.msra.mxu0 0
        %1843 = vmatprep.subr.bf16.mxu0 0
        %1844 = vmatpush1.bf16.msra.mxu0 0
        %1845 = vmatprep.subr.bf16.mxu0 0
        %1846 = vmatpush1.bf16.msra.mxu0 0
        %1847 = vmatprep.subr.bf16.mxu0 0
        %1848 = vmatpush1.bf16.msra.mxu0 0
        %1849 = vmatprep.subr.bf16.mxu0 0
        %1850 = vmatpush1.bf16.msra.mxu0 0
        %1851 = vmatprep.subr.bf16.mxu0 0
        %1852 = vmatpush1.bf16.msra.mxu0 0
        %1853 = vmatprep.subr.bf16.mxu0 0
        %1854 = vmatpush1.bf16.msra.mxu0 0
        %1855 = vmatprep.subr.bf16.mxu0 0
        %1856 = vmatpush1.bf16.msra.mxu0 0
        %1857 = vmatprep.subr.bf16.mxu0 0
        %1858 = vmatpush1.bf16.msra.mxu0 0
        %1859 = vmatprep.subr.bf16.mxu0 0
        %1860 = vmatpush1.bf16.msra.mxu0 0
        %1861 = vmatprep.subr.bf16.mxu0 0
        %1862 = vmatpush1.bf16.msra.mxu0 0
        %1863 = vmatprep.subr.bf16.mxu0 0
        %1864 = vmatpush1.bf16.msra.mxu0 0
        %1865 = vmatprep.mubr.bf16.mxu0 0
        %1866 = vmatmul.mubr.bf16.gmra.mrb[0].mxu0 %v1831
        %v1867 = vpop.f32.mrb[0].mxu0
        %v1868 = vadd.f32 0.0, %v1867
        %v1869 = vpop.f32.mrb[0].mxu0
        %v1870 = vpop.f32.mrb[0].mxu0
        %v1871 = vadd.f32 0.0, %v1870
        %v1872 = vpop.f32.mrb[0].mxu0
        %1873 = vdwg.mxu0
        %v1874 = vadd.f32 %v1762, %v1868
        %v1875 = vadd.f32 %v1763, %v1871
        %s1876 = scalar_lea.vmem [#allocation11], 96
        %v1877 = vld [vmem:[%s1876] sm:$0xf]
        %v1878 = vld [vmem:[%s1876 + $0x4] sm:$0xf]
        %v1879 = vld [vmem:[%s1876 + $0x8] sm:$0xf]
        %v1880 = vld [vmem:[%s1876 + $0xc] sm:$0xf]
        %v1882 = vcombine.low %v1020, %v1021
        %v1884 = vunpack.c.l.s4 1966171168
        %v1885 = vunpack.c.0.s8 %v1884
        %v1886 = vlaneseq
        %v1887 = vshrl.u32 %v1886, 7
        %v1888 = vsub.s32 %v1885, %v1887
        %v1889 = vrot.slane %v1882, %v1888
        %v1890 = vcombine.low %v1322, %v1329
        %v1891 = vcombine.low %v1336, %v1889
        %v1893 = vunpack.c.l.s4 1966171168
        %v1894 = vunpack.c.0.s8 %v1893
        %v1895 = vlaneseq
        %v1896 = vshrl.u32 %v1895, 7
        %v1897 = vsub.s32 %v1894, %v1896
        %v1898 = vrot.slane %v1890, %v1897
        %v1900 = vunpack.c.l.s4 1966171168
        %v1901 = vunpack.c.0.s8 %v1900
        %v1902 = vlaneseq
        %v1903 = vshrl.u32 %v1902, 7
        %v1904 = vsub.s32 %v1901, %v1903
        %v1905 = vrot.slane %v1891, %v1904
        %v1906 = vcombine.low %v1898, %v1905
        %v1911 = vunpack.c.l.b16 %v1877
        %v1912 = vunpack.c.l.b16 %v1878
        %v1913 = vunpack.c.l.b16 %v1879
        %v1914 = vunpack.c.l.b16 %v1880
        %v1915 = vpack.c.b16 %v1912, %v1911
        %v1916 = vpack.c.b16 %v1914, %v1913
        %v1920 = vsel %vm536, %v1906, 0
        %1922 = vmatprep.subr.bf16.mxu0 0
        %1923 = vmatpush1.bf16.msra.mxu0 %v1915
        %1924 = vmatprep.subr.bf16.mxu0 0
        %1925 = vmatpush1.bf16.msra.mxu0 %v1916
        %1926 = vmatprep.subr.bf16.mxu0 0
        %1927 = vmatpush1.bf16.msra.mxu0 0
        %1928 = vmatprep.subr.bf16.mxu0 0
        %1929 = vmatpush1.bf16.msra.mxu0 0
        %1930 = vmatprep.subr.bf16.mxu0 0
        %1931 = vmatpush1.bf16.msra.mxu0 0
        %1932 = vmatprep.subr.bf16.mxu0 0
        %1933 = vmatpush1.bf16.msra.mxu0 0
        %1934 = vmatprep.subr.bf16.mxu0 0
        %1935 = vmatpush1.bf16.msra.mxu0 0
        %1936 = vmatprep.subr.bf16.mxu0 0
        %1937 = vmatpush1.bf16.msra.mxu0 0
        %1938 = vmatprep.subr.bf16.mxu0 0
        %1939 = vmatpush1.bf16.msra.mxu0 0
        %1940 = vmatprep.subr.bf16.mxu0 0
        %1941 = vmatpush1.bf16.msra.mxu0 0
        %1942 = vmatprep.subr.bf16.mxu0 0
        %1943 = vmatpush1.bf16.msra.mxu0 0
        %1944 = vmatprep.subr.bf16.mxu0 0
        %1945 = vmatpush1.bf16.msra.mxu0 0
        %1946 = vmatprep.subr.bf16.mxu0 0
        %1947 = vmatpush1.bf16.msra.mxu0 0
        %1948 = vmatprep.subr.bf16.mxu0 0
        %1949 = vmatpush1.bf16.msra.mxu0 0
        %1950 = vmatprep.subr.bf16.mxu0 0
        %1951 = vmatpush1.bf16.msra.mxu0 0
        %1952 = vmatprep.subr.bf16.mxu0 0
        %1953 = vmatpush1.bf16.msra.mxu0 0
        %1954 = vmatprep.mubr.bf16.mxu0 0
        %1955 = vmatmul.mubr.bf16.gmra.mrb[0].mxu0 %v1920
        %v1956 = vpop.f32.mrb[0].mxu0
        %v1957 = vadd.f32 0.0, %v1956
        %v1958 = vpop.f32.mrb[0].mxu0
        %v1959 = vpop.f32.mrb[0].mxu0
        %v1960 = vadd.f32 0.0, %v1959
        %v1961 = vpop.f32.mrb[0].mxu0
        %1962 = vdwg.mxu0
        %v1963 = vadd.f32 %v1874, %v1957
        %v1964 = vadd.f32 %v1875, %v1960
        %v1966 = vunpack.c.l.s4 1966171168
        %v1967 = vunpack.c.0.s8 %v1966
        %v1968 = vlaneseq
        %v1969 = vshrl.u32 %v1968, 7
        %v1970 = vsub.s32 %v1967, %v1969
        %v1971 = vrot.slane %v1021, %v1970
        %v1972 = vcombine.high %v1971, %v1971
        %v1974 = vshrl.u32 %v1971, 16
        %v1976 = vrot.slane %v1974, 7
        %v1977 = vrot.slane %v1976, 1
        %v1979 = vshll.u32 %v1972, 16
        %v1981 = vsel %vm1122, %v1977, %v1979
        %s1982 = scalar_lea.vmem [#allocation11], 112
        %v1983 = vld [vmem:[%s1982] sm:$0xf]
        %v1984 = vld [vmem:[%s1982 + $0x4] sm:$0xf]
        %v1985 = vld [vmem:[%s1982 + $0x8] sm:$0xf]
        %v1986 = vld [vmem:[%s1982 + $0xc] sm:$0xf]
        %v1987 = vcombine.low %v1651, %v1981
        %v1989 = vunpack.c.l.s4 1966171168
        %v1990 = vunpack.c.0.s8 %v1989
        %v1991 = vlaneseq
        %v1992 = vshrl.u32 %v1991, 7
        %v1993 = vsub.s32 %v1990, %v1992
        %v1994 = vrot.slane %v1987, %v1993
        %v1995 = vcombine.low %v1217, %v1224
        %v1996 = vcombine.low %v1231, %v1994
        %v1998 = vunpack.c.l.s4 1966171168
        %v1999 = vunpack.c.0.s8 %v1998
        %v2000 = vlaneseq
        %v2001 = vshrl.u32 %v2000, 7
        %v2002 = vsub.s32 %v1999, %v2001
        %v2003 = vrot.slane %v1995, %v2002
        %v2005 = vunpack.c.l.s4 1966171168
        %v2006 = vunpack.c.0.s8 %v2005
        %v2007 = vlaneseq
        %v2008 = vshrl.u32 %v2007, 7
        %v2009 = vsub.s32 %v2006, %v2008
        %v2010 = vrot.slane %v1996, %v2009
        %v2011 = vcombine.low %v2003, %v2010
        %v2016 = vunpack.c.l.b16 %v1983
        %v2017 = vunpack.c.l.b16 %v1984
        %v2018 = vunpack.c.l.b16 %v1985
        %v2019 = vunpack.c.l.b16 %v1986
        %v2020 = vpack.c.b16 %v2017, %v2016
        %v2021 = vpack.c.b16 %v2019, %v2018
        %v2025 = vsel %vm536, %v2011, 0
        %2027 = vmatprep.subr.bf16.mxu0 0
        %2028 = vmatpush1.bf16.msra.mxu0 %v2020
        %2029 = vmatprep.subr.bf16.mxu0 0
        %2030 = vmatpush1.bf16.msra.mxu0 %v2021
        %2031 = vmatprep.subr.bf16.mxu0 0
        %2032 = vmatpush1.bf16.msra.mxu0 0
        %2033 = vmatprep.subr.bf16.mxu0 0
        %2034 = vmatpush1.bf16.msra.mxu0 0
        %2035 = vmatprep.subr.bf16.mxu0 0
        %2036 = vmatpush1.bf16.msra.mxu0 0
        %2037 = vmatprep.subr.bf16.mxu0 0
        %2038 = vmatpush1.bf16.msra.mxu0 0
        %2039 = vmatprep.subr.bf16.mxu0 0
        %2040 = vmatpush1.bf16.msra.mxu0 0
        %2041 = vmatprep.subr.bf16.mxu0 0
        %2042 = vmatpush1.bf16.msra.mxu0 0
        %2043 = vmatprep.subr.bf16.mxu0 0
        %2044 = vmatpush1.bf16.msra.mxu0 0
        %2045 = vmatprep.subr.bf16.mxu0 0
        %2046 = vmatpush1.bf16.msra.mxu0 0
        %2047 = vmatprep.subr.bf16.mxu0 0
        %2048 = vmatpush1.bf16.msra.mxu0 0
        %2049 = vmatprep.subr.bf16.mxu0 0
        %2050 = vmatpush1.bf16.msra.mxu0 0
        %2051 = vmatprep.subr.bf16.mxu0 0
        %2052 = vmatpush1.bf16.msra.mxu0 0
        %2053 = vmatprep.subr.bf16.mxu0 0
        %2054 = vmatpush1.bf16.msra.mxu0 0
        %2055 = vmatprep.subr.bf16.mxu0 0
        %2056 = vmatpush1.bf16.msra.mxu0 0
        %2057 = vmatprep.subr.bf16.mxu0 0
        %2058 = vmatpush1.bf16.msra.mxu0 0
        %2059 = vmatprep.mubr.bf16.mxu0 0
        %2060 = vmatmul.mubr.bf16.gmra.mrb[0].mxu0 %v2025
        %v2061 = vpop.f32.mrb[0].mxu0
        %v2062 = vadd.f32 0.0, %v2061
        %v2063 = vpop.f32.mrb[0].mxu0
        %v2064 = vpop.f32.mrb[0].mxu0
        %v2065 = vadd.f32 0.0, %v2064
        %v2066 = vpop.f32.mrb[0].mxu0
        %2067 = vdwg.mxu0
        %v2068 = vadd.f32 %v1963, %v2062
        %v2069 = vadd.f32 %v1964, %v2065
        %s2070 = scalar_lea.vmem [#allocation11], 128
        %v2071 = vld [vmem:[%s2070] sm:$0xf]
        %v2072 = vld [vmem:[%s2070 + $0x4] sm:$0xf]
        %v2073 = vld [vmem:[%s2070 + $0x8] sm:$0xf]
        %v2074 = vld [vmem:[%s2070 + $0xc] sm:$0xf]
        %v2075 = vcombine.low %v1642, %v1972
        %v2077 = vunpack.c.l.s4 1966171168
        %v2078 = vunpack.c.0.s8 %v2077
        %v2079 = vlaneseq
        %v2080 = vshrl.u32 %v2079, 7
        %v2081 = vsub.s32 %v2078, %v2080
        %v2082 = vrot.slane %v2075, %v2081
        %v2083 = vcombine.low %v1432, %v1439
        %v2084 = vcombine.low %v1446, %v2082
        %v2086 = vunpack.c.l.s4 1966171168
        %v2087 = vunpack.c.0.s8 %v2086
        %v2088 = vlaneseq
        %v2089 = vshrl.u32 %v2088, 7
        %v2090 = vsub.s32 %v2087, %v2089
        %v2091 = vrot.slane %v2083, %v2090
        %v2093 = vunpack.c.l.s4 1966171168
        %v2094 = vunpack.c.0.s8 %v2093
        %v2095 = vlaneseq
        %v2096 = vshrl.u32 %v2095, 7
        %v2097 = vsub.s32 %v2094, %v2096
        %v2098 = vrot.slane %v2084, %v2097
        %v2099 = vcombine.low %v2091, %v2098
        %v2104 = vunpack.c.l.b16 %v2071
        %v2105 = vunpack.c.l.b16 %v2072
        %v2106 = vunpack.c.l.b16 %v2073
        %v2107 = vunpack.c.l.b16 %v2074
        %v2108 = vpack.c.b16 %v2105, %v2104
        %v2109 = vpack.c.b16 %v2107, %v2106
        %v2113 = vsel %vm536, %v2099, 0
        %2115 = vmatprep.subr.bf16.mxu0 0
        %2116 = vmatpush1.bf16.msra.mxu0 %v2108
        %2117 = vmatprep.subr.bf16.mxu0 0
        %2118 = vmatpush1.bf16.msra.mxu0 %v2109
        %2119 = vmatprep.subr.bf16.mxu0 0
        %2120 = vmatpush1.bf16.msra.mxu0 0
        %2121 = vmatprep.subr.bf16.mxu0 0
        %2122 = vmatpush1.bf16.msra.mxu0 0
        %2123 = vmatprep.subr.bf16.mxu0 0
        %2124 = vmatpush1.bf16.msra.mxu0 0
        %2125 = vmatprep.subr.bf16.mxu0 0
        %2126 = vmatpush1.bf16.msra.mxu0 0
        %2127 = vmatprep.subr.bf16.mxu0 0
        %2128 = vmatpush1.bf16.msra.mxu0 0
        %2129 = vmatprep.subr.bf16.mxu0 0
        %2130 = vmatpush1.bf16.msra.mxu0 0
        %2131 = vmatprep.subr.bf16.mxu0 0
        %2132 = vmatpush1.bf16.msra.mxu0 0
        %2133 = vmatprep.subr.bf16.mxu0 0
        %2134 = vmatpush1.bf16.msra.mxu0 0
        %2135 = vmatprep.subr.bf16.mxu0 0
        %2136 = vmatpush1.bf16.msra.mxu0 0
        %2137 = vmatprep.subr.bf16.mxu0 0
        %2138 = vmatpush1.bf16.msra.mxu0 0
        %2139 = vmatprep.subr.bf16.mxu0 0
        %2140 = vmatpush1.bf16.msra.mxu0 0
        %2141 = vmatprep.subr.bf16.mxu0 0
        %2142 = vmatpush1.bf16.msra.mxu0 0
        %2143 = vmatprep.subr.bf16.mxu0 0
        %2144 = vmatpush1.bf16.msra.mxu0 0
        %2145 = vmatprep.subr.bf16.mxu0 0
        %2146 = vmatpush1.bf16.msra.mxu0 0
        %2147 = vmatprep.mubr.bf16.mxu0 0
        %2148 = vmatmul.mubr.bf16.gmra.mrb[0].mxu0 %v2113
        %v2149 = vpop.f32.mrb[0].mxu0
        %v2150 = vadd.f32 0.0, %v2149
        %v2151 = vpop.f32.mrb[0].mxu0
        %v2152 = vpop.f32.mrb[0].mxu0
        %v2153 = vadd.f32 0.0, %v2152
        %v2154 = vpop.f32.mrb[0].mxu0
        %2155 = vdwg.mxu0
        %v2156 = vadd.f32 %v2068, %v2150
        %v2157 = vadd.f32 %v2069, %v2153
        %v2158 = vld [vmem:[#allocation13] sm:$0xf]
        %v2159 = vld [vmem:[#allocation13 + $0x4] sm:$0xf]
        %v2160 = vld [vmem:[#allocation13 + $0x8] sm:$0xf]
        %v2161 = vld [vmem:[#allocation13 + $0xc] sm:$0xf]
        %v2170 = vcombine.low %v1022, %v1023
        %v2171 = vcombine.low %v1024, %v1025
        %v2172 = vcombine.low %v1026, %v1027
        %v2173 = vcombine.low %v1028, %v1029
        %v2175 = vunpack.c.l.s4 1966171168
        %v2176 = vunpack.c.0.s8 %v2175
        %v2177 = vlaneseq
        %v2178 = vshrl.u32 %v2177, 7
        %v2179 = vsub.s32 %v2176, %v2178
        %v2180 = vrot.slane %v2170, %v2179
        %v2182 = vunpack.c.l.s4 1966171168
        %v2183 = vunpack.c.0.s8 %v2182
        %v2184 = vlaneseq
        %v2185 = vshrl.u32 %v2184, 7
        %v2186 = vsub.s32 %v2183, %v2185
        %v2187 = vrot.slane %v2171, %v2186
        %v2189 = vunpack.c.l.s4 1966171168
        %v2190 = vunpack.c.0.s8 %v2189
        %v2191 = vlaneseq
        %v2192 = vshrl.u32 %v2191, 7
        %v2193 = vsub.s32 %v2190, %v2192
        %v2194 = vrot.slane %v2172, %v2193
        %v2196 = vunpack.c.l.s4 1966171168
        %v2197 = vunpack.c.0.s8 %v2196
        %v2198 = vlaneseq
        %v2199 = vshrl.u32 %v2198, 7
        %v2200 = vsub.s32 %v2197, %v2199
        %v2201 = vrot.slane %v2173, %v2200
        %v2202 = vcombine.low %v2180, %v2187
        %v2203 = vcombine.low %v2194, %v2201
        %v2205 = vunpack.c.l.s4 1966171168
        %v2206 = vunpack.c.0.s8 %v2205
        %v2207 = vlaneseq
        %v2208 = vshrl.u32 %v2207, 7
        %v2209 = vsub.s32 %v2206, %v2208
        %v2210 = vrot.slane %v2202, %v2209
        %v2212 = vunpack.c.l.s4 1966171168
        %v2213 = vunpack.c.0.s8 %v2212
        %v2214 = vlaneseq
        %v2215 = vshrl.u32 %v2214, 7
        %v2216 = vsub.s32 %v2213, %v2215
        %v2217 = vrot.slane %v2203, %v2216
        %v2218 = vcombine.low %v2210, %v2217
        %v2223 = vunpack.c.l.b16 %v2158
        %v2224 = vunpack.c.l.b16 %v2159
        %v2225 = vunpack.c.l.b16 %v2160
        %v2226 = vunpack.c.l.b16 %v2161
        %v2227 = vpack.c.b16 %v2224, %v2223
        %v2228 = vpack.c.b16 %v2226, %v2225
        %v2232 = vsel %vm536, %v2218, 0
        %2234 = vmatprep.subr.bf16.mxu0 0
        %2235 = vmatpush1.bf16.msra.mxu0 %v2227
        %2236 = vmatprep.subr.bf16.mxu0 0
        %2237 = vmatpush1.bf16.msra.mxu0 %v2228
        %2238 = vmatprep.subr.bf16.mxu0 0
        %2239 = vmatpush1.bf16.msra.mxu0 0
        %2240 = vmatprep.subr.bf16.mxu0 0
        %2241 = vmatpush1.bf16.msra.mxu0 0
        %2242 = vmatprep.subr.bf16.mxu0 0
        %2243 = vmatpush1.bf16.msra.mxu0 0
        %2244 = vmatprep.subr.bf16.mxu0 0
        %2245 = vmatpush1.bf16.msra.mxu0 0
        %2246 = vmatprep.subr.bf16.mxu0 0
        %2247 = vmatpush1.bf16.msra.mxu0 0
        %2248 = vmatprep.subr.bf16.mxu0 0
        %2249 = vmatpush1.bf16.msra.mxu0 0
        %2250 = vmatprep.subr.bf16.mxu0 0
        %2251 = vmatpush1.bf16.msra.mxu0 0
        %2252 = vmatprep.subr.bf16.mxu0 0
        %2253 = vmatpush1.bf16.msra.mxu0 0
        %2254 = vmatprep.subr.bf16.mxu0 0
        %2255 = vmatpush1.bf16.msra.mxu0 0
        %2256 = vmatprep.subr.bf16.mxu0 0
        %2257 = vmatpush1.bf16.msra.mxu0 0
        %2258 = vmatprep.subr.bf16.mxu0 0
        %2259 = vmatpush1.bf16.msra.mxu0 0
        %2260 = vmatprep.subr.bf16.mxu0 0
        %2261 = vmatpush1.bf16.msra.mxu0 0
        %2262 = vmatprep.subr.bf16.mxu0 0
        %2263 = vmatpush1.bf16.msra.mxu0 0
        %2264 = vmatprep.subr.bf16.mxu0 0
        %2265 = vmatpush1.bf16.msra.mxu0 0
        %2266 = vmatprep.mubr.bf16.mxu0 0
        %2267 = vmatmul.mubr.bf16.gmra.mrb[0].mxu0 %v2232
        %v2268 = vpop.f32.mrb[0].mxu0
        %v2269 = vadd.f32 0.0, %v2268
        %v2270 = vpop.f32.mrb[0].mxu0
        %v2271 = vpop.f32.mrb[0].mxu0
        %v2272 = vadd.f32 0.0, %v2271
        %v2273 = vpop.f32.mrb[0].mxu0
        %2274 = vdwg.mxu0
        %v2275 = vadd.f32 %v2156, %v2269
        %v2276 = vadd.f32 %v2157, %v2272
        %v2278 = vunpack.c.l.s4 1966171168
        %v2279 = vunpack.c.0.s8 %v2278
        %v2280 = vlaneseq
        %v2281 = vshrl.u32 %v2280, 7
        %v2282 = vsub.s32 %v2279, %v2281
        %v2283 = vrot.slane %v1022, %v2282
        %v2284 = vcombine.high %v2283, %v2283
        %v2286 = vunpack.c.l.s4 1966171168
        %v2287 = vunpack.c.0.s8 %v2286
        %v2288 = vlaneseq
        %v2289 = vshrl.u32 %v2288, 7
        %v2290 = vsub.s32 %v2287, %v2289
        %v2291 = vrot.slane %v1023, %v2290
        %v2292 = vcombine.high %v2291, %v2291
        %v2294 = vunpack.c.l.s4 1966171168
        %v2295 = vunpack.c.0.s8 %v2294
        %v2296 = vlaneseq
        %v2297 = vshrl.u32 %v2296, 7
        %v2298 = vsub.s32 %v2295, %v2297
        %v2299 = vrot.slane %v1024, %v2298
        %v2300 = vcombine.high %v2299, %v2299
        %v2302 = vunpack.c.l.s4 1966171168
        %v2303 = vunpack.c.0.s8 %v2302
        %v2304 = vlaneseq
        %v2305 = vshrl.u32 %v2304, 7
        %v2306 = vsub.s32 %v2303, %v2305
        %v2307 = vrot.slane %v1025, %v2306
        %v2308 = vcombine.high %v2307, %v2307
        %v2310 = vunpack.c.l.s4 1966171168
        %v2311 = vunpack.c.0.s8 %v2310
        %v2312 = vlaneseq
        %v2313 = vshrl.u32 %v2312, 7
        %v2314 = vsub.s32 %v2311, %v2313
        %v2315 = vrot.slane %v1026, %v2314
        %v2316 = vcombine.high %v2315, %v2315
        %v2318 = vunpack.c.l.s4 1966171168
        %v2319 = vunpack.c.0.s8 %v2318
        %v2320 = vlaneseq
        %v2321 = vshrl.u32 %v2320, 7
        %v2322 = vsub.s32 %v2319, %v2321
        %v2323 = vrot.slane %v1027, %v2322
        %v2324 = vcombine.high %v2323, %v2323
        %v2326 = vunpack.c.l.s4 1966171168
        %v2327 = vunpack.c.0.s8 %v2326
        %v2328 = vlaneseq
        %v2329 = vshrl.u32 %v2328, 7
        %v2330 = vsub.s32 %v2327, %v2329
        %v2331 = vrot.slane %v1028, %v2330
        %v2332 = vcombine.high %v2331, %v2331
        %v2334 = vunpack.c.l.s4 1966171168
        %v2335 = vunpack.c.0.s8 %v2334
        %v2336 = vlaneseq
        %v2337 = vshrl.u32 %v2336, 7
        %v2338 = vsub.s32 %v2335, %v2337
        %v2339 = vrot.slane %v1029, %v2338
        %v2340 = vcombine.high %v2339, %v2339
        %v2342 = vshrl.u32 %v2283, 16
        %v2344 = vrot.slane %v2342, 7
        %v2345 = vrot.slane %v2344, 1
        %v2347 = vshll.u32 %v2284, 16
        %v2349 = vsel %vm1122, %v2345, %v2347
        %v2351 = vshrl.u32 %v2291, 16
        %v2353 = vrot.slane %v2351, 7
        %v2354 = vrot.slane %v2353, 1
        %v2356 = vshll.u32 %v2292, 16
        %v2358 = vsel %vm1122, %v2354, %v2356
        %v2360 = vshrl.u32 %v2299, 16
        %v2362 = vrot.slane %v2360, 7
        %v2363 = vrot.slane %v2362, 1
        %v2365 = vshll.u32 %v2300, 16
        %v2367 = vsel %vm1122, %v2363, %v2365
        %v2369 = vshrl.u32 %v2307, 16
        %v2371 = vrot.slane %v2369, 7
        %v2372 = vrot.slane %v2371, 1
        %v2374 = vshll.u32 %v2308, 16
        %v2376 = vsel %vm1122, %v2372, %v2374
        %v2378 = vshrl.u32 %v2315, 16
        %v2380 = vrot.slane %v2378, 7
        %v2381 = vrot.slane %v2380, 1
        %v2383 = vshll.u32 %v2316, 16
        %v2385 = vsel %vm1122, %v2381, %v2383
        %v2387 = vshrl.u32 %v2323, 16
        %v2389 = vrot.slane %v2387, 7
        %v2390 = vrot.slane %v2389, 1
        %v2392 = vshll.u32 %v2324, 16
        %v2394 = vsel %vm1122, %v2390, %v2392
        %v2396 = vshrl.u32 %v2331, 16
        %v2398 = vrot.slane %v2396, 7
        %v2399 = vrot.slane %v2398, 1
        %v2401 = vshll.u32 %v2332, 16
        %v2403 = vsel %vm1122, %v2399, %v2401
        %v2405 = vshrl.u32 %v2339, 16
        %v2407 = vrot.slane %v2405, 7
        %v2408 = vrot.slane %v2407, 1
        %v2410 = vshll.u32 %v2340, 16
        %v2412 = vsel %vm1122, %v2408, %v2410
        %s2413 = scalar_lea.vmem [#allocation13], 16
        %v2414 = vld [vmem:[%s2413] sm:$0xf]
        %v2415 = vld [vmem:[%s2413 + $0x4] sm:$0xf]
        %v2416 = vld [vmem:[%s2413 + $0x8] sm:$0xf]
        %v2417 = vld [vmem:[%s2413 + $0xc] sm:$0xf]
        %v2418 = vcombine.low %v2349, %v2358
        %v2419 = vcombine.low %v2367, %v2376
        %v2420 = vcombine.low %v2385, %v2394
        %v2421 = vcombine.low %v2403, %v2412
        %v2423 = vunpack.c.l.s4 1966171168
        %v2424 = vunpack.c.0.s8 %v2423
        %v2425 = vlaneseq
        %v2426 = vshrl.u32 %v2425, 7
        %v2427 = vsub.s32 %v2424, %v2426
        %v2428 = vrot.slane %v2418, %v2427
        %v2430 = vunpack.c.l.s4 1966171168
        %v2431 = vunpack.c.0.s8 %v2430
        %v2432 = vlaneseq
        %v2433 = vshrl.u32 %v2432, 7
        %v2434 = vsub.s32 %v2431, %v2433
        %v2435 = vrot.slane %v2419, %v2434
        %v2437 = vunpack.c.l.s4 1966171168
        %v2438 = vunpack.c.0.s8 %v2437
        %v2439 = vlaneseq
        %v2440 = vshrl.u32 %v2439, 7
        %v2441 = vsub.s32 %v2438, %v2440
        %v2442 = vrot.slane %v2420, %v2441
        %v2444 = vunpack.c.l.s4 1966171168
        %v2445 = vunpack.c.0.s8 %v2444
        %v2446 = vlaneseq
        %v2447 = vshrl.u32 %v2446, 7
        %v2448 = vsub.s32 %v2445, %v2447
        %v2449 = vrot.slane %v2421, %v2448
        %v2450 = vcombine.low %v2428, %v2435
        %v2451 = vcombine.low %v2442, %v2449
        %v2453 = vunpack.c.l.s4 1966171168
        %v2454 = vunpack.c.0.s8 %v2453
        %v2455 = vlaneseq
        %v2456 = vshrl.u32 %v2455, 7
        %v2457 = vsub.s32 %v2454, %v2456
        %v2458 = vrot.slane %v2450, %v2457
        %v2460 = vunpack.c.l.s4 1966171168
        %v2461 = vunpack.c.0.s8 %v2460
        %v2462 = vlaneseq
        %v2463 = vshrl.u32 %v2462, 7
        %v2464 = vsub.s32 %v2461, %v2463
        %v2465 = vrot.slane %v2451, %v2464
        %v2466 = vcombine.low %v2458, %v2465
        %v2471 = vunpack.c.l.b16 %v2414
        %v2472 = vunpack.c.l.b16 %v2415
        %v2473 = vunpack.c.l.b16 %v2416
        %v2474 = vunpack.c.l.b16 %v2417
        %v2475 = vpack.c.b16 %v2472, %v2471
        %v2476 = vpack.c.b16 %v2474, %v2473
        %v2480 = vsel %vm536, %v2466, 0
        %2482 = vmatprep.subr.bf16.mxu0 0
        %2483 = vmatpush1.bf16.msra.mxu0 %v2475
        %2484 = vmatprep.subr.bf16.mxu0 0
        %2485 = vmatpush1.bf16.msra.mxu0 %v2476
        %2486 = vmatprep.subr.bf16.mxu0 0
        %2487 = vmatpush1.bf16.msra.mxu0 0
        %2488 = vmatprep.subr.bf16.mxu0 0
        %2489 = vmatpush1.bf16.msra.mxu0 0
        %2490 = vmatprep.subr.bf16.mxu0 0
        %2491 = vmatpush1.bf16.msra.mxu0 0
        %2492 = vmatprep.subr.bf16.mxu0 0
        %2493 = vmatpush1.bf16.msra.mxu0 0
        %2494 = vmatprep.subr.bf16.mxu0 0
        %2495 = vmatpush1.bf16.msra.mxu0 0
        %2496 = vmatprep.subr.bf16.mxu0 0
        %2497 = vmatpush1.bf16.msra.mxu0 0
        %2498 = vmatprep.subr.bf16.mxu0 0
        %2499 = vmatpush1.bf16.msra.mxu0 0
        %2500 = vmatprep.subr.bf16.mxu0 0
        %2501 = vmatpush1.bf16.msra.mxu0 0
        %2502 = vmatprep.subr.bf16.mxu0 0
        %2503 = vmatpush1.bf16.msra.mxu0 0
        %2504 = vmatprep.subr.bf16.mxu0 0
        %2505 = vmatpush1.bf16.msra.mxu0 0
        %2506 = vmatprep.subr.bf16.mxu0 0
        %2507 = vmatpush1.bf16.msra.mxu0 0
        %2508 = vmatprep.subr.bf16.mxu0 0
        %2509 = vmatpush1.bf16.msra.mxu0 0
        %2510 = vmatprep.subr.bf16.mxu0 0
        %2511 = vmatpush1.bf16.msra.mxu0 0
        %2512 = vmatprep.subr.bf16.mxu0 0
        %2513 = vmatpush1.bf16.msra.mxu0 0
        %2514 = vmatprep.mubr.bf16.mxu0 0
        %2515 = vmatmul.mubr.bf16.gmra.mrb[0].mxu0 %v2480
        %v2516 = vpop.f32.mrb[0].mxu0
        %v2517 = vadd.f32 0.0, %v2516
        %v2518 = vpop.f32.mrb[0].mxu0
        %v2519 = vpop.f32.mrb[0].mxu0
        %v2520 = vadd.f32 0.0, %v2519
        %v2521 = vpop.f32.mrb[0].mxu0
        %2522 = vdwg.mxu0
        %v2523 = vadd.f32 %v2275, %v2517
        %v2524 = vadd.f32 %v2276, %v2520
        %s2525 = scalar_lea.vmem [#allocation13], 32
        %v2526 = vld [vmem:[%s2525] sm:$0xf]
        %v2527 = vld [vmem:[%s2525 + $0x4] sm:$0xf]
        %v2528 = vld [vmem:[%s2525 + $0x8] sm:$0xf]
        %v2529 = vld [vmem:[%s2525 + $0xc] sm:$0xf]
        %v2530 = vcombine.low %v2284, %v2292
        %v2531 = vcombine.low %v2300, %v2308
        %v2532 = vcombine.low %v2316, %v2324
        %v2533 = vcombine.low %v2332, %v2340
        %v2535 = vunpack.c.l.s4 1966171168
        %v2536 = vunpack.c.0.s8 %v2535
        %v2537 = vlaneseq
        %v2538 = vshrl.u32 %v2537, 7
        %v2539 = vsub.s32 %v2536, %v2538
        %v2540 = vrot.slane %v2530, %v2539
        %v2542 = vunpack.c.l.s4 1966171168
        %v2543 = vunpack.c.0.s8 %v2542
        %v2544 = vlaneseq
        %v2545 = vshrl.u32 %v2544, 7
        %v2546 = vsub.s32 %v2543, %v2545
        %v2547 = vrot.slane %v2531, %v2546
        %v2549 = vunpack.c.l.s4 1966171168
        %v2550 = vunpack.c.0.s8 %v2549
        %v2551 = vlaneseq
        %v2552 = vshrl.u32 %v2551, 7
        %v2553 = vsub.s32 %v2550, %v2552
        %v2554 = vrot.slane %v2532, %v2553
        %v2556 = vunpack.c.l.s4 1966171168
        %v2557 = vunpack.c.0.s8 %v2556
        %v2558 = vlaneseq
        %v2559 = vshrl.u32 %v2558, 7
        %v2560 = vsub.s32 %v2557, %v2559
        %v2561 = vrot.slane %v2533, %v2560
        %v2562 = vcombine.low %v2540, %v2547
        %v2563 = vcombine.low %v2554, %v2561
        %v2565 = vunpack.c.l.s4 1966171168
        %v2566 = vunpack.c.0.s8 %v2565
        %v2567 = vlaneseq
        %v2568 = vshrl.u32 %v2567, 7
        %v2569 = vsub.s32 %v2566, %v2568
        %v2570 = vrot.slane %v2562, %v2569
        %v2572 = vunpack.c.l.s4 1966171168
        %v2573 = vunpack.c.0.s8 %v2572
        %v2574 = vlaneseq
        %v2575 = vshrl.u32 %v2574, 7
        %v2576 = vsub.s32 %v2573, %v2575
        %v2577 = vrot.slane %v2563, %v2576
        %v2578 = vcombine.low %v2570, %v2577
        %v2583 = vunpack.c.l.b16 %v2526
        %v2584 = vunpack.c.l.b16 %v2527
        %v2585 = vunpack.c.l.b16 %v2528
        %v2586 = vunpack.c.l.b16 %v2529
        %v2587 = vpack.c.b16 %v2584, %v2583
        %v2588 = vpack.c.b16 %v2586, %v2585
        %v2592 = vsel %vm536, %v2578, 0
        %2594 = vmatprep.subr.bf16.mxu0 0
        %2595 = vmatpush1.bf16.msra.mxu0 %v2587
        %2596 = vmatprep.subr.bf16.mxu0 0
        %2597 = vmatpush1.bf16.msra.mxu0 %v2588
        %2598 = vmatprep.subr.bf16.mxu0 0
        %2599 = vmatpush1.bf16.msra.mxu0 0
        %2600 = vmatprep.subr.bf16.mxu0 0
        %2601 = vmatpush1.bf16.msra.mxu0 0
        %2602 = vmatprep.subr.bf16.mxu0 0
        %2603 = vmatpush1.bf16.msra.mxu0 0
        %2604 = vmatprep.subr.bf16.mxu0 0
        %2605 = vmatpush1.bf16.msra.mxu0 0
        %2606 = vmatprep.subr.bf16.mxu0 0
        %2607 = vmatpush1.bf16.msra.mxu0 0
        %2608 = vmatprep.subr.bf16.mxu0 0
        %2609 = vmatpush1.bf16.msra.mxu0 0
        %2610 = vmatprep.subr.bf16.mxu0 0
        %2611 = vmatpush1.bf16.msra.mxu0 0
        %2612 = vmatprep.subr.bf16.mxu0 0
        %2613 = vmatpush1.bf16.msra.mxu0 0
        %2614 = vmatprep.subr.bf16.mxu0 0
        %2615 = vmatpush1.bf16.msra.mxu0 0
        %2616 = vmatprep.subr.bf16.mxu0 0
        %2617 = vmatpush1.bf16.msra.mxu0 0
        %2618 = vmatprep.subr.bf16.mxu0 0
        %2619 = vmatpush1.bf16.msra.mxu0 0
        %2620 = vmatprep.subr.bf16.mxu0 0
        %2621 = vmatpush1.bf16.msra.mxu0 0
        %2622 = vmatprep.subr.bf16.mxu0 0
        %2623 = vmatpush1.bf16.msra.mxu0 0
        %2624 = vmatprep.subr.bf16.mxu0 0
        %2625 = vmatpush1.bf16.msra.mxu0 0
        %2626 = vmatprep.mubr.bf16.mxu0 0
        %2627 = vmatmul.mubr.bf16.gmra.mrb[0].mxu0 %v2592
        %v2628 = vpop.f32.mrb[0].mxu0
        %v2629 = vadd.f32 0.0, %v2628
        %v2630 = vpop.f32.mrb[0].mxu0
        %v2631 = vpop.f32.mrb[0].mxu0
        %v2632 = vadd.f32 0.0, %v2631
        %v2633 = vpop.f32.mrb[0].mxu0
        %2634 = vdwg.mxu0
        %v2635 = vadd.f32 %v2523, %v2629
        %v2636 = vadd.f32 %v2524, %v2632
        %s2637 = scalar_lea.vmem [#allocation13], 48
        %v2638 = vld [vmem:[%s2637] sm:$0xf]
        %v2639 = vld [vmem:[%s2637 + $0x4] sm:$0xf]
        %v2640 = vld [vmem:[%s2637 + $0x8] sm:$0xf]
        %v2641 = vld [vmem:[%s2637 + $0xc] sm:$0xf]
        %v2643 = vcombine.low %v1023, %v1024
        %v2644 = vcombine.low %v1025, %v1026
        %v2645 = vcombine.low %v1027, %v1028
        %v2646 = vcombine.low %v1029, %v1030
        %v2648 = vunpack.c.l.s4 1966171168
        %v2649 = vunpack.c.0.s8 %v2648
        %v2650 = vlaneseq
        %v2651 = vshrl.u32 %v2650, 7
        %v2652 = vsub.s32 %v2649, %v2651
        %v2653 = vrot.slane %v2643, %v2652
        %v2655 = vunpack.c.l.s4 1966171168
        %v2656 = vunpack.c.0.s8 %v2655
        %v2657 = vlaneseq
        %v2658 = vshrl.u32 %v2657, 7
        %v2659 = vsub.s32 %v2656, %v2658
        %v2660 = vrot.slane %v2644, %v2659
        %v2662 = vunpack.c.l.s4 1966171168
        %v2663 = vunpack.c.0.s8 %v2662
        %v2664 = vlaneseq
        %v2665 = vshrl.u32 %v2664, 7
        %v2666 = vsub.s32 %v2663, %v2665
        %v2667 = vrot.slane %v2645, %v2666
        %v2669 = vunpack.c.l.s4 1966171168
        %v2670 = vunpack.c.0.s8 %v2669
        %v2671 = vlaneseq
        %v2672 = vshrl.u32 %v2671, 7
        %v2673 = vsub.s32 %v2670, %v2672
        %v2674 = vrot.slane %v2646, %v2673
        %v2675 = vcombine.low %v2653, %v2660
        %v2676 = vcombine.low %v2667, %v2674
        %v2678 = vunpack.c.l.s4 1966171168
        %v2679 = vunpack.c.0.s8 %v2678
        %v2680 = vlaneseq
        %v2681 = vshrl.u32 %v2680, 7
        %v2682 = vsub.s32 %v2679, %v2681
        %v2683 = vrot.slane %v2675, %v2682
        %v2685 = vunpack.c.l.s4 1966171168
        %v2686 = vunpack.c.0.s8 %v2685
        %v2687 = vlaneseq
        %v2688 = vshrl.u32 %v2687, 7
        %v2689 = vsub.s32 %v2686, %v2688
        %v2690 = vrot.slane %v2676, %v2689
        %v2691 = vcombine.low %v2683, %v2690
        %v2696 = vunpack.c.l.b16 %v2638
        %v2697 = vunpack.c.l.b16 %v2639
        %v2698 = vunpack.c.l.b16 %v2640
        %v2699 = vunpack.c.l.b16 %v2641
        %v2700 = vpack.c.b16 %v2697, %v2696
        %v2701 = vpack.c.b16 %v2699, %v2698
        %v2705 = vsel %vm536, %v2691, 0
        %2707 = vmatprep.subr.bf16.mxu0 0
        %2708 = vmatpush1.bf16.msra.mxu0 %v2700
        %2709 = vmatprep.subr.bf16.mxu0 0
        %2710 = vmatpush1.bf16.msra.mxu0 %v2701
        %2711 = vmatprep.subr.bf16.mxu0 0
        %2712 = vmatpush1.bf16.msra.mxu0 0
        %2713 = vmatprep.subr.bf16.mxu0 0
        %2714 = vmatpush1.bf16.msra.mxu0 0
        %2715 = vmatprep.subr.bf16.mxu0 0
        %2716 = vmatpush1.bf16.msra.mxu0 0
        %2717 = vmatprep.subr.bf16.mxu0 0
        %2718 = vmatpush1.bf16.msra.mxu0 0
        %2719 = vmatprep.subr.bf16.mxu0 0
        %2720 = vmatpush1.bf16.msra.mxu0 0
        %2721 = vmatprep.subr.bf16.mxu0 0
        %2722 = vmatpush1.bf16.msra.mxu0 0
        %2723 = vmatprep.subr.bf16.mxu0 0
        %2724 = vmatpush1.bf16.msra.mxu0 0
        %2725 = vmatprep.subr.bf16.mxu0 0
        %2726 = vmatpush1.bf16.msra.mxu0 0
        %2727 = vmatprep.subr.bf16.mxu0 0
        %2728 = vmatpush1.bf16.msra.mxu0 0
        %2729 = vmatprep.subr.bf16.mxu0 0
        %2730 = vmatpush1.bf16.msra.mxu0 0
        %2731 = vmatprep.subr.bf16.mxu0 0
        %2732 = vmatpush1.bf16.msra.mxu0 0
        %2733 = vmatprep.subr.bf16.mxu0 0
        %2734 = vmatpush1.bf16.msra.mxu0 0
        %2735 = vmatprep.subr.bf16.mxu0 0
        %2736 = vmatpush1.bf16.msra.mxu0 0
        %2737 = vmatprep.subr.bf16.mxu0 0
        %2738 = vmatpush1.bf16.msra.mxu0 0
        %2739 = vmatprep.mubr.bf16.mxu0 0
        %2740 = vmatmul.mubr.bf16.gmra.mrb[0].mxu0 %v2705
        %v2741 = vpop.f32.mrb[0].mxu0
        %v2742 = vadd.f32 0.0, %v2741
        %v2743 = vpop.f32.mrb[0].mxu0
        %v2744 = vpop.f32.mrb[0].mxu0
        %v2745 = vadd.f32 0.0, %v2744
        %v2746 = vpop.f32.mrb[0].mxu0
        %2747 = vdwg.mxu0
        %v2748 = vadd.f32 %v2635, %v2742
        %v2749 = vadd.f32 %v2636, %v2745
        %v2751 = vunpack.c.l.s4 1966171168
        %v2752 = vunpack.c.0.s8 %v2751
        %v2753 = vlaneseq
        %v2754 = vshrl.u32 %v2753, 7
        %v2755 = vsub.s32 %v2752, %v2754
        %v2756 = vrot.slane %v1030, %v2755
        %v2757 = vcombine.high %v2756, %v2756
        %v2759 = vshrl.u32 %v2756, 16
        %v2761 = vrot.slane %v2759, 7
        %v2762 = vrot.slane %v2761, 1
        %v2764 = vshll.u32 %v2757, 16
        %v2766 = vsel %vm1122, %v2762, %v2764
        %s2767 = scalar_lea.vmem [#allocation13], 64
        %v2768 = vld [vmem:[%s2767] sm:$0xf]
        %v2769 = vld [vmem:[%s2767 + $0x4] sm:$0xf]
        %v2770 = vld [vmem:[%s2767 + $0x8] sm:$0xf]
        %v2771 = vld [vmem:[%s2767 + $0xc] sm:$0xf]
        %v2772 = vcombine.low %v2358, %v2367
        %v2773 = vcombine.low %v2376, %v2385
        %v2774 = vcombine.low %v2394, %v2403
        %v2775 = vcombine.low %v2412, %v2766
        %v2777 = vunpack.c.l.s4 1966171168
        %v2778 = vunpack.c.0.s8 %v2777
        %v2779 = vlaneseq
        %v2780 = vshrl.u32 %v2779, 7
        %v2781 = vsub.s32 %v2778, %v2780
        %v2782 = vrot.slane %v2772, %v2781
        %v2784 = vunpack.c.l.s4 1966171168
        %v2785 = vunpack.c.0.s8 %v2784
        %v2786 = vlaneseq
        %v2787 = vshrl.u32 %v2786, 7
        %v2788 = vsub.s32 %v2785, %v2787
        %v2789 = vrot.slane %v2773, %v2788
        %v2791 = vunpack.c.l.s4 1966171168
        %v2792 = vunpack.c.0.s8 %v2791
        %v2793 = vlaneseq
        %v2794 = vshrl.u32 %v2793, 7
        %v2795 = vsub.s32 %v2792, %v2794
        %v2796 = vrot.slane %v2774, %v2795
        %v2798 = vunpack.c.l.s4 1966171168
        %v2799 = vunpack.c.0.s8 %v2798
        %v2800 = vlaneseq
        %v2801 = vshrl.u32 %v2800, 7
        %v2802 = vsub.s32 %v2799, %v2801
        %v2803 = vrot.slane %v2775, %v2802
        %v2804 = vcombine.low %v2782, %v2789
        %v2805 = vcombine.low %v2796, %v2803
        %v2807 = vunpack.c.l.s4 1966171168
        %v2808 = vunpack.c.0.s8 %v2807
        %v2809 = vlaneseq
        %v2810 = vshrl.u32 %v2809, 7
        %v2811 = vsub.s32 %v2808, %v2810
        %v2812 = vrot.slane %v2804, %v2811
        %v2814 = vunpack.c.l.s4 1966171168
        %v2815 = vunpack.c.0.s8 %v2814
        %v2816 = vlaneseq
        %v2817 = vshrl.u32 %v2816, 7
        %v2818 = vsub.s32 %v2815, %v2817
        %v2819 = vrot.slane %v2805, %v2818
        %v2820 = vcombine.low %v2812, %v2819
        %v2825 = vunpack.c.l.b16 %v2768
        %v2826 = vunpack.c.l.b16 %v2769
        %v2827 = vunpack.c.l.b16 %v2770
        %v2828 = vunpack.c.l.b16 %v2771
        %v2829 = vpack.c.b16 %v2826, %v2825
        %v2830 = vpack.c.b16 %v2828, %v2827
        %v2834 = vsel %vm536, %v2820, 0
        %2836 = vmatprep.subr.bf16.mxu0 0
        %2837 = vmatpush1.bf16.msra.mxu0 %v2829
        %2838 = vmatprep.subr.bf16.mxu0 0
        %2839 = vmatpush1.bf16.msra.mxu0 %v2830
        %2840 = vmatprep.subr.bf16.mxu0 0
        %2841 = vmatpush1.bf16.msra.mxu0 0
        %2842 = vmatprep.subr.bf16.mxu0 0
        %2843 = vmatpush1.bf16.msra.mxu0 0
        %2844 = vmatprep.subr.bf16.mxu0 0
        %2845 = vmatpush1.bf16.msra.mxu0 0
        %2846 = vmatprep.subr.bf16.mxu0 0
        %2847 = vmatpush1.bf16.msra.mxu0 0
        %2848 = vmatprep.subr.bf16.mxu0 0
        %2849 = vmatpush1.bf16.msra.mxu0 0
        %2850 = vmatprep.subr.bf16.mxu0 0
        %2851 = vmatpush1.bf16.msra.mxu0 0
        %2852 = vmatprep.subr.bf16.mxu0 0
        %2853 = vmatpush1.bf16.msra.mxu0 0
        %2854 = vmatprep.subr.bf16.mxu0 0
        %2855 = vmatpush1.bf16.msra.mxu0 0
        %2856 = vmatprep.subr.bf16.mxu0 0
        %2857 = vmatpush1.bf16.msra.mxu0 0
        %2858 = vmatprep.subr.bf16.mxu0 0
        %2859 = vmatpush1.bf16.msra.mxu0 0
        %2860 = vmatprep.subr.bf16.mxu0 0
        %2861 = vmatpush1.bf16.msra.mxu0 0
        %2862 = vmatprep.subr.bf16.mxu0 0
        %2863 = vmatpush1.bf16.msra.mxu0 0
        %2864 = vmatprep.subr.bf16.mxu0 0
        %2865 = vmatpush1.bf16.msra.mxu0 0
        %2866 = vmatprep.subr.bf16.mxu0 0
        %2867 = vmatpush1.bf16.msra.mxu0 0
        %2868 = vmatprep.mubr.bf16.mxu0 0
        %2869 = vmatmul.mubr.bf16.gmra.mrb[0].mxu0 %v2834
        %v2870 = vpop.f32.mrb[0].mxu0
        %v2871 = vadd.f32 0.0, %v2870
        %v2872 = vpop.f32.mrb[0].mxu0
        %v2873 = vpop.f32.mrb[0].mxu0
        %v2874 = vadd.f32 0.0, %v2873
        %v2875 = vpop.f32.mrb[0].mxu0
        %2876 = vdwg.mxu0
        %v2877 = vadd.f32 %v2748, %v2871
        %v2878 = vadd.f32 %v2749, %v2874
        %s2879 = scalar_lea.vmem [#allocation13], 80
        %v2880 = vld [vmem:[%s2879] sm:$0xf]
        %v2881 = vld [vmem:[%s2879 + $0x4] sm:$0xf]
        %v2882 = vld [vmem:[%s2879 + $0x8] sm:$0xf]
        %v2883 = vld [vmem:[%s2879 + $0xc] sm:$0xf]
        %v2884 = vcombine.low %v2292, %v2300
        %v2885 = vcombine.low %v2308, %v2316
        %v2886 = vcombine.low %v2324, %v2332
        %v2887 = vcombine.low %v2340, %v2757
        %v2889 = vunpack.c.l.s4 1966171168
        %v2890 = vunpack.c.0.s8 %v2889
        %v2891 = vlaneseq
        %v2892 = vshrl.u32 %v2891, 7
        %v2893 = vsub.s32 %v2890, %v2892
        %v2894 = vrot.slane %v2884, %v2893
        %v2896 = vunpack.c.l.s4 1966171168
        %v2897 = vunpack.c.0.s8 %v2896
        %v2898 = vlaneseq
        %v2899 = vshrl.u32 %v2898, 7
        %v2900 = vsub.s32 %v2897, %v2899
        %v2901 = vrot.slane %v2885, %v2900
        %v2903 = vunpack.c.l.s4 1966171168
        %v2904 = vunpack.c.0.s8 %v2903
        %v2905 = vlaneseq
        %v2906 = vshrl.u32 %v2905, 7
        %v2907 = vsub.s32 %v2904, %v2906
        %v2908 = vrot.slane %v2886, %v2907
        %v2910 = vunpack.c.l.s4 1966171168
        %v2911 = vunpack.c.0.s8 %v2910
        %v2912 = vlaneseq
        %v2913 = vshrl.u32 %v2912, 7
        %v2914 = vsub.s32 %v2911, %v2913
        %v2915 = vrot.slane %v2887, %v2914
        %v2916 = vcombine.low %v2894, %v2901
        %v2917 = vcombine.low %v2908, %v2915
        %v2919 = vunpack.c.l.s4 1966171168
        %v2920 = vunpack.c.0.s8 %v2919
        %v2921 = vlaneseq
        %v2922 = vshrl.u32 %v2921, 7
        %v2923 = vsub.s32 %v2920, %v2922
        %v2924 = vrot.slane %v2916, %v2923
        %v2926 = vunpack.c.l.s4 1966171168
        %v2927 = vunpack.c.0.s8 %v2926
        %v2928 = vlaneseq
        %v2929 = vshrl.u32 %v2928, 7
        %v2930 = vsub.s32 %v2927, %v2929
        %v2931 = vrot.slane %v2917, %v2930
        %v2932 = vcombine.low %v2924, %v2931
        %v2937 = vunpack.c.l.b16 %v2880
        %v2938 = vunpack.c.l.b16 %v2881
        %v2939 = vunpack.c.l.b16 %v2882
        %v2940 = vunpack.c.l.b16 %v2883
        %v2941 = vpack.c.b16 %v2938, %v2937
        %v2942 = vpack.c.b16 %v2940, %v2939
        %v2946 = vsel %vm536, %v2932, 0
        %2948 = vmatprep.subr.bf16.mxu0 0
        %2949 = vmatpush1.bf16.msra.mxu0 %v2941
        %2950 = vmatprep.subr.bf16.mxu0 0
        %2951 = vmatpush1.bf16.msra.mxu0 %v2942
        %2952 = vmatprep.subr.bf16.mxu0 0
        %2953 = vmatpush1.bf16.msra.mxu0 0
        %2954 = vmatprep.subr.bf16.mxu0 0
        %2955 = vmatpush1.bf16.msra.mxu0 0
        %2956 = vmatprep.subr.bf16.mxu0 0
        %2957 = vmatpush1.bf16.msra.mxu0 0
        %2958 = vmatprep.subr.bf16.mxu0 0
        %2959 = vmatpush1.bf16.msra.mxu0 0
        %2960 = vmatprep.subr.bf16.mxu0 0
        %2961 = vmatpush1.bf16.msra.mxu0 0
        %2962 = vmatprep.subr.bf16.mxu0 0
        %2963 = vmatpush1.bf16.msra.mxu0 0
        %2964 = vmatprep.subr.bf16.mxu0 0
        %2965 = vmatpush1.bf16.msra.mxu0 0
        %2966 = vmatprep.subr.bf16.mxu0 0
        %2967 = vmatpush1.bf16.msra.mxu0 0
        %2968 = vmatprep.subr.bf16.mxu0 0
        %2969 = vmatpush1.bf16.msra.mxu0 0
        %2970 = vmatprep.subr.bf16.mxu0 0
        %2971 = vmatpush1.bf16.msra.mxu0 0
        %2972 = vmatprep.subr.bf16.mxu0 0
        %2973 = vmatpush1.bf16.msra.mxu0 0
        %2974 = vmatprep.subr.bf16.mxu0 0
        %2975 = vmatpush1.bf16.msra.mxu0 0
        %2976 = vmatprep.subr.bf16.mxu0 0
        %2977 = vmatpush1.bf16.msra.mxu0 0
        %2978 = vmatprep.subr.bf16.mxu0 0
        %2979 = vmatpush1.bf16.msra.mxu0 0
        %2980 = vmatprep.mubr.bf16.mxu0 0
        %2981 = vmatmul.mubr.bf16.gmra.mrb[0].mxu0 %v2946
        %v2982 = vpop.f32.mrb[0].mxu0
        %v2983 = vadd.f32 0.0, %v2982
        %v2984 = vpop.f32.mrb[0].mxu0
        %v2985 = vpop.f32.mrb[0].mxu0
        %v2986 = vadd.f32 0.0, %v2985
        %v2987 = vpop.f32.mrb[0].mxu0
        %2988 = vdwg.mxu0
        %v2989 = vadd.f32 %v2877, %v2983
        %v2990 = vadd.f32 %v2878, %v2986
        %s2991 = scalar_lea.vmem [#allocation13], 96
        %v2992 = vld [vmem:[%s2991] sm:$0xf]
        %v2993 = vld [vmem:[%s2991 + $0x4] sm:$0xf]
        %v2994 = vld [vmem:[%s2991 + $0x8] sm:$0xf]
        %v2995 = vld [vmem:[%s2991 + $0xc] sm:$0xf]
        %v2997 = vcombine.low %v1030, %v1031
        %v2999 = vunpack.c.l.s4 1966171168
        %v3000 = vunpack.c.0.s8 %v2999
        %v3001 = vlaneseq
        %v3002 = vshrl.u32 %v3001, 7
        %v3003 = vsub.s32 %v3000, %v3002
        %v3004 = vrot.slane %v2997, %v3003
        %v3005 = vcombine.low %v2187, %v2194
        %v3006 = vcombine.low %v2201, %v3004
        %v3008 = vunpack.c.l.s4 1966171168
        %v3009 = vunpack.c.0.s8 %v3008
        %v3010 = vlaneseq
        %v3011 = vshrl.u32 %v3010, 7
        %v3012 = vsub.s32 %v3009, %v3011
        %v3013 = vrot.slane %v3005, %v3012
        %v3015 = vunpack.c.l.s4 1966171168
        %v3016 = vunpack.c.0.s8 %v3015
        %v3017 = vlaneseq
        %v3018 = vshrl.u32 %v3017, 7
        %v3019 = vsub.s32 %v3016, %v3018
        %v3020 = vrot.slane %v3006, %v3019
        %v3021 = vcombine.low %v3013, %v3020
        %v3026 = vunpack.c.l.b16 %v2992
        %v3027 = vunpack.c.l.b16 %v2993
        %v3028 = vunpack.c.l.b16 %v2994
        %v3029 = vunpack.c.l.b16 %v2995
        %v3030 = vpack.c.b16 %v3027, %v3026
        %v3031 = vpack.c.b16 %v3029, %v3028
        %v3035 = vsel %vm536, %v3021, 0
        %3037 = vmatprep.subr.bf16.mxu0 0
        %3038 = vmatpush1.bf16.msra.mxu0 %v3030
        %3039 = vmatprep.subr.bf16.mxu0 0
        %3040 = vmatpush1.bf16.msra.mxu0 %v3031
        %3041 = vmatprep.subr.bf16.mxu0 0
        %3042 = vmatpush1.bf16.msra.mxu0 0
        %3043 = vmatprep.subr.bf16.mxu0 0
        %3044 = vmatpush1.bf16.msra.mxu0 0
        %3045 = vmatprep.subr.bf16.mxu0 0
        %3046 = vmatpush1.bf16.msra.mxu0 0
        %3047 = vmatprep.subr.bf16.mxu0 0
        %3048 = vmatpush1.bf16.msra.mxu0 0
        %3049 = vmatprep.subr.bf16.mxu0 0
        %3050 = vmatpush1.bf16.msra.mxu0 0
        %3051 = vmatprep.subr.bf16.mxu0 0
        %3052 = vmatpush1.bf16.msra.mxu0 0
        %3053 = vmatprep.subr.bf16.mxu0 0
        %3054 = vmatpush1.bf16.msra.mxu0 0
        %3055 = vmatprep.subr.bf16.mxu0 0
        %3056 = vmatpush1.bf16.msra.mxu0 0
        %3057 = vmatprep.subr.bf16.mxu0 0
        %3058 = vmatpush1.bf16.msra.mxu0 0
        %3059 = vmatprep.subr.bf16.mxu0 0
        %3060 = vmatpush1.bf16.msra.mxu0 0
        %3061 = vmatprep.subr.bf16.mxu0 0
        %3062 = vmatpush1.bf16.msra.mxu0 0
        %3063 = vmatprep.subr.bf16.mxu0 0
        %3064 = vmatpush1.bf16.msra.mxu0 0
        %3065 = vmatprep.subr.bf16.mxu0 0
        %3066 = vmatpush1.bf16.msra.mxu0 0
        %3067 = vmatprep.subr.bf16.mxu0 0
        %3068 = vmatpush1.bf16.msra.mxu0 0
        %3069 = vmatprep.mubr.bf16.mxu0 0
        %3070 = vmatmul.mubr.bf16.gmra.mrb[0].mxu0 %v3035
        %v3071 = vpop.f32.mrb[0].mxu0
        %v3072 = vadd.f32 0.0, %v3071
        %v3073 = vpop.f32.mrb[0].mxu0
        %v3074 = vpop.f32.mrb[0].mxu0
        %v3075 = vadd.f32 0.0, %v3074
        %v3076 = vpop.f32.mrb[0].mxu0
        %3077 = vdwg.mxu0
        %v3078 = vadd.f32 %v2989, %v3072
        %v3079 = vadd.f32 %v2990, %v3075
        %v3081 = vunpack.c.l.s4 1966171168
        %v3082 = vunpack.c.0.s8 %v3081
        %v3083 = vlaneseq
        %v3084 = vshrl.u32 %v3083, 7
        %v3085 = vsub.s32 %v3082, %v3084
        %v3086 = vrot.slane %v1031, %v3085
        %v3087 = vcombine.high %v3086, %v3086
        %v3089 = vshrl.u32 %v3086, 16
        %v3091 = vrot.slane %v3089, 7
        %v3092 = vrot.slane %v3091, 1
        %v3094 = vshll.u32 %v3087, 16
        %v3096 = vsel %vm1122, %v3092, %v3094
        %s3097 = scalar_lea.vmem [#allocation13], 112
        %v3098 = vld [vmem:[%s3097] sm:$0xf]
        %v3099 = vld [vmem:[%s3097 + $0x4] sm:$0xf]
        %v3100 = vld [vmem:[%s3097 + $0x8] sm:$0xf]
        %v3101 = vld [vmem:[%s3097 + $0xc] sm:$0xf]
        %v3102 = vcombine.low %v2766, %v3096
        %v3104 = vunpack.c.l.s4 1966171168
        %v3105 = vunpack.c.0.s8 %v3104
        %v3106 = vlaneseq
        %v3107 = vshrl.u32 %v3106, 7
        %v3108 = vsub.s32 %v3105, %v3107
        %v3109 = vrot.slane %v3102, %v3108
        %v3110 = vcombine.low %v2435, %v2442
        %v3111 = vcombine.low %v2449, %v3109
        %v3113 = vunpack.c.l.s4 1966171168
        %v3114 = vunpack.c.0.s8 %v3113
        %v3115 = vlaneseq
        %v3116 = vshrl.u32 %v3115, 7
        %v3117 = vsub.s32 %v3114, %v3116
        %v3118 = vrot.slane %v3110, %v3117
        %v3120 = vunpack.c.l.s4 1966171168
        %v3121 = vunpack.c.0.s8 %v3120
        %v3122 = vlaneseq
        %v3123 = vshrl.u32 %v3122, 7
        %v3124 = vsub.s32 %v3121, %v3123
        %v3125 = vrot.slane %v3111, %v3124
        %v3126 = vcombine.low %v3118, %v3125
        %v3131 = vunpack.c.l.b16 %v3098
        %v3132 = vunpack.c.l.b16 %v3099
        %v3133 = vunpack.c.l.b16 %v3100
        %v3134 = vunpack.c.l.b16 %v3101
        %v3135 = vpack.c.b16 %v3132, %v3131
        %v3136 = vpack.c.b16 %v3134, %v3133
        %v3140 = vsel %vm536, %v3126, 0
        %3142 = vmatprep.subr.bf16.mxu0 0
        %3143 = vmatpush1.bf16.msra.mxu0 %v3135
        %3144 = vmatprep.subr.bf16.mxu0 0
        %3145 = vmatpush1.bf16.msra.mxu0 %v3136
        %3146 = vmatprep.subr.bf16.mxu0 0
        %3147 = vmatpush1.bf16.msra.mxu0 0
        %3148 = vmatprep.subr.bf16.mxu0 0
        %3149 = vmatpush1.bf16.msra.mxu0 0
        %3150 = vmatprep.subr.bf16.mxu0 0
        %3151 = vmatpush1.bf16.msra.mxu0 0
        %3152 = vmatprep.subr.bf16.mxu0 0
        %3153 = vmatpush1.bf16.msra.mxu0 0
        %3154 = vmatprep.subr.bf16.mxu0 0
        %3155 = vmatpush1.bf16.msra.mxu0 0
        %3156 = vmatprep.subr.bf16.mxu0 0
        %3157 = vmatpush1.bf16.msra.mxu0 0
        %3158 = vmatprep.subr.bf16.mxu0 0
        %3159 = vmatpush1.bf16.msra.mxu0 0
        %3160 = vmatprep.subr.bf16.mxu0 0
        %3161 = vmatpush1.bf16.msra.mxu0 0
        %3162 = vmatprep.subr.bf16.mxu0 0
        %3163 = vmatpush1.bf16.msra.mxu0 0
        %3164 = vmatprep.subr.bf16.mxu0 0
        %3165 = vmatpush1.bf16.msra.mxu0 0
        %3166 = vmatprep.subr.bf16.mxu0 0
        %3167 = vmatpush1.bf16.msra.mxu0 0
        %3168 = vmatprep.subr.bf16.mxu0 0
        %3169 = vmatpush1.bf16.msra.mxu0 0
        %3170 = vmatprep.subr.bf16.mxu0 0
        %3171 = vmatpush1.bf16.msra.mxu0 0
        %3172 = vmatprep.subr.bf16.mxu0 0
        %3173 = vmatpush1.bf16.msra.mxu0 0
        %3174 = vmatprep.mubr.bf16.mxu0 0
        %3175 = vmatmul.mubr.bf16.gmra.mrb[0].mxu0 %v3140
        %v3176 = vpop.f32.mrb[0].mxu0
        %v3177 = vadd.f32 0.0, %v3176
        %v3178 = vpop.f32.mrb[0].mxu0
        %v3179 = vpop.f32.mrb[0].mxu0
        %v3180 = vadd.f32 0.0, %v3179
        %v3181 = vpop.f32.mrb[0].mxu0
        %3182 = vdwg.mxu0
        %v3183 = vadd.f32 %v3078, %v3177
        %v3184 = vadd.f32 %v3079, %v3180
        %s3185 = scalar_lea.vmem [#allocation13], 128
        %v3186 = vld [vmem:[%s3185] sm:$0xf]
        %v3187 = vld [vmem:[%s3185 + $0x4] sm:$0xf]
        %v3188 = vld [vmem:[%s3185 + $0x8] sm:$0xf]
        %v3189 = vld [vmem:[%s3185 + $0xc] sm:$0xf]
        %v3190 = vcombine.low %v2757, %v3087
        %v3192 = vunpack.c.l.s4 1966171168
        %v3193 = vunpack.c.0.s8 %v3192
        %v3194 = vlaneseq
        %v3195 = vshrl.u32 %v3194, 7
        %v3196 = vsub.s32 %v3193, %v3195
        %v3197 = vrot.slane %v3190, %v3196
        %v3198 = vcombine.low %v2547, %v2554
        %v3199 = vcombine.low %v2561, %v3197
        %v3201 = vunpack.c.l.s4 1966171168
        %v3202 = vunpack.c.0.s8 %v3201
        %v3203 = vlaneseq
        %v3204 = vshrl.u32 %v3203, 7
        %v3205 = vsub.s32 %v3202, %v3204
        %v3206 = vrot.slane %v3198, %v3205
        %v3208 = vunpack.c.l.s4 1966171168
        %v3209 = vunpack.c.0.s8 %v3208
        %v3210 = vlaneseq
        %v3211 = vshrl.u32 %v3210, 7
        %v3212 = vsub.s32 %v3209, %v3211
        %v3213 = vrot.slane %v3199, %v3212
        %v3214 = vcombine.low %v3206, %v3213
        %v3219 = vunpack.c.l.b16 %v3186
        %v3220 = vunpack.c.l.b16 %v3187
        %v3221 = vunpack.c.l.b16 %v3188
        %v3222 = vunpack.c.l.b16 %v3189
        %v3223 = vpack.c.b16 %v3220, %v3219
        %v3224 = vpack.c.b16 %v3222, %v3221
        %v3228 = vsel %vm536, %v3214, 0
        %3230 = vmatprep.subr.bf16.mxu0 0
        %3231 = vmatpush1.bf16.msra.mxu0 %v3223
        %3232 = vmatprep.subr.bf16.mxu0 0
        %3233 = vmatpush1.bf16.msra.mxu0 %v3224
        %3234 = vmatprep.subr.bf16.mxu0 0
        %3235 = vmatpush1.bf16.msra.mxu0 0
        %3236 = vmatprep.subr.bf16.mxu0 0
        %3237 = vmatpush1.bf16.msra.mxu0 0
        %3238 = vmatprep.subr.bf16.mxu0 0
        %3239 = vmatpush1.bf16.msra.mxu0 0
        %3240 = vmatprep.subr.bf16.mxu0 0
        %3241 = vmatpush1.bf16.msra.mxu0 0
        %3242 = vmatprep.subr.bf16.mxu0 0
        %3243 = vmatpush1.bf16.msra.mxu0 0
        %3244 = vmatprep.subr.bf16.mxu0 0
        %3245 = vmatpush1.bf16.msra.mxu0 0
        %3246 = vmatprep.subr.bf16.mxu0 0
        %3247 = vmatpush1.bf16.msra.mxu0 0
        %3248 = vmatprep.subr.bf16.mxu0 0
        %3249 = vmatpush1.bf16.msra.mxu0 0
        %3250 = vmatprep.subr.bf16.mxu0 0
        %3251 = vmatpush1.bf16.msra.mxu0 0
        %3252 = vmatprep.subr.bf16.mxu0 0
        %3253 = vmatpush1.bf16.msra.mxu0 0
        %3254 = vmatprep.subr.bf16.mxu0 0
        %3255 = vmatpush1.bf16.msra.mxu0 0
        %3256 = vmatprep.subr.bf16.mxu0 0
        %3257 = vmatpush1.bf16.msra.mxu0 0
        %3258 = vmatprep.subr.bf16.mxu0 0
        %3259 = vmatpush1.bf16.msra.mxu0 0
        %3260 = vmatprep.subr.bf16.mxu0 0
        %3261 = vmatpush1.bf16.msra.mxu0 0
        %3262 = vmatprep.mubr.bf16.mxu0 0
        %3263 = vmatmul.mubr.bf16.gmra.mrb[0].mxu0 %v3228
        %v3264 = vpop.f32.mrb[0].mxu0
        %v3265 = vadd.f32 0.0, %v3264
        %v3266 = vpop.f32.mrb[0].mxu0
        %v3267 = vpop.f32.mrb[0].mxu0
        %v3268 = vadd.f32 0.0, %v3267
        %v3269 = vpop.f32.mrb[0].mxu0
        %3270 = vdwg.mxu0
        %v3271 = vadd.f32 %v3183, %v3265
        %v3272 = vadd.f32 %v3184, %v3268
        %v3273 = vld [vmem:[%s6] sm:$0x1]
        %v3275 = vlaneseq
        %v3276 = vshrl.u32 %v3275, 7
        %v3277 = vsub.s32 0, %v3276
        %v3278 = vrot.slane %v3273, %v3277
        %v3280 = vadd.f32 %v3271, %v3278
        %v3281 = vadd.f32 %v3272, %v3278
        %v3282 = vmax.f32 %v3280, 0.0
        %v3283 = vmax.f32 %v3281, 0.0
        %v3284 = vpack.c.bf16 %v3283, %v3282
        %v3286 = vcombine.high %v3284, %v3284
        %v3288 = vunpack.c.l.s4 1966171168
        %v3289 = vunpack.c.0.s8 %v3288
        %v3290 = vlaneseq
        %v3291 = vshrl.u32 %v3290, 7
        %v3292 = vsub.s32 %v3289, %v3291
        %v3293 = vrot.slane %v3284, %v3292
        %v3295 = vunpack.c.l.s4 1966171168
        %v3296 = vunpack.c.0.s8 %v3295
        %v3297 = vlaneseq
        %v3298 = vshrl.u32 %v3297, 7
        %v3299 = vsub.s32 %v3296, %v3298
        %v3300 = vrot.slane %v3286, %v3299
        %v3301 = vcombine.high %v3293, %v3293
        %v3302 = vcombine.high %v3300, %v3300
        %v3304 = vunpack.c.l.s4 1966171168
        %v3305 = vunpack.c.0.s8 %v3304
        %v3306 = vlaneseq
        %v3307 = vshrl.u32 %v3306, 7
        %v3308 = vsub.s32 %v3305, %v3307
        %v3309 = vrot.slane %v3293, %v3308
        %v3311 = vunpack.c.l.s4 1966171168
        %v3312 = vunpack.c.0.s8 %v3311
        %v3313 = vlaneseq
        %v3314 = vshrl.u32 %v3313, 7
        %v3315 = vsub.s32 %v3312, %v3314
        %v3316 = vrot.slane %v3300, %v3315
        %v3318 = vunpack.c.l.s4 1966171168
        %v3319 = vunpack.c.0.s8 %v3318
        %v3320 = vlaneseq
        %v3321 = vshrl.u32 %v3320, 7
        %v3322 = vsub.s32 %v3319, %v3321
        %v3323 = vrot.slane %v3301, %v3322
        %v3325 = vunpack.c.l.s4 1966171168
        %v3326 = vunpack.c.0.s8 %v3325
        %v3327 = vlaneseq
        %v3328 = vshrl.u32 %v3327, 7
        %v3329 = vsub.s32 %v3326, %v3328
        %v3330 = vrot.slane %v3302, %v3329
        %v3331 = vcombine.high %v3309, %v3309
        %v3332 = vcombine.high %v3316, %v3316
        %v3333 = vcombine.high %v3323, %v3323
        %v3334 = vcombine.high %v3330, %v3330
        %v3336 = vunpack.c.l.s4 1935823168
        %v3337 = vunpack.c.0.s8 %v3336
        %v3338 = vlaneseq
        %v3339 = vshrl.u32 %v3338, 7
        %v3340 = vsub.s32 %v3337, %v3339
        %v3341 = vrot.slane %v3309, %v3340
        %v3343 = vunpack.c.l.s4 1935823168
        %v3344 = vunpack.c.0.s8 %v3343
        %v3345 = vlaneseq
        %v3346 = vshrl.u32 %v3345, 7
        %v3347 = vsub.s32 %v3344, %v3346
        %v3348 = vrot.slane %v3323, %v3347
        %v3350 = vunpack.c.l.s4 1935823168
        %v3351 = vunpack.c.0.s8 %v3350
        %v3352 = vlaneseq
        %v3353 = vshrl.u32 %v3352, 7
        %v3354 = vsub.s32 %v3351, %v3353
        %v3355 = vrot.slane %v3331, %v3354
        %v3357 = vunpack.c.l.s4 1935823168
        %v3358 = vunpack.c.0.s8 %v3357
        %v3359 = vlaneseq
        %v3360 = vshrl.u32 %v3359, 7
        %v3361 = vsub.s32 %v3358, %v3360
        %v3362 = vrot.slane %v3333, %v3361
        %v3364 = vunpack.c.l.s4 1935823168
        %v3365 = vunpack.c.0.s8 %v3364
        %v3366 = vlaneseq
        %v3367 = vshrl.u32 %v3366, 7
        %v3368 = vsub.s32 %v3365, %v3367
        %v3369 = vrot.slane %v3316, %v3368
        %v3371 = vunpack.c.l.s4 1935823168
        %v3372 = vunpack.c.0.s8 %v3371
        %v3373 = vlaneseq
        %v3374 = vshrl.u32 %v3373, 7
        %v3375 = vsub.s32 %v3372, %v3374
        %v3376 = vrot.slane %v3330, %v3375
        %v3378 = vunpack.c.l.s4 1935823168
        %v3379 = vunpack.c.0.s8 %v3378
        %v3380 = vlaneseq
        %v3381 = vshrl.u32 %v3380, 7
        %v3382 = vsub.s32 %v3379, %v3381
        %v3383 = vrot.slane %v3332, %v3382
        %v3385 = vunpack.c.l.s4 1935823168
        %v3386 = vunpack.c.0.s8 %v3385
        %v3387 = vlaneseq
        %v3388 = vshrl.u32 %v3387, 7
        %v3389 = vsub.s32 %v3386, %v3388
        %v3390 = vrot.slane %v3334, %v3389
        %v3392 = vshrl.u32 %v3341, 16
        %v3394 = vrot.slane %v3392, 7
        %v3395 = vshll.u32 %v3341, 16
        %v3397 = vor.u32 %v3394, %v3395
        %v3399 = vshrl.u32 %v3348, 16
        %v3401 = vrot.slane %v3399, 7
        %v3402 = vshll.u32 %v3348, 16
        %v3404 = vor.u32 %v3401, %v3402
        %v3406 = vshrl.u32 %v3355, 16
        %v3408 = vrot.slane %v3406, 7
        %v3409 = vshll.u32 %v3355, 16
        %v3411 = vor.u32 %v3408, %v3409
        %v3413 = vshrl.u32 %v3362, 16
        %v3415 = vrot.slane %v3413, 7
        %v3416 = vshll.u32 %v3362, 16
        %v3418 = vor.u32 %v3415, %v3416
        %v3420 = vshrl.u32 %v3369, 16
        %v3422 = vrot.slane %v3420, 7
        %v3423 = vshll.u32 %v3369, 16
        %v3425 = vor.u32 %v3422, %v3423
        %v3427 = vshrl.u32 %v3376, 16
        %v3429 = vrot.slane %v3427, 7
        %v3430 = vshll.u32 %v3376, 16
        %v3432 = vor.u32 %v3429, %v3430
        %v3434 = vshrl.u32 %v3383, 16
        %v3436 = vrot.slane %v3434, 7
        %v3437 = vshll.u32 %v3383, 16
        %v3439 = vor.u32 %v3436, %v3437
        %v3441 = vshrl.u32 %v3390, 16
        %v3443 = vrot.slane %v3441, 7
        %v3444 = vshll.u32 %v3390, 16
        %v3446 = vor.u32 %v3443, %v3444
        %s3455 = scalar_lea.vmem [#allocation4], 2
        %v3456 = vld [vmem:[%s3455] sm:$0x3]
        %v3457 = vsel %vm624, %v3397, %v3456
        %3458 = vst [vmem:[%s3455] sm:$0x3] %v3457
        %v3459 = vld [vmem:[%s3455 + $0x2] sm:$0x3]
        %v3460 = vsel %vm624, %v3404, %v3459
        %3461 = vst [vmem:[%s3455 + $0x2] sm:$0x3] %v3460
        %v3462 = vld [vmem:[%s3455 + $0x4] sm:$0x3]
        %v3463 = vsel %vm624, %v3411, %v3462
        %3464 = vst [vmem:[%s3455 + $0x4] sm:$0x3] %v3463
        %v3465 = vld [vmem:[%s3455 + $0x6] sm:$0x3]
        %v3466 = vsel %vm624, %v3418, %v3465
        %3467 = vst [vmem:[%s3455 + $0x6] sm:$0x3] %v3466
        %v3468 = vld [vmem:[%s3455 + $0x8] sm:$0x3]
        %v3469 = vsel %vm624, %v3425, %v3468
        %3470 = vst [vmem:[%s3455 + $0x8] sm:$0x3] %v3469
        %v3471 = vld [vmem:[%s3455 + $0xa] sm:$0x3]
        %v3472 = vsel %vm624, %v3432, %v3471
        %3473 = vst [vmem:[%s3455 + $0xa] sm:$0x3] %v3472
        %v3474 = vld [vmem:[%s3455 + $0xc] sm:$0x3]
        %v3475 = vsel %vm624, %v3439, %v3474
        %3476 = vst [vmem:[%s3455 + $0xc] sm:$0x3] %v3475
        %v3477 = vld [vmem:[%s3455 + $0xe] sm:$0x3]
        %v3478 = vsel %vm624, %v3446, %v3477
        %3479 = vst [vmem:[%s3455 + $0xe] sm:$0x3] %v3478
        %v3480 = vld [vmem:[#allocation4] sm:$0x3]
        %v3481 = vld [vmem:[#allocation4 + $0x2] sm:$0x3]
        %v3482 = vld [vmem:[#allocation4 + $0x4] sm:$0x3]
        %v3483 = vld [vmem:[#allocation4 + $0x6] sm:$0x3]
        %v3484 = vld [vmem:[#allocation4 + $0x8] sm:$0x3]
        %v3485 = vld [vmem:[#allocation4 + $0xa] sm:$0x3]
        %v3486 = vld [vmem:[#allocation4 + $0xc] sm:$0x3]
        %v3487 = vld [vmem:[#allocation4 + $0xe] sm:$0x3]
        %v3488 = vld [vmem:[#allocation4 + $0x10] sm:$0x3]
        %v3489 = vld [vmem:[#allocation4 + $0x12] sm:$0x3]
        %v3490 = vld [vmem:[#allocation14] sm:$0xf]
        %v3491 = vld [vmem:[#allocation14 + $0x4] sm:$0xf]
        %v3492 = vld [vmem:[#allocation14 + $0x8] sm:$0xf]
        %v3493 = vld [vmem:[#allocation14 + $0xc] sm:$0xf]
        %v3503 = vunpack.c.l.s4 1966171168
        %v3504 = vunpack.c.0.s8 %v3503
        %v3505 = vlaneseq
        %v3506 = vshrl.u32 %v3505, 7
        %v3507 = vsub.s32 %v3504, %v3506
        %v3508 = vrot.slane %v3480, %v3507
        %v3509 = vcombine.high %v3508, %v3508
        %v3511 = vunpack.c.l.s4 1966171168
        %v3512 = vunpack.c.0.s8 %v3511
        %v3513 = vlaneseq
        %v3514 = vshrl.u32 %v3513, 7
        %v3515 = vsub.s32 %v3512, %v3514
        %v3516 = vrot.slane %v3481, %v3515
        %v3517 = vcombine.high %v3516, %v3516
        %v3519 = vunpack.c.l.s4 1966171168
        %v3520 = vunpack.c.0.s8 %v3519
        %v3521 = vlaneseq
        %v3522 = vshrl.u32 %v3521, 7
        %v3523 = vsub.s32 %v3520, %v3522
        %v3524 = vrot.slane %v3482, %v3523
        %v3525 = vcombine.high %v3524, %v3524
        %v3527 = vunpack.c.l.s4 1966171168
        %v3528 = vunpack.c.0.s8 %v3527
        %v3529 = vlaneseq
        %v3530 = vshrl.u32 %v3529, 7
        %v3531 = vsub.s32 %v3528, %v3530
        %v3532 = vrot.slane %v3483, %v3531
        %v3533 = vcombine.high %v3532, %v3532
        %v3535 = vunpack.c.l.s4 1966171168
        %v3536 = vunpack.c.0.s8 %v3535
        %v3537 = vlaneseq
        %v3538 = vshrl.u32 %v3537, 7
        %v3539 = vsub.s32 %v3536, %v3538
        %v3540 = vrot.slane %v3484, %v3539
        %v3541 = vcombine.high %v3540, %v3540
        %v3543 = vunpack.c.l.s4 1966171168
        %v3544 = vunpack.c.0.s8 %v3543
        %v3545 = vlaneseq
        %v3546 = vshrl.u32 %v3545, 7
        %v3547 = vsub.s32 %v3544, %v3546
        %v3548 = vrot.slane %v3485, %v3547
        %v3549 = vcombine.high %v3548, %v3548
        %v3551 = vunpack.c.l.s4 1966171168
        %v3552 = vunpack.c.0.s8 %v3551
        %v3553 = vlaneseq
        %v3554 = vshrl.u32 %v3553, 7
        %v3555 = vsub.s32 %v3552, %v3554
        %v3556 = vrot.slane %v3486, %v3555
        %v3557 = vcombine.high %v3556, %v3556
        %v3559 = vunpack.c.l.s4 1966171168
        %v3560 = vunpack.c.0.s8 %v3559
        %v3561 = vlaneseq
        %v3562 = vshrl.u32 %v3561, 7
        %v3563 = vsub.s32 %v3560, %v3562
        %v3564 = vrot.slane %v3487, %v3563
        %v3565 = vcombine.high %v3564, %v3564
        %v3567 = vshrl.u32 %v3508, 16
        %v3569 = vrot.slane %v3567, 7
        %v3570 = vrot.slane %v3569, 1
        %v3572 = vshll.u32 %v3509, 16
        %v3574 = vsel %vm1122, %v3570, %v3572
        %v3576 = vshrl.u32 %v3516, 16
        %v3578 = vrot.slane %v3576, 7
        %v3579 = vrot.slane %v3578, 1
        %v3581 = vshll.u32 %v3517, 16
        %v3583 = vsel %vm1122, %v3579, %v3581
        %v3585 = vshrl.u32 %v3524, 16
        %v3587 = vrot.slane %v3585, 7
        %v3588 = vrot.slane %v3587, 1
        %v3590 = vshll.u32 %v3525, 16
        %v3592 = vsel %vm1122, %v3588, %v3590
        %v3594 = vshrl.u32 %v3532, 16
        %v3596 = vrot.slane %v3594, 7
        %v3597 = vrot.slane %v3596, 1
        %v3599 = vshll.u32 %v3533, 16
        %v3601 = vsel %vm1122, %v3597, %v3599
        %v3603 = vshrl.u32 %v3540, 16
        %v3605 = vrot.slane %v3603, 7
        %v3606 = vrot.slane %v3605, 1
        %v3608 = vshll.u32 %v3541, 16
        %v3610 = vsel %vm1122, %v3606, %v3608
        %v3612 = vshrl.u32 %v3548, 16
        %v3614 = vrot.slane %v3612, 7
        %v3615 = vrot.slane %v3614, 1
        %v3617 = vshll.u32 %v3549, 16
        %v3619 = vsel %vm1122, %v3615, %v3617
        %v3621 = vshrl.u32 %v3556, 16
        %v3623 = vrot.slane %v3621, 7
        %v3624 = vrot.slane %v3623, 1
        %v3626 = vshll.u32 %v3557, 16
        %v3628 = vsel %vm1122, %v3624, %v3626
        %v3630 = vshrl.u32 %v3564, 16
        %v3632 = vrot.slane %v3630, 7
        %v3633 = vrot.slane %v3632, 1
        %v3635 = vshll.u32 %v3565, 16
        %v3637 = vsel %vm1122, %v3633, %v3635
        %s3638 = scalar_lea.vmem [#allocation14], 16
        %v3639 = vld [vmem:[%s3638] sm:$0xf]
        %v3640 = vld [vmem:[%s3638 + $0x4] sm:$0xf]
        %v3641 = vld [vmem:[%s3638 + $0x8] sm:$0xf]
        %v3642 = vld [vmem:[%s3638 + $0xc] sm:$0xf]
        %v3643 = vcombine.low %v3574, %v3583
        %v3644 = vcombine.low %v3592, %v3601
        %v3645 = vcombine.low %v3610, %v3619
        %v3646 = vcombine.low %v3628, %v3637
        %v3648 = vunpack.c.l.s4 1966171168
        %v3649 = vunpack.c.0.s8 %v3648
        %v3650 = vlaneseq
        %v3651 = vshrl.u32 %v3650, 7
        %v3652 = vsub.s32 %v3649, %v3651
        %v3653 = vrot.slane %v3643, %v3652
        %v3655 = vunpack.c.l.s4 1966171168
        %v3656 = vunpack.c.0.s8 %v3655
        %v3657 = vlaneseq
        %v3658 = vshrl.u32 %v3657, 7
        %v3659 = vsub.s32 %v3656, %v3658
        %v3660 = vrot.slane %v3644, %v3659
        %v3662 = vunpack.c.l.s4 1966171168
        %v3663 = vunpack.c.0.s8 %v3662
        %v3664 = vlaneseq
        %v3665 = vshrl.u32 %v3664, 7
        %v3666 = vsub.s32 %v3663, %v3665
        %v3667 = vrot.slane %v3645, %v3666
        %v3669 = vunpack.c.l.s4 1966171168
        %v3670 = vunpack.c.0.s8 %v3669
        %v3671 = vlaneseq
        %v3672 = vshrl.u32 %v3671, 7
        %v3673 = vsub.s32 %v3670, %v3672
        %v3674 = vrot.slane %v3646, %v3673
        %v3675 = vcombine.low %v3653, %v3660
        %v3676 = vcombine.low %v3667, %v3674
        %v3678 = vunpack.c.l.s4 1966171168
        %v3679 = vunpack.c.0.s8 %v3678
        %v3680 = vlaneseq
        %v3681 = vshrl.u32 %v3680, 7
        %v3682 = vsub.s32 %v3679, %v3681
        %v3683 = vrot.slane %v3675, %v3682
        %v3685 = vunpack.c.l.s4 1966171168
        %v3686 = vunpack.c.0.s8 %v3685
        %v3687 = vlaneseq
        %v3688 = vshrl.u32 %v3687, 7
        %v3689 = vsub.s32 %v3686, %v3688
        %v3690 = vrot.slane %v3676, %v3689
        %v3691 = vcombine.low %v3683, %v3690
        %v3696 = vunpack.c.l.b16 %v3639
        %v3697 = vunpack.c.l.b16 %v3640
        %v3698 = vunpack.c.l.b16 %v3641
        %v3699 = vunpack.c.l.b16 %v3642
        %v3700 = vpack.c.b16 %v3697, %v3696
        %v3701 = vpack.c.b16 %v3699, %v3698
        %v3705 = vsel %vm536, %v3691, 0
        %3707 = vmatprep.subr.bf16.mxu0 0
        %3708 = vmatpush1.bf16.msra.mxu0 %v3700
        %3709 = vmatprep.subr.bf16.mxu0 0
        %3710 = vmatpush1.bf16.msra.mxu0 %v3701
        %3711 = vmatprep.subr.bf16.mxu0 0
        %3712 = vmatpush1.bf16.msra.mxu0 0
        %3713 = vmatprep.subr.bf16.mxu0 0
        %3714 = vmatpush1.bf16.msra.mxu0 0
        %3715 = vmatprep.subr.bf16.mxu0 0
        %3716 = vmatpush1.bf16.msra.mxu0 0
        %3717 = vmatprep.subr.bf16.mxu0 0
        %3718 = vmatpush1.bf16.msra.mxu0 0
        %3719 = vmatprep.subr.bf16.mxu0 0
        %3720 = vmatpush1.bf16.msra.mxu0 0
        %3721 = vmatprep.subr.bf16.mxu0 0
        %3722 = vmatpush1.bf16.msra.mxu0 0
        %3723 = vmatprep.subr.bf16.mxu0 0
        %3724 = vmatpush1.bf16.msra.mxu0 0
        %3725 = vmatprep.subr.bf16.mxu0 0
        %3726 = vmatpush1.bf16.msra.mxu0 0
        %3727 = vmatprep.subr.bf16.mxu0 0
        %3728 = vmatpush1.bf16.msra.mxu0 0
        %3729 = vmatprep.subr.bf16.mxu0 0
        %3730 = vmatpush1.bf16.msra.mxu0 0
        %3731 = vmatprep.subr.bf16.mxu0 0
        %3732 = vmatpush1.bf16.msra.mxu0 0
        %3733 = vmatprep.subr.bf16.mxu0 0
        %3734 = vmatpush1.bf16.msra.mxu0 0
        %3735 = vmatprep.subr.bf16.mxu0 0
        %3736 = vmatpush1.bf16.msra.mxu0 0
        %3737 = vmatprep.subr.bf16.mxu0 0
        %3738 = vmatpush1.bf16.msra.mxu0 0
        %3739 = vmatprep.mubr.bf16.mxu0 0
        %3740 = vmatmul.mubr.bf16.gmra.mrb[0].mxu0 %v3705
        %v3741 = vpop.f32.mrb[0].mxu0
        %v3742 = vadd.f32 0.0, %v3741
        %v3743 = vpop.f32.mrb[0].mxu0
        %v3744 = vpop.f32.mrb[0].mxu0
        %v3745 = vadd.f32 0.0, %v3744
        %v3746 = vpop.f32.mrb[0].mxu0
        %3747 = vdwg.mxu0
        %v3748 = vcombine.low %v3480, %v3481
        %v3749 = vcombine.low %v3482, %v3483
        %v3750 = vcombine.low %v3484, %v3485
        %v3751 = vcombine.low %v3486, %v3487
        %v3753 = vunpack.c.l.s4 1966171168
        %v3754 = vunpack.c.0.s8 %v3753
        %v3755 = vlaneseq
        %v3756 = vshrl.u32 %v3755, 7
        %v3757 = vsub.s32 %v3754, %v3756
        %v3758 = vrot.slane %v3748, %v3757
        %v3760 = vunpack.c.l.s4 1966171168
        %v3761 = vunpack.c.0.s8 %v3760
        %v3762 = vlaneseq
        %v3763 = vshrl.u32 %v3762, 7
        %v3764 = vsub.s32 %v3761, %v3763
        %v3765 = vrot.slane %v3749, %v3764
        %v3767 = vunpack.c.l.s4 1966171168
        %v3768 = vunpack.c.0.s8 %v3767
        %v3769 = vlaneseq
        %v3770 = vshrl.u32 %v3769, 7
        %v3771 = vsub.s32 %v3768, %v3770
        %v3772 = vrot.slane %v3750, %v3771
        %v3774 = vunpack.c.l.s4 1966171168
        %v3775 = vunpack.c.0.s8 %v3774
        %v3776 = vlaneseq
        %v3777 = vshrl.u32 %v3776, 7
        %v3778 = vsub.s32 %v3775, %v3777
        %v3779 = vrot.slane %v3751, %v3778
        %v3780 = vcombine.low %v3758, %v3765
        %v3781 = vcombine.low %v3772, %v3779
        %v3783 = vunpack.c.l.s4 1966171168
        %v3784 = vunpack.c.0.s8 %v3783
        %v3785 = vlaneseq
        %v3786 = vshrl.u32 %v3785, 7
        %v3787 = vsub.s32 %v3784, %v3786
        %v3788 = vrot.slane %v3780, %v3787
        %v3790 = vunpack.c.l.s4 1966171168
        %v3791 = vunpack.c.0.s8 %v3790
        %v3792 = vlaneseq
        %v3793 = vshrl.u32 %v3792, 7
        %v3794 = vsub.s32 %v3791, %v3793
        %v3795 = vrot.slane %v3781, %v3794
        %v3796 = vcombine.low %v3788, %v3795
        %v3801 = vunpack.c.l.b16 %v3490
        %v3802 = vunpack.c.l.b16 %v3491
        %v3803 = vunpack.c.l.b16 %v3492
        %v3804 = vunpack.c.l.b16 %v3493
        %v3805 = vpack.c.b16 %v3802, %v3801
        %v3806 = vpack.c.b16 %v3804, %v3803
        %v3810 = vsel %vm536, %v3796, 0
        %3812 = vmatprep.subr.bf16.mxu0 0
        %3813 = vmatpush1.bf16.msra.mxu0 %v3805
        %3814 = vmatprep.subr.bf16.mxu0 0
        %3815 = vmatpush1.bf16.msra.mxu0 %v3806
        %3816 = vmatprep.subr.bf16.mxu0 0
        %3817 = vmatpush1.bf16.msra.mxu0 0
        %3818 = vmatprep.subr.bf16.mxu0 0
        %3819 = vmatpush1.bf16.msra.mxu0 0
        %3820 = vmatprep.subr.bf16.mxu0 0
        %3821 = vmatpush1.bf16.msra.mxu0 0
        %3822 = vmatprep.subr.bf16.mxu0 0
        %3823 = vmatpush1.bf16.msra.mxu0 0
        %3824 = vmatprep.subr.bf16.mxu0 0
        %3825 = vmatpush1.bf16.msra.mxu0 0
        %3826 = vmatprep.subr.bf16.mxu0 0
        %3827 = vmatpush1.bf16.msra.mxu0 0
        %3828 = vmatprep.subr.bf16.mxu0 0
        %3829 = vmatpush1.bf16.msra.mxu0 0
        %3830 = vmatprep.subr.bf16.mxu0 0
        %3831 = vmatpush1.bf16.msra.mxu0 0
        %3832 = vmatprep.subr.bf16.mxu0 0
        %3833 = vmatpush1.bf16.msra.mxu0 0
        %3834 = vmatprep.subr.bf16.mxu0 0
        %3835 = vmatpush1.bf16.msra.mxu0 0
        %3836 = vmatprep.subr.bf16.mxu0 0
        %3837 = vmatpush1.bf16.msra.mxu0 0
        %3838 = vmatprep.subr.bf16.mxu0 0
        %3839 = vmatpush1.bf16.msra.mxu0 0
        %3840 = vmatprep.subr.bf16.mxu0 0
        %3841 = vmatpush1.bf16.msra.mxu0 0
        %3842 = vmatprep.subr.bf16.mxu0 0
        %3843 = vmatpush1.bf16.msra.mxu0 0
        %3844 = vmatprep.mubr.bf16.mxu0 0
        %3845 = vmatmul.mubr.bf16.gmra.mrb[0].mxu0 %v3810
        %v3846 = vpop.f32.mrb[0].mxu0
        %v3847 = vadd.f32 %v3742, %v3846
        %v3848 = vpop.f32.mrb[0].mxu0
        %v3849 = vpop.f32.mrb[0].mxu0
        %v3850 = vadd.f32 %v3745, %v3849
        %v3851 = vpop.f32.mrb[0].mxu0
        %3852 = vdwg.mxu0
        %s3853 = scalar_lea.vmem [#allocation14], 32
        %v3854 = vld [vmem:[%s3853] sm:$0xf]
        %v3855 = vld [vmem:[%s3853 + $0x4] sm:$0xf]
        %v3856 = vld [vmem:[%s3853 + $0x8] sm:$0xf]
        %v3857 = vld [vmem:[%s3853 + $0xc] sm:$0xf]
        %v3858 = vcombine.low %v3509, %v3517
        %v3859 = vcombine.low %v3525, %v3533
        %v3860 = vcombine.low %v3541, %v3549
        %v3861 = vcombine.low %v3557, %v3565
        %v3863 = vunpack.c.l.s4 1966171168
        %v3864 = vunpack.c.0.s8 %v3863
        %v3865 = vlaneseq
        %v3866 = vshrl.u32 %v3865, 7
        %v3867 = vsub.s32 %v3864, %v3866
        %v3868 = vrot.slane %v3858, %v3867
        %v3870 = vunpack.c.l.s4 1966171168
        %v3871 = vunpack.c.0.s8 %v3870
        %v3872 = vlaneseq
        %v3873 = vshrl.u32 %v3872, 7
        %v3874 = vsub.s32 %v3871, %v3873
        %v3875 = vrot.slane %v3859, %v3874
        %v3877 = vunpack.c.l.s4 1966171168
        %v3878 = vunpack.c.0.s8 %v3877
        %v3879 = vlaneseq
        %v3880 = vshrl.u32 %v3879, 7
        %v3881 = vsub.s32 %v3878, %v3880
        %v3882 = vrot.slane %v3860, %v3881
        %v3884 = vunpack.c.l.s4 1966171168
        %v3885 = vunpack.c.0.s8 %v3884
        %v3886 = vlaneseq
        %v3887 = vshrl.u32 %v3886, 7
        %v3888 = vsub.s32 %v3885, %v3887
        %v3889 = vrot.slane %v3861, %v3888
        %v3890 = vcombine.low %v3868, %v3875
        %v3891 = vcombine.low %v3882, %v3889
        %v3893 = vunpack.c.l.s4 1966171168
        %v3894 = vunpack.c.0.s8 %v3893
        %v3895 = vlaneseq
        %v3896 = vshrl.u32 %v3895, 7
        %v3897 = vsub.s32 %v3894, %v3896
        %v3898 = vrot.slane %v3890, %v3897
        %v3900 = vunpack.c.l.s4 1966171168
        %v3901 = vunpack.c.0.s8 %v3900
        %v3902 = vlaneseq
        %v3903 = vshrl.u32 %v3902, 7
        %v3904 = vsub.s32 %v3901, %v3903
        %v3905 = vrot.slane %v3891, %v3904
        %v3906 = vcombine.low %v3898, %v3905
        %v3911 = vunpack.c.l.b16 %v3854
        %v3912 = vunpack.c.l.b16 %v3855
        %v3913 = vunpack.c.l.b16 %v3856
        %v3914 = vunpack.c.l.b16 %v3857
        %v3915 = vpack.c.b16 %v3912, %v3911
        %v3916 = vpack.c.b16 %v3914, %v3913
        %v3920 = vsel %vm536, %v3906, 0
        %3922 = vmatprep.subr.bf16.mxu0 0
        %3923 = vmatpush1.bf16.msra.mxu0 %v3915
        %3924 = vmatprep.subr.bf16.mxu0 0
        %3925 = vmatpush1.bf16.msra.mxu0 %v3916
        %3926 = vmatprep.subr.bf16.mxu0 0
        %3927 = vmatpush1.bf16.msra.mxu0 0
        %3928 = vmatprep.subr.bf16.mxu0 0
        %3929 = vmatpush1.bf16.msra.mxu0 0
        %3930 = vmatprep.subr.bf16.mxu0 0
        %3931 = vmatpush1.bf16.msra.mxu0 0
        %3932 = vmatprep.subr.bf16.mxu0 0
        %3933 = vmatpush1.bf16.msra.mxu0 0
        %3934 = vmatprep.subr.bf16.mxu0 0
        %3935 = vmatpush1.bf16.msra.mxu0 0
        %3936 = vmatprep.subr.bf16.mxu0 0
        %3937 = vmatpush1.bf16.msra.mxu0 0
        %3938 = vmatprep.subr.bf16.mxu0 0
        %3939 = vmatpush1.bf16.msra.mxu0 0
        %3940 = vmatprep.subr.bf16.mxu0 0
        %3941 = vmatpush1.bf16.msra.mxu0 0
        %3942 = vmatprep.subr.bf16.mxu0 0
        %3943 = vmatpush1.bf16.msra.mxu0 0
        %3944 = vmatprep.subr.bf16.mxu0 0
        %3945 = vmatpush1.bf16.msra.mxu0 0
        %3946 = vmatprep.subr.bf16.mxu0 0
        %3947 = vmatpush1.bf16.msra.mxu0 0
        %3948 = vmatprep.subr.bf16.mxu0 0
        %3949 = vmatpush1.bf16.msra.mxu0 0
        %3950 = vmatprep.subr.bf16.mxu0 0
        %3951 = vmatpush1.bf16.msra.mxu0 0
        %3952 = vmatprep.subr.bf16.mxu0 0
        %3953 = vmatpush1.bf16.msra.mxu0 0
        %3954 = vmatprep.mubr.bf16.mxu0 0
        %3955 = vmatmul.mubr.bf16.gmra.mrb[0].mxu0 %v3920
        %v3956 = vpop.f32.mrb[0].mxu0
        %v3957 = vadd.f32 0.0, %v3956
        %v3958 = vpop.f32.mrb[0].mxu0
        %v3959 = vpop.f32.mrb[0].mxu0
        %v3960 = vadd.f32 0.0, %v3959
        %v3961 = vpop.f32.mrb[0].mxu0
        %3962 = vdwg.mxu0
        %v3963 = vadd.f32 %v3847, %v3957
        %v3964 = vadd.f32 %v3850, %v3960
        %s3965 = scalar_lea.vmem [#allocation14], 48
        %v3966 = vld [vmem:[%s3965] sm:$0xf]
        %v3967 = vld [vmem:[%s3965 + $0x4] sm:$0xf]
        %v3968 = vld [vmem:[%s3965 + $0x8] sm:$0xf]
        %v3969 = vld [vmem:[%s3965 + $0xc] sm:$0xf]
        %v3971 = vcombine.low %v3481, %v3482
        %v3972 = vcombine.low %v3483, %v3484
        %v3973 = vcombine.low %v3485, %v3486
        %v3974 = vcombine.low %v3487, %v3488
        %v3976 = vunpack.c.l.s4 1966171168
        %v3977 = vunpack.c.0.s8 %v3976
        %v3978 = vlaneseq
        %v3979 = vshrl.u32 %v3978, 7
        %v3980 = vsub.s32 %v3977, %v3979
        %v3981 = vrot.slane %v3971, %v3980
        %v3983 = vunpack.c.l.s4 1966171168
        %v3984 = vunpack.c.0.s8 %v3983
        %v3985 = vlaneseq
        %v3986 = vshrl.u32 %v3985, 7
        %v3987 = vsub.s32 %v3984, %v3986
        %v3988 = vrot.slane %v3972, %v3987
        %v3990 = vunpack.c.l.s4 1966171168
        %v3991 = vunpack.c.0.s8 %v3990
        %v3992 = vlaneseq
        %v3993 = vshrl.u32 %v3992, 7
        %v3994 = vsub.s32 %v3991, %v3993
        %v3995 = vrot.slane %v3973, %v3994
        %v3997 = vunpack.c.l.s4 1966171168
        %v3998 = vunpack.c.0.s8 %v3997
        %v3999 = vlaneseq
        %v4000 = vshrl.u32 %v3999, 7
        %v4001 = vsub.s32 %v3998, %v4000
        %v4002 = vrot.slane %v3974, %v4001
        %v4003 = vcombine.low %v3981, %v3988
        %v4004 = vcombine.low %v3995, %v4002
        %v4006 = vunpack.c.l.s4 1966171168
        %v4007 = vunpack.c.0.s8 %v4006
        %v4008 = vlaneseq
        %v4009 = vshrl.u32 %v4008, 7
        %v4010 = vsub.s32 %v4007, %v4009
        %v4011 = vrot.slane %v4003, %v4010
        %v4013 = vunpack.c.l.s4 1966171168
        %v4014 = vunpack.c.0.s8 %v4013
        %v4015 = vlaneseq
        %v4016 = vshrl.u32 %v4015, 7
        %v4017 = vsub.s32 %v4014, %v4016
        %v4018 = vrot.slane %v4004, %v4017
        %v4019 = vcombine.low %v4011, %v4018
        %v4024 = vunpack.c.l.b16 %v3966
        %v4025 = vunpack.c.l.b16 %v3967
        %v4026 = vunpack.c.l.b16 %v3968
        %v4027 = vunpack.c.l.b16 %v3969
        %v4028 = vpack.c.b16 %v4025, %v4024
        %v4029 = vpack.c.b16 %v4027, %v4026
        %v4033 = vsel %vm536, %v4019, 0
        %4035 = vmatprep.subr.bf16.mxu0 0
        %4036 = vmatpush1.bf16.msra.mxu0 %v4028
        %4037 = vmatprep.subr.bf16.mxu0 0
        %4038 = vmatpush1.bf16.msra.mxu0 %v4029
        %4039 = vmatprep.subr.bf16.mxu0 0
        %4040 = vmatpush1.bf16.msra.mxu0 0
        %4041 = vmatprep.subr.bf16.mxu0 0
        %4042 = vmatpush1.bf16.msra.mxu0 0
        %4043 = vmatprep.subr.bf16.mxu0 0
        %4044 = vmatpush1.bf16.msra.mxu0 0
        %4045 = vmatprep.subr.bf16.mxu0 0
        %4046 = vmatpush1.bf16.msra.mxu0 0
        %4047 = vmatprep.subr.bf16.mxu0 0
        %4048 = vmatpush1.bf16.msra.mxu0 0
        %4049 = vmatprep.subr.bf16.mxu0 0
        %4050 = vmatpush1.bf16.msra.mxu0 0
        %4051 = vmatprep.subr.bf16.mxu0 0
        %4052 = vmatpush1.bf16.msra.mxu0 0
        %4053 = vmatprep.subr.bf16.mxu0 0
        %4054 = vmatpush1.bf16.msra.mxu0 0
        %4055 = vmatprep.subr.bf16.mxu0 0
        %4056 = vmatpush1.bf16.msra.mxu0 0
        %4057 = vmatprep.subr.bf16.mxu0 0
        %4058 = vmatpush1.bf16.msra.mxu0 0
        %4059 = vmatprep.subr.bf16.mxu0 0
        %4060 = vmatpush1.bf16.msra.mxu0 0
        %4061 = vmatprep.subr.bf16.mxu0 0
        %4062 = vmatpush1.bf16.msra.mxu0 0
        %4063 = vmatprep.subr.bf16.mxu0 0
        %4064 = vmatpush1.bf16.msra.mxu0 0
        %4065 = vmatprep.subr.bf16.mxu0 0
        %4066 = vmatpush1.bf16.msra.mxu0 0
        %4067 = vmatprep.mubr.bf16.mxu0 0
        %4068 = vmatmul.mubr.bf16.gmra.mrb[0].mxu0 %v4033
        %v4069 = vpop.f32.mrb[0].mxu0
        %v4070 = vadd.f32 0.0, %v4069
        %v4071 = vpop.f32.mrb[0].mxu0
        %v4072 = vpop.f32.mrb[0].mxu0
        %v4073 = vadd.f32 0.0, %v4072
        %v4074 = vpop.f32.mrb[0].mxu0
        %4075 = vdwg.mxu0
        %v4076 = vadd.f32 %v3963, %v4070
        %v4077 = vadd.f32 %v3964, %v4073
        %v4079 = vunpack.c.l.s4 1966171168
        %v4080 = vunpack.c.0.s8 %v4079
        %v4081 = vlaneseq
        %v4082 = vshrl.u32 %v4081, 7
        %v4083 = vsub.s32 %v4080, %v4082
        %v4084 = vrot.slane %v3488, %v4083
        %v4085 = vcombine.high %v4084, %v4084
        %v4087 = vshrl.u32 %v4084, 16
        %v4089 = vrot.slane %v4087, 7
        %v4090 = vrot.slane %v4089, 1
        %v4092 = vshll.u32 %v4085, 16
        %v4094 = vsel %vm1122, %v4090, %v4092
        %s4095 = scalar_lea.vmem [#allocation14], 64
        %v4096 = vld [vmem:[%s4095] sm:$0xf]
        %v4097 = vld [vmem:[%s4095 + $0x4] sm:$0xf]
        %v4098 = vld [vmem:[%s4095 + $0x8] sm:$0xf]
        %v4099 = vld [vmem:[%s4095 + $0xc] sm:$0xf]
        %v4100 = vcombine.low %v3583, %v3592
        %v4101 = vcombine.low %v3601, %v3610
        %v4102 = vcombine.low %v3619, %v3628
        %v4103 = vcombine.low %v3637, %v4094
        %v4105 = vunpack.c.l.s4 1966171168
        %v4106 = vunpack.c.0.s8 %v4105
        %v4107 = vlaneseq
        %v4108 = vshrl.u32 %v4107, 7
        %v4109 = vsub.s32 %v4106, %v4108
        %v4110 = vrot.slane %v4100, %v4109
        %v4112 = vunpack.c.l.s4 1966171168
        %v4113 = vunpack.c.0.s8 %v4112
        %v4114 = vlaneseq
        %v4115 = vshrl.u32 %v4114, 7
        %v4116 = vsub.s32 %v4113, %v4115
        %v4117 = vrot.slane %v4101, %v4116
        %v4119 = vunpack.c.l.s4 1966171168
        %v4120 = vunpack.c.0.s8 %v4119
        %v4121 = vlaneseq
        %v4122 = vshrl.u32 %v4121, 7
        %v4123 = vsub.s32 %v4120, %v4122
        %v4124 = vrot.slane %v4102, %v4123
        %v4126 = vunpack.c.l.s4 1966171168
        %v4127 = vunpack.c.0.s8 %v4126
        %v4128 = vlaneseq
        %v4129 = vshrl.u32 %v4128, 7
        %v4130 = vsub.s32 %v4127, %v4129
        %v4131 = vrot.slane %v4103, %v4130
        %v4132 = vcombine.low %v4110, %v4117
        %v4133 = vcombine.low %v4124, %v4131
        %v4135 = vunpack.c.l.s4 1966171168
        %v4136 = vunpack.c.0.s8 %v4135
        %v4137 = vlaneseq
        %v4138 = vshrl.u32 %v4137, 7
        %v4139 = vsub.s32 %v4136, %v4138
        %v4140 = vrot.slane %v4132, %v4139
        %v4142 = vunpack.c.l.s4 1966171168
        %v4143 = vunpack.c.0.s8 %v4142
        %v4144 = vlaneseq
        %v4145 = vshrl.u32 %v4144, 7
        %v4146 = vsub.s32 %v4143, %v4145
        %v4147 = vrot.slane %v4133, %v4146
        %v4148 = vcombine.low %v4140, %v4147
        %v4153 = vunpack.c.l.b16 %v4096
        %v4154 = vunpack.c.l.b16 %v4097
        %v4155 = vunpack.c.l.b16 %v4098
        %v4156 = vunpack.c.l.b16 %v4099
        %v4157 = vpack.c.b16 %v4154, %v4153
        %v4158 = vpack.c.b16 %v4156, %v4155
        %v4162 = vsel %vm536, %v4148, 0
        %4164 = vmatprep.subr.bf16.mxu0 0
        %4165 = vmatpush1.bf16.msra.mxu0 %v4157
        %4166 = vmatprep.subr.bf16.mxu0 0
        %4167 = vmatpush1.bf16.msra.mxu0 %v4158
        %4168 = vmatprep.subr.bf16.mxu0 0
        %4169 = vmatpush1.bf16.msra.mxu0 0
        %4170 = vmatprep.subr.bf16.mxu0 0
        %4171 = vmatpush1.bf16.msra.mxu0 0
        %4172 = vmatprep.subr.bf16.mxu0 0
        %4173 = vmatpush1.bf16.msra.mxu0 0
        %4174 = vmatprep.subr.bf16.mxu0 0
        %4175 = vmatpush1.bf16.msra.mxu0 0
        %4176 = vmatprep.subr.bf16.mxu0 0
        %4177 = vmatpush1.bf16.msra.mxu0 0
        %4178 = vmatprep.subr.bf16.mxu0 0
        %4179 = vmatpush1.bf16.msra.mxu0 0
        %4180 = vmatprep.subr.bf16.mxu0 0
        %4181 = vmatpush1.bf16.msra.mxu0 0
        %4182 = vmatprep.subr.bf16.mxu0 0
        %4183 = vmatpush1.bf16.msra.mxu0 0
        %4184 = vmatprep.subr.bf16.mxu0 0
        %4185 = vmatpush1.bf16.msra.mxu0 0
        %4186 = vmatprep.subr.bf16.mxu0 0
        %4187 = vmatpush1.bf16.msra.mxu0 0
        %4188 = vmatprep.subr.bf16.mxu0 0
        %4189 = vmatpush1.bf16.msra.mxu0 0
        %4190 = vmatprep.subr.bf16.mxu0 0
        %4191 = vmatpush1.bf16.msra.mxu0 0
        %4192 = vmatprep.subr.bf16.mxu0 0
        %4193 = vmatpush1.bf16.msra.mxu0 0
        %4194 = vmatprep.subr.bf16.mxu0 0
        %4195 = vmatpush1.bf16.msra.mxu0 0
        %4196 = vmatprep.mubr.bf16.mxu0 0
        %4197 = vmatmul.mubr.bf16.gmra.mrb[0].mxu0 %v4162
        %v4198 = vpop.f32.mrb[0].mxu0
        %v4199 = vadd.f32 0.0, %v4198
        %v4200 = vpop.f32.mrb[0].mxu0
        %v4201 = vpop.f32.mrb[0].mxu0
        %v4202 = vadd.f32 0.0, %v4201
        %v4203 = vpop.f32.mrb[0].mxu0
        %4204 = vdwg.mxu0
        %v4205 = vadd.f32 %v4076, %v4199
        %v4206 = vadd.f32 %v4077, %v4202
        %s4207 = scalar_lea.vmem [#allocation14], 80
        %v4208 = vld [vmem:[%s4207] sm:$0xf]
        %v4209 = vld [vmem:[%s4207 + $0x4] sm:$0xf]
        %v4210 = vld [vmem:[%s4207 + $0x8] sm:$0xf]
        %v4211 = vld [vmem:[%s4207 + $0xc] sm:$0xf]
        %v4212 = vcombine.low %v3517, %v3525
        %v4213 = vcombine.low %v3533, %v3541
        %v4214 = vcombine.low %v3549, %v3557
        %v4215 = vcombine.low %v3565, %v4085
        %v4217 = vunpack.c.l.s4 1966171168
        %v4218 = vunpack.c.0.s8 %v4217
        %v4219 = vlaneseq
        %v4220 = vshrl.u32 %v4219, 7
        %v4221 = vsub.s32 %v4218, %v4220
        %v4222 = vrot.slane %v4212, %v4221
        %v4224 = vunpack.c.l.s4 1966171168
        %v4225 = vunpack.c.0.s8 %v4224
        %v4226 = vlaneseq
        %v4227 = vshrl.u32 %v4226, 7
        %v4228 = vsub.s32 %v4225, %v4227
        %v4229 = vrot.slane %v4213, %v4228
        %v4231 = vunpack.c.l.s4 1966171168
        %v4232 = vunpack.c.0.s8 %v4231
        %v4233 = vlaneseq
        %v4234 = vshrl.u32 %v4233, 7
        %v4235 = vsub.s32 %v4232, %v4234
        %v4236 = vrot.slane %v4214, %v4235
        %v4238 = vunpack.c.l.s4 1966171168
        %v4239 = vunpack.c.0.s8 %v4238
        %v4240 = vlaneseq
        %v4241 = vshrl.u32 %v4240, 7
        %v4242 = vsub.s32 %v4239, %v4241
        %v4243 = vrot.slane %v4215, %v4242
        %v4244 = vcombine.low %v4222, %v4229
        %v4245 = vcombine.low %v4236, %v4243
        %v4247 = vunpack.c.l.s4 1966171168
        %v4248 = vunpack.c.0.s8 %v4247
        %v4249 = vlaneseq
        %v4250 = vshrl.u32 %v4249, 7
        %v4251 = vsub.s32 %v4248, %v4250
        %v4252 = vrot.slane %v4244, %v4251
        %v4254 = vunpack.c.l.s4 1966171168
        %v4255 = vunpack.c.0.s8 %v4254
        %v4256 = vlaneseq
        %v4257 = vshrl.u32 %v4256, 7
        %v4258 = vsub.s32 %v4255, %v4257
        %v4259 = vrot.slane %v4245, %v4258
        %v4260 = vcombine.low %v4252, %v4259
        %v4265 = vunpack.c.l.b16 %v4208
        %v4266 = vunpack.c.l.b16 %v4209
        %v4267 = vunpack.c.l.b16 %v4210
        %v4268 = vunpack.c.l.b16 %v4211
        %v4269 = vpack.c.b16 %v4266, %v4265
        %v4270 = vpack.c.b16 %v4268, %v4267
        %v4274 = vsel %vm536, %v4260, 0
        %4276 = vmatprep.subr.bf16.mxu0 0
        %4277 = vmatpush1.bf16.msra.mxu0 %v4269
        %4278 = vmatprep.subr.bf16.mxu0 0
        %4279 = vmatpush1.bf16.msra.mxu0 %v4270
        %4280 = vmatprep.subr.bf16.mxu0 0
        %4281 = vmatpush1.bf16.msra.mxu0 0
        %4282 = vmatprep.subr.bf16.mxu0 0
        %4283 = vmatpush1.bf16.msra.mxu0 0
        %4284 = vmatprep.subr.bf16.mxu0 0
        %4285 = vmatpush1.bf16.msra.mxu0 0
        %4286 = vmatprep.subr.bf16.mxu0 0
        %4287 = vmatpush1.bf16.msra.mxu0 0
        %4288 = vmatprep.subr.bf16.mxu0 0
        %4289 = vmatpush1.bf16.msra.mxu0 0
        %4290 = vmatprep.subr.bf16.mxu0 0
        %4291 = vmatpush1.bf16.msra.mxu0 0
        %4292 = vmatprep.subr.bf16.mxu0 0
        %4293 = vmatpush1.bf16.msra.mxu0 0
        %4294 = vmatprep.subr.bf16.mxu0 0
        %4295 = vmatpush1.bf16.msra.mxu0 0
        %4296 = vmatprep.subr.bf16.mxu0 0
        %4297 = vmatpush1.bf16.msra.mxu0 0
        %4298 = vmatprep.subr.bf16.mxu0 0
        %4299 = vmatpush1.bf16.msra.mxu0 0
        %4300 = vmatprep.subr.bf16.mxu0 0
        %4301 = vmatpush1.bf16.msra.mxu0 0
        %4302 = vmatprep.subr.bf16.mxu0 0
        %4303 = vmatpush1.bf16.msra.mxu0 0
        %4304 = vmatprep.subr.bf16.mxu0 0
        %4305 = vmatpush1.bf16.msra.mxu0 0
        %4306 = vmatprep.subr.bf16.mxu0 0
        %4307 = vmatpush1.bf16.msra.mxu0 0
        %4308 = vmatprep.mubr.bf16.mxu0 0
        %4309 = vmatmul.mubr.bf16.gmra.mrb[0].mxu0 %v4274
        %v4310 = vpop.f32.mrb[0].mxu0
        %v4311 = vadd.f32 0.0, %v4310
        %v4312 = vpop.f32.mrb[0].mxu0
        %v4313 = vpop.f32.mrb[0].mxu0
        %v4314 = vadd.f32 0.0, %v4313
        %v4315 = vpop.f32.mrb[0].mxu0
        %4316 = vdwg.mxu0
        %v4317 = vadd.f32 %v4205, %v4311
        %v4318 = vadd.f32 %v4206, %v4314
        %s4319 = scalar_lea.vmem [#allocation14], 96
        %v4320 = vld [vmem:[%s4319] sm:$0xf]
        %v4321 = vld [vmem:[%s4319 + $0x4] sm:$0xf]
        %v4322 = vld [vmem:[%s4319 + $0x8] sm:$0xf]
        %v4323 = vld [vmem:[%s4319 + $0xc] sm:$0xf]
        %v4325 = vcombine.low %v3488, %v3489
        %v4327 = vunpack.c.l.s4 1966171168
        %v4328 = vunpack.c.0.s8 %v4327
        %v4329 = vlaneseq
        %v4330 = vshrl.u32 %v4329, 7
        %v4331 = vsub.s32 %v4328, %v4330
        %v4332 = vrot.slane %v4325, %v4331
        %v4333 = vcombine.low %v3765, %v3772
        %v4334 = vcombine.low %v3779, %v4332
        %v4336 = vunpack.c.l.s4 1966171168
        %v4337 = vunpack.c.0.s8 %v4336
        %v4338 = vlaneseq
        %v4339 = vshrl.u32 %v4338, 7
        %v4340 = vsub.s32 %v4337, %v4339
        %v4341 = vrot.slane %v4333, %v4340
        %v4343 = vunpack.c.l.s4 1966171168
        %v4344 = vunpack.c.0.s8 %v4343
        %v4345 = vlaneseq
        %v4346 = vshrl.u32 %v4345, 7
        %v4347 = vsub.s32 %v4344, %v4346
        %v4348 = vrot.slane %v4334, %v4347
        %v4349 = vcombine.low %v4341, %v4348
        %v4354 = vunpack.c.l.b16 %v4320
        %v4355 = vunpack.c.l.b16 %v4321
        %v4356 = vunpack.c.l.b16 %v4322
        %v4357 = vunpack.c.l.b16 %v4323
        %v4358 = vpack.c.b16 %v4355, %v4354
        %v4359 = vpack.c.b16 %v4357, %v4356
        %v4363 = vsel %vm536, %v4349, 0
        %4365 = vmatprep.subr.bf16.mxu0 0
        %4366 = vmatpush1.bf16.msra.mxu0 %v4358
        %4367 = vmatprep.subr.bf16.mxu0 0
        %4368 = vmatpush1.bf16.msra.mxu0 %v4359
        %4369 = vmatprep.subr.bf16.mxu0 0
        %4370 = vmatpush1.bf16.msra.mxu0 0
        %4371 = vmatprep.subr.bf16.mxu0 0
        %4372 = vmatpush1.bf16.msra.mxu0 0
        %4373 = vmatprep.subr.bf16.mxu0 0
        %4374 = vmatpush1.bf16.msra.mxu0 0
        %4375 = vmatprep.subr.bf16.mxu0 0
        %4376 = vmatpush1.bf16.msra.mxu0 0
        %4377 = vmatprep.subr.bf16.mxu0 0
        %4378 = vmatpush1.bf16.msra.mxu0 0
        %4379 = vmatprep.subr.bf16.mxu0 0
        %4380 = vmatpush1.bf16.msra.mxu0 0
        %4381 = vmatprep.subr.bf16.mxu0 0
        %4382 = vmatpush1.bf16.msra.mxu0 0
        %4383 = vmatprep.subr.bf16.mxu0 0
        %4384 = vmatpush1.bf16.msra.mxu0 0
        %4385 = vmatprep.subr.bf16.mxu0 0
        %4386 = vmatpush1.bf16.msra.mxu0 0
        %4387 = vmatprep.subr.bf16.mxu0 0
        %4388 = vmatpush1.bf16.msra.mxu0 0
        %4389 = vmatprep.subr.bf16.mxu0 0
        %4390 = vmatpush1.bf16.msra.mxu0 0
        %4391 = vmatprep.subr.bf16.mxu0 0
        %4392 = vmatpush1.bf16.msra.mxu0 0
        %4393 = vmatprep.subr.bf16.mxu0 0
        %4394 = vmatpush1.bf16.msra.mxu0 0
        %4395 = vmatprep.subr.bf16.mxu0 0
        %4396 = vmatpush1.bf16.msra.mxu0 0
        %4397 = vmatprep.mubr.bf16.mxu0 0
        %4398 = vmatmul.mubr.bf16.gmra.mrb[0].mxu0 %v4363
        %v4399 = vpop.f32.mrb[0].mxu0
        %v4400 = vadd.f32 0.0, %v4399
        %v4401 = vpop.f32.mrb[0].mxu0
        %v4402 = vpop.f32.mrb[0].mxu0
        %v4403 = vadd.f32 0.0, %v4402
        %v4404 = vpop.f32.mrb[0].mxu0
        %4405 = vdwg.mxu0
        %v4406 = vadd.f32 %v4317, %v4400
        %v4407 = vadd.f32 %v4318, %v4403
        %v4409 = vunpack.c.l.s4 1966171168
        %v4410 = vunpack.c.0.s8 %v4409
        %v4411 = vlaneseq
        %v4412 = vshrl.u32 %v4411, 7
        %v4413 = vsub.s32 %v4410, %v4412
        %v4414 = vrot.slane %v3489, %v4413
        %v4415 = vcombine.high %v4414, %v4414
        %v4417 = vshrl.u32 %v4414, 16
        %v4419 = vrot.slane %v4417, 7
        %v4420 = vrot.slane %v4419, 1
        %v4422 = vshll.u32 %v4415, 16
        %v4424 = vsel %vm1122, %v4420, %v4422
        %s4425 = scalar_lea.vmem [#allocation14], 112
        %v4426 = vld [vmem:[%s4425] sm:$0xf]
        %v4427 = vld [vmem:[%s4425 + $0x4] sm:$0xf]
        %v4428 = vld [vmem:[%s4425 + $0x8] sm:$0xf]
        %v4429 = vld [vmem:[%s4425 + $0xc] sm:$0xf]
        %v4430 = vcombine.low %v4094, %v4424
        %v4432 = vunpack.c.l.s4 1966171168
        %v4433 = vunpack.c.0.s8 %v4432
        %v4434 = vlaneseq
        %v4435 = vshrl.u32 %v4434, 7
        %v4436 = vsub.s32 %v4433, %v4435
        %v4437 = vrot.slane %v4430, %v4436
        %v4438 = vcombine.low %v3660, %v3667
        %v4439 = vcombine.low %v3674, %v4437
        %v4441 = vunpack.c.l.s4 1966171168
        %v4442 = vunpack.c.0.s8 %v4441
        %v4443 = vlaneseq
        %v4444 = vshrl.u32 %v4443, 7
        %v4445 = vsub.s32 %v4442, %v4444
        %v4446 = vrot.slane %v4438, %v4445
        %v4448 = vunpack.c.l.s4 1966171168
        %v4449 = vunpack.c.0.s8 %v4448
        %v4450 = vlaneseq
        %v4451 = vshrl.u32 %v4450, 7
        %v4452 = vsub.s32 %v4449, %v4451
        %v4453 = vrot.slane %v4439, %v4452
        %v4454 = vcombine.low %v4446, %v4453
        %v4459 = vunpack.c.l.b16 %v4426
        %v4460 = vunpack.c.l.b16 %v4427
        %v4461 = vunpack.c.l.b16 %v4428
        %v4462 = vunpack.c.l.b16 %v4429
        %v4463 = vpack.c.b16 %v4460, %v4459
        %v4464 = vpack.c.b16 %v4462, %v4461
        %v4468 = vsel %vm536, %v4454, 0
        %4470 = vmatprep.subr.bf16.mxu0 0
        %4471 = vmatpush1.bf16.msra.mxu0 %v4463
        %4472 = vmatprep.subr.bf16.mxu0 0
        %4473 = vmatpush1.bf16.msra.mxu0 %v4464
        %4474 = vmatprep.subr.bf16.mxu0 0
        %4475 = vmatpush1.bf16.msra.mxu0 0
        %4476 = vmatprep.subr.bf16.mxu0 0
        %4477 = vmatpush1.bf16.msra.mxu0 0
        %4478 = vmatprep.subr.bf16.mxu0 0
        %4479 = vmatpush1.bf16.msra.mxu0 0
        %4480 = vmatprep.subr.bf16.mxu0 0
        %4481 = vmatpush1.bf16.msra.mxu0 0
        %4482 = vmatprep.subr.bf16.mxu0 0
        %4483 = vmatpush1.bf16.msra.mxu0 0
        %4484 = vmatprep.subr.bf16.mxu0 0
        %4485 = vmatpush1.bf16.msra.mxu0 0
        %4486 = vmatprep.subr.bf16.mxu0 0
        %4487 = vmatpush1.bf16.msra.mxu0 0
        %4488 = vmatprep.subr.bf16.mxu0 0
        %4489 = vmatpush1.bf16.msra.mxu0 0
        %4490 = vmatprep.subr.bf16.mxu0 0
        %4491 = vmatpush1.bf16.msra.mxu0 0
        %4492 = vmatprep.subr.bf16.mxu0 0
        %4493 = vmatpush1.bf16.msra.mxu0 0
        %4494 = vmatprep.subr.bf16.mxu0 0
        %4495 = vmatpush1.bf16.msra.mxu0 0
        %4496 = vmatprep.subr.bf16.mxu0 0
        %4497 = vmatpush1.bf16.msra.mxu0 0
        %4498 = vmatprep.subr.bf16.mxu0 0
        %4499 = vmatpush1.bf16.msra.mxu0 0
        %4500 = vmatprep.subr.bf16.mxu0 0
        %4501 = vmatpush1.bf16.msra.mxu0 0
        %4502 = vmatprep.mubr.bf16.mxu0 0
        %4503 = vmatmul.mubr.bf16.gmra.mrb[0].mxu0 %v4468
        %v4504 = vpop.f32.mrb[0].mxu0
        %v4505 = vadd.f32 0.0, %v4504
        %v4506 = vpop.f32.mrb[0].mxu0
        %v4507 = vpop.f32.mrb[0].mxu0
        %v4508 = vadd.f32 0.0, %v4507
        %v4509 = vpop.f32.mrb[0].mxu0
        %4510 = vdwg.mxu0
        %v4511 = vadd.f32 %v4406, %v4505
        %v4512 = vadd.f32 %v4407, %v4508
        %s4513 = scalar_lea.vmem [#allocation14], 128
        %v4514 = vld [vmem:[%s4513] sm:$0xf]
        %v4515 = vld [vmem:[%s4513 + $0x4] sm:$0xf]
        %v4516 = vld [vmem:[%s4513 + $0x8] sm:$0xf]
        %v4517 = vld [vmem:[%s4513 + $0xc] sm:$0xf]
        %v4518 = vcombine.low %v4085, %v4415
        %v4520 = vunpack.c.l.s4 1966171168
        %v4521 = vunpack.c.0.s8 %v4520
        %v4522 = vlaneseq
        %v4523 = vshrl.u32 %v4522, 7
        %v4524 = vsub.s32 %v4521, %v4523
        %v4525 = vrot.slane %v4518, %v4524
        %v4526 = vcombine.low %v3875, %v3882
        %v4527 = vcombine.low %v3889, %v4525
        %v4529 = vunpack.c.l.s4 1966171168
        %v4530 = vunpack.c.0.s8 %v4529
        %v4531 = vlaneseq
        %v4532 = vshrl.u32 %v4531, 7
        %v4533 = vsub.s32 %v4530, %v4532
        %v4534 = vrot.slane %v4526, %v4533
        %v4536 = vunpack.c.l.s4 1966171168
        %v4537 = vunpack.c.0.s8 %v4536
        %v4538 = vlaneseq
        %v4539 = vshrl.u32 %v4538, 7
        %v4540 = vsub.s32 %v4537, %v4539
        %v4541 = vrot.slane %v4527, %v4540
        %v4542 = vcombine.low %v4534, %v4541
        %v4547 = vunpack.c.l.b16 %v4514
        %v4548 = vunpack.c.l.b16 %v4515
        %v4549 = vunpack.c.l.b16 %v4516
        %v4550 = vunpack.c.l.b16 %v4517
        %v4551 = vpack.c.b16 %v4548, %v4547
        %v4552 = vpack.c.b16 %v4550, %v4549
        %v4556 = vsel %vm536, %v4542, 0
        %4558 = vmatprep.subr.bf16.mxu0 0
        %4559 = vmatpush1.bf16.msra.mxu0 %v4551
        %4560 = vmatprep.subr.bf16.mxu0 0
        %4561 = vmatpush1.bf16.msra.mxu0 %v4552
        %4562 = vmatprep.subr.bf16.mxu0 0
        %4563 = vmatpush1.bf16.msra.mxu0 0
        %4564 = vmatprep.subr.bf16.mxu0 0
        %4565 = vmatpush1.bf16.msra.mxu0 0
        %4566 = vmatprep.subr.bf16.mxu0 0
        %4567 = vmatpush1.bf16.msra.mxu0 0
        %4568 = vmatprep.subr.bf16.mxu0 0
        %4569 = vmatpush1.bf16.msra.mxu0 0
        %4570 = vmatprep.subr.bf16.mxu0 0
        %4571 = vmatpush1.bf16.msra.mxu0 0
        %4572 = vmatprep.subr.bf16.mxu0 0
        %4573 = vmatpush1.bf16.msra.mxu0 0
        %4574 = vmatprep.subr.bf16.mxu0 0
        %4575 = vmatpush1.bf16.msra.mxu0 0
        %4576 = vmatprep.subr.bf16.mxu0 0
        %4577 = vmatpush1.bf16.msra.mxu0 0
        %4578 = vmatprep.subr.bf16.mxu0 0
        %4579 = vmatpush1.bf16.msra.mxu0 0
        %4580 = vmatprep.subr.bf16.mxu0 0
        %4581 = vmatpush1.bf16.msra.mxu0 0
        %4582 = vmatprep.subr.bf16.mxu0 0
        %4583 = vmatpush1.bf16.msra.mxu0 0
        %4584 = vmatprep.subr.bf16.mxu0 0
        %4585 = vmatpush1.bf16.msra.mxu0 0
        %4586 = vmatprep.subr.bf16.mxu0 0
        %4587 = vmatpush1.bf16.msra.mxu0 0
        %4588 = vmatprep.subr.bf16.mxu0 0
        %4589 = vmatpush1.bf16.msra.mxu0 0
        %4590 = vmatprep.mubr.bf16.mxu0 0
        %4591 = vmatmul.mubr.bf16.gmra.mrb[0].mxu0 %v4556
        %v4592 = vpop.f32.mrb[0].mxu0
        %v4593 = vadd.f32 0.0, %v4592
        %v4594 = vpop.f32.mrb[0].mxu0
        %v4595 = vpop.f32.mrb[0].mxu0
        %v4596 = vadd.f32 0.0, %v4595
        %v4597 = vpop.f32.mrb[0].mxu0
        %4598 = vdwg.mxu0
        %v4599 = vadd.f32 %v4511, %v4593
        %v4600 = vadd.f32 %v4512, %v4596
        %v4601 = vld [vmem:[%s8] sm:$0x1]
        %v4603 = vlaneseq
        %v4604 = vshrl.u32 %v4603, 7
        %v4605 = vsub.s32 0, %v4604
        %v4606 = vrot.slane %v4601, %v4605
        %v4608 = vadd.f32 %v4599, %v4606
        %v4609 = vadd.f32 %v4600, %v4606
        %v4610 = vmax.f32 %v4608, 0.0
        %v4611 = vmax.f32 %v4609, 0.0
        %v4612 = vpack.c.bf16 %v4611, %v4610
        %v4614 = vcombine.high %v4612, %v4612
        %v4616 = vunpack.c.l.s4 1966171168
        %v4617 = vunpack.c.0.s8 %v4616
        %v4618 = vlaneseq
        %v4619 = vshrl.u32 %v4618, 7
        %v4620 = vsub.s32 %v4617, %v4619
        %v4621 = vrot.slane %v4612, %v4620
        %v4623 = vunpack.c.l.s4 1966171168
        %v4624 = vunpack.c.0.s8 %v4623
        %v4625 = vlaneseq
        %v4626 = vshrl.u32 %v4625, 7
        %v4627 = vsub.s32 %v4624, %v4626
        %v4628 = vrot.slane %v4614, %v4627
        %v4629 = vcombine.high %v4621, %v4621
        %v4630 = vcombine.high %v4628, %v4628
        %v4632 = vunpack.c.l.s4 1966171168
        %v4633 = vunpack.c.0.s8 %v4632
        %v4634 = vlaneseq
        %v4635 = vshrl.u32 %v4634, 7
        %v4636 = vsub.s32 %v4633, %v4635
        %v4637 = vrot.slane %v4621, %v4636
        %v4639 = vunpack.c.l.s4 1966171168
        %v4640 = vunpack.c.0.s8 %v4639
        %v4641 = vlaneseq
        %v4642 = vshrl.u32 %v4641, 7
        %v4643 = vsub.s32 %v4640, %v4642
        %v4644 = vrot.slane %v4628, %v4643
        %v4646 = vunpack.c.l.s4 1966171168
        %v4647 = vunpack.c.0.s8 %v4646
        %v4648 = vlaneseq
        %v4649 = vshrl.u32 %v4648, 7
        %v4650 = vsub.s32 %v4647, %v4649
        %v4651 = vrot.slane %v4629, %v4650
        %v4653 = vunpack.c.l.s4 1966171168
        %v4654 = vunpack.c.0.s8 %v4653
        %v4655 = vlaneseq
        %v4656 = vshrl.u32 %v4655, 7
        %v4657 = vsub.s32 %v4654, %v4656
        %v4658 = vrot.slane %v4630, %v4657
        %v4659 = vcombine.high %v4637, %v4637
        %v4660 = vcombine.high %v4644, %v4644
        %v4661 = vcombine.high %v4651, %v4651
        %v4662 = vcombine.high %v4658, %v4658
        %vm4671 = vcmask 253952
        %4672 = vst.msk [vmem:[%s448] sm:$0x1] %vm4671, %v4637
        %4673 = vst.msk [vmem:[%s448 + $0x1] sm:$0x1] %vm4671, %v4651
        %4674 = vst.msk [vmem:[%s448 + $0x2] sm:$0x1] %vm4671, %v4659
        %4675 = vst.msk [vmem:[%s448 + $0x3] sm:$0x1] %vm4671, %v4661
        %4676 = vst.msk [vmem:[%s448 + $0x4] sm:$0x1] %vm4671, %v4644
        %4677 = vst.msk [vmem:[%s448 + $0x5] sm:$0x1] %vm4671, %v4658
        %4678 = vst.msk [vmem:[%s448 + $0x6] sm:$0x1] %vm4671, %v4660
        %4679 = vst.msk [vmem:[%s448 + $0x7] sm:$0x1] %vm4671, %v4662
        %s4680 = sand.u32 %s238, 1
        %s4681 = scalar_lea.sflag [#allocation7], %s4680
        %s4682 = sand.u32 %s238, 1
        %s4683 = smul.addr %s4682, 8
        %s4684 = scalar_lea.vmem [#allocation16], %s4683
        // Predicated region
        $region81: #{tpu_custom_call.1} parent=55 // pred_check
          %p4685 = pneg %p248
        $region82: #{tpu_custom_call.1} parent=55 // pred_check_branch
          %4687 = sbr.rel (%p4685) target = $region84
        $region83: #{tpu_custom_call.1} parent=55 // pred_region
          %s4689 = ssub.s32 128, 128
          %4690 = vsyncadd %s4681, %s4689
          %s4691 = smul.addr %s31, 8
          %s4692 = smul.addr %s4691, 16
          %s4693 = scalar_lea.hbm %s9, %s4692
          %s4694 = sshll.u32 %s4684, 4
          %s4695 = int_to_ptr.vmem [resolvable:$true] %s4694
          %4700 = dma.vmem_to_hbm [thread:$0]  %s4695, 128, %s4693, %s4681, 16, 16, 1
        $region84: #{tpu_custom_call.1} parent=55 // pred_fallthru
          _
      $region56: #{tpu_custom_call.1} parent=5 // pred_fallthru
        _
      %p4701 = scmp.le.s32.totalorder 2, %s26
      // Predicated region
      $region85: #{tpu_custom_call.1} parent=5 // pred_check
        %p4702 = pneg %p4701
      $region86: #{tpu_custom_call.1} parent=5 // pred_check_branch
        %4704 = sbr.rel (%p4702) target = $region88
      $region87: #{tpu_custom_call.1} parent=5 // pred_region
        %s4705 = ssub.s32 %s26, 2
        // Predicated region
        $region89: #{tpu_custom_call.1} parent=87 // pred_check
          %p4706 = pneg %p254
        $region90: #{tpu_custom_call.1} parent=87 // pred_check_branch
          %4708 = sbr.rel (%p4706) target = $region92
        $region91: #{tpu_custom_call.1} parent=87 // pred_region
          %s4709 = sand.u32 %s239, 1
          %s4710 = scalar_lea.sflag [#allocation7], %s4709
          %s4711 = sand.u32 %s239, 1
          %s4712 = smul.addr %s4711, 8
          %s4713 = scalar_lea.vmem [#allocation16], %s4712
          %4714 = dma.done %s4710, 128
        $region92: #{tpu_custom_call.1} parent=87 // pred_fallthru
          _
      $region88: #{tpu_custom_call.1} parent=5 // pred_fallthru
        _
    $region6: #{tpu_custom_call.1} parent=1 // loop_footer
      %s30 = sadd.s32 1, %s26
    $region7: #{tpu_custom_call.1} parent=1 // loop_footer_branch
      %25 = sbr.rel target = $region3
    $region8: #{tpu_custom_call.1} parent=1 // loop_exit
      _
    %4715 = vsyncpa [#allocation6], 1
    %s4716 = scalar_lea.sflag [#allocation6], 1
    %4717 = vsyncpa %s4716, 1
    %4718 = vsyncpa [#allocation9], 1
    %s4719 = scalar_lea.sflag [#allocation9], 1
    %4720 = vsyncpa %s4719, 1
    %4721 = vsyncpa [#allocation12], 1
    %4722 = vsyncpa [#allocation15], 1
    %4723 = vsyncpa [#allocation7], 1
    %s4724 = scalar_lea.sflag [#allocation7], 1
    %4725 = vsyncpa %s4724, 1

</llo_original>
